<compile_context>
chip_gen: v7x
topology: tpu7x:2x2x1
jax: 0.10.0
libtpu: 0.0.40
codegen_flags: <defaults>
</compile_context>

<pallas_src>
import functools

import jax
import jax.numpy as jnp
import numpy as np
from jax.experimental import pallas as pl
from jax.experimental.pallas import tpu as pltpu

# Whole-array-in-VMEM spec (shapes in this script are tiny; one block each).
VMEM = pl.BlockSpec(memory_space=pltpu.MemorySpace.VMEM)


# --------------------------------------------------------------------------- #
# Fused forward kernel.
#   pre     = (x - b_dec) @ W_enc + b_enc ; static = relu(pre)
#   gate    = sigmoid(static @ W_eg^T + b_eg) ; gated = static * gate
#   memory  = roll(memory, -1); memory[-1] = gated.mean(0)
#   h_enc   = last hidden of LSTM(memory)            (single sequence)
#   h_dec   = one-step LSTM decoder from zero state on h_enc (computed once)
#   dgate   = sigmoid(static @ W_dg^T + b_dg)
#   decoded = (static * dgate + h_dec) @ W_dec + b_dec
#   life'   = life * active + active,  active = (gate > 0.1).mean(0)
# PyTorch LSTM gate order is (i, f, g, o); b = b_ih + b_hh.
# --------------------------------------------------------------------------- #
def _temporal_sae_kernel(window, hidden,
                         x_ref, b_dec_ref, w_enc_ref, b_enc_ref,
                         weg_t_ref, beg_ref, wdg_t_ref, bdg_ref,
                         wih_e_t_ref, whh_e_t_ref, b_lstm_e_ref,
                         wih_d_t_ref, b_lstm_d_ref, w_dec_ref,
                         mem_ref, life_ref,
                         out_ref, new_mem_ref, new_life_ref):
    H = hidden
    x = x_ref[...]
    b_dec = b_dec_ref[...]

    # ---- encoder ----
    pre = jnp.dot(x - b_dec, w_enc_ref[...],
                  preferred_element_type=jnp.float32) + b_enc_ref[...]
    static = jnp.maximum(pre, 0.0)                                  # relu
    gate = jax.nn.sigmoid(
        jnp.dot(static, weg_t_ref[...], preferred_element_type=jnp.float32)
        + beg_ref[...])
    gated = static * gate
    mean_gated = jnp.mean(gated, axis=0, keepdims=True)             # (1, d_sae)

    # ---- feature_lifecycles update (fused; full `gate` never leaves VMEM) ----
    active = jnp.mean((gate > 0.1).astype(jnp.float32), axis=0, keepdims=True)
    new_life_ref[...] = life_ref[...] * active + active

    # ---- feature_memory roll + append, written straight to the output ----
    new_mem_ref[0:window - 1, :] = mem_ref[1:window, :]
    new_mem_ref[window - 1:window, :] = mean_gated
    new_mem = new_mem_ref[...]                                       # (window, d_sae)

    # ---- LSTM encoder over the memory window (one sequence; identical for
    #      every batch row). Input projection hoisted out of the recurrence. ----
    x_proj = jnp.dot(new_mem, wih_e_t_ref[...],
                     preferred_element_type=jnp.float32) + b_lstm_e_ref[...]  # (window, 4H)
    h = jnp.zeros((1, H), jnp.float32)
    c = jnp.zeros((1, H), jnp.float32)
    for t in range(window):                          # static trip count -> unrolled
        g_all = x_proj[t:t + 1, :] + jnp.dot(h, whh_e_t_ref[...],
                                             preferred_element_type=jnp.float32)
        i = jax.nn.sigmoid(g_all[:, 0 * H:1 * H])
        f = jax.nn.sigmoid(g_all[:, 1 * H:2 * H])
        g = jnp.tanh(g_all[:, 2 * H:3 * H])
        o = jax.nn.sigmoid(g_all[:, 3 * H:4 * H])
        c = f * c + i * g
        h = o * jnp.tanh(c)
    # h: (1, H) encoder last hidden state (shared by the whole batch).

    # ---- one-step LSTM decoder from zero state, computed ONCE on (1, H).
    #      h0 = c0 = 0 => forget-gate and W_hh terms vanish. ----
    D = static.shape[1]                                              # d_sae
    dg = jnp.dot(h, wih_d_t_ref[...],
                 preferred_element_type=jnp.float32) + b_lstm_d_ref[...]      # (1, 4*d_sae)
    i_d = jax.nn.sigmoid(dg[:, 0 * D:1 * D])
    g_d = jnp.tanh(dg[:, 2 * D:3 * D])
    o_d = jax.nn.sigmoid(dg[:, 3 * D:4 * D])
    h_dec = o_d * jnp.tanh(i_d * g_d)                                # (1, d_sae)

    # ---- decoder ----
    dgate = jax.nn.sigmoid(
        jnp.dot(static, wdg_t_ref[...], preferred_element_type=jnp.float32)
        + bdg_ref[...])
    combined = static * dgate + h_dec                # (1, d_sae) row broadcast
    out_ref[...] = jnp.dot(combined, w_dec_ref[...],
                           preferred_element_type=jnp.float32) + b_dec


# --------------------------------------------------------------------------- #
# Parameters
# --------------------------------------------------------------------------- #
def init_params(key, d_in, d_sae, hidden):
    ks = jax.random.split(key, 14)
    s = 0.05
    n = lambda k, shape: s * jax.random.normal(k, shape, jnp.float32)
    return {
        "W_enc": n(ks[0], (d_in, d_sae)),
        "W_dec": n(ks[1], (d_sae, d_in)),
        "b_enc": n(ks[2], (d_sae,)),
        "b_dec": n(ks[3], (d_in,)),
        # encoder_gate / decoder_gate: nn.Linear(d_sae, d_sae) weights [out, in]
        "W_eg": n(ks[4], (d_sae, d_sae)),
        "b_eg": n(ks[5], (d_sae,)),
        "W_dg": n(ks[6], (d_sae, d_sae)),
        "b_dg": n(ks[7], (d_sae,)),
        # lstm_encoder: LSTM(d_sae -> hidden);  b = b_ih + b_hh (equivalent)
        "enc_W_ih": n(ks[8], (4 * hidden, d_sae)),
        "enc_W_hh": n(ks[9], (4 * hidden, hidden)),
        "enc_b": n(ks[10], (4 * hidden,)),
        # lstm_decoder: LSTM(hidden -> d_sae); only W_ih / b matter (h0 = c0 = 0)
        "dec_W_ih": n(ks[11], (4 * d_sae, hidden)),
        "dec_b": n(ks[12], (4 * d_sae,)),
        # NOTE: static_temporal_bridge is computed-but-unused (dead code) in the
        # PyTorch forward, so it is intentionally not materialized here.
    }


def prepare_kernel_params(params):
    """One-time weight layout prep (transposes + 2-D bias reshape), OUTSIDE jit."""
    r = lambda v: v.reshape(1, -1)
    return {
        "b_dec": r(params["b_dec"]),
        "W_enc": params["W_enc"],
        "b_enc": r(params["b_enc"]),
        "W_eg_T": params["W_eg"].T,
        "b_eg": r(params["b_eg"]),
        "W_dg_T": params["W_dg"].T,
        "b_dg": r(params["b_dg"]),
        "enc_W_ih_T": params["enc_W_ih"].T,
        "enc_W_hh_T": params["enc_W_hh"].T,
        "enc_b": r(params["enc_b"]),
        "dec_W_ih_T": params["dec_W_ih"].T,
        "dec_b": r(params["dec_b"]),
        "W_dec": params["W_dec"],
    }


# --------------------------------------------------------------------------- #
# Wrapper: one fused pallas_call.
# --------------------------------------------------------------------------- #
def temporal_sae_forward(kp, x, feature_memory, feature_lifecycles):
    B, d_in = x.shape
    d_sae = kp["W_enc"].shape[1]
    H = kp["enc_W_hh_T"].shape[0]
    window = feature_memory.shape[0]
    life2d = feature_lifecycles.reshape(1, -1)

    decoded, new_mem, new_life = pl.pallas_call(
        functools.partial(_temporal_sae_kernel, window, H),
        out_shape=(jax.ShapeDtypeStruct((B, d_in), jnp.float32),
                   jax.ShapeDtypeStruct((window, d_sae), jnp.float32),
                   jax.ShapeDtypeStruct((1, d_sae), jnp.float32)),
        in_specs=[VMEM] * 16,
        out_specs=(VMEM, VMEM, VMEM),
        compiler_params=pltpu.CompilerParams(vmem_limit_bytes=32 * 1024 * 1024),
    )(x, kp["b_dec"], kp["W_enc"], kp["b_enc"],
      kp["W_eg_T"], kp["b_eg"], kp["W_dg_T"], kp["b_dg"],
      kp["enc_W_ih_T"], kp["enc_W_hh_T"], kp["enc_b"],
      kp["dec_W_ih_T"], kp["dec_b"], kp["W_dec"],
      feature_memory, life2d)

    return decoded, new_mem, new_life.reshape(-1)


# --------------------------------------------------------------------------- #
# Pure-JAX reference of the PyTorch forward for correctness checking.
# --------------------------------------------------------------------------- #
def reference_forward(params, x, feature_memory, feature_lifecycles):
    pre = (x - params["b_dec"]) @ params["W_enc"] + params["b_enc"]
    static = jnp.maximum(pre, 0.0)
    gate = jax.nn.sigmoid(static @ params["W_eg"].T + params["b_eg"])
    gated = static * gate
    mem = jnp.concatenate([feature_memory[1:], gated.mean(0, keepdims=True)], 0)

    H = params["enc_W_hh"].shape[1]
    h = jnp.zeros((H,), jnp.float32)
    c = jnp.zeros((H,), jnp.float32)
    for t in range(mem.shape[0]):
        ga = mem[t] @ params["enc_W_ih"].T + h @ params["enc_W_hh"].T + params["enc_b"]
        i = jax.nn.sigmoid(ga[:H]); f = jax.nn.sigmoid(ga[H:2 * H])
        g = jnp.tanh(ga[2 * H:3 * H]); o = jax.nn.sigmoid(ga[3 * H:])
        c = f * c + i * g
        h = o * jnp.tanh(c)
    temporal = jnp.broadcast_to(h, (x.shape[0], H))

    dgate = jax.nn.sigmoid(static @ params["W_dg"].T + params["b_dg"])
    gated_static = static * dgate
    D = static.shape[1]
    ga = temporal @ params["dec_W_ih"].T + params["dec_b"]
    i = jax.nn.sigmoid(ga[:, :D]); g = jnp.tanh(ga[:, 2 * D:3 * D])
    o = jax.nn.sigmoid(ga[:, 3 * D:])
    h_dec = o * jnp.tanh(i * g)
    decoded = (gated_static + h_dec) @ params["W_dec"] + params["b_dec"]

    active = (gate > 0.1).astype(jnp.float32).mean(0)
    new_life = feature_lifecycles * active + active
    return decoded, mem, new_life


if __name__ == "__main__":
    # Lane/sublane-friendly small shapes: d_in, d_sae, H multiples of 128; B of 8.
    B, d_in, d_sae, H, window = 8, 128, 256, 128, 8
    key = jax.random.PRNGKey(0)
    kx, kp, km = jax.random.split(key, 3)
    x = jax.random.normal(kx, (B, d_in), jnp.float32)
    params = init_params(kp, d_in, d_sae, H)
    kernel_params = prepare_kernel_params(params)   # one-time layout prep, outside jit
    feature_memory = 0.1 * jax.random.normal(km, (window, d_sae), jnp.float32)
    feature_lifecycles = jnp.zeros((d_sae,), jnp.float32)

    fwd = jax.jit(temporal_sae_forward)
    decoded, new_mem, new_life = fwd(kernel_params, x, feature_memory,
                                     feature_lifecycles)
    jax.block_until_ready((decoded, new_mem, new_life))

    ref_dec, ref_mem, _ = reference_forward(params, x, feature_memory,
                                            feature_lifecycles)
    np.testing.assert_allclose(np.asarray(decoded), np.asarray(ref_dec),
                               rtol=2e-4, atol=2e-4)
    np.testing.assert_allclose(np.asarray(new_mem), np.asarray(ref_mem),
                               rtol=2e-4, atol=2e-4)
    print("KERNEL_OK")
</pallas_src>

<mosaic_0001>
module attributes {stable_mosaic.version = 11 : i64} {
  func.func @_temporal_sae_kernel(%arg0: memref<8x128xf32, #tpu.memory_space<vmem>>, %arg1: memref<1x128xf32, #tpu.memory_space<vmem>>, %arg2: memref<128x256xf32, #tpu.memory_space<vmem>>, %arg3: memref<1x256xf32, #tpu.memory_space<vmem>>, %arg4: memref<256x256xf32, #tpu.memory_space<vmem>>, %arg5: memref<1x256xf32, #tpu.memory_space<vmem>>, %arg6: memref<256x256xf32, #tpu.memory_space<vmem>>, %arg7: memref<1x256xf32, #tpu.memory_space<vmem>>, %arg8: memref<256x512xf32, #tpu.memory_space<vmem>>, %arg9: memref<128x512xf32, #tpu.memory_space<vmem>>, %arg10: memref<1x512xf32, #tpu.memory_space<vmem>>, %arg11: memref<128x1024xf32, #tpu.memory_space<vmem>>, %arg12: memref<1x1024xf32, #tpu.memory_space<vmem>>, %arg13: memref<256x128xf32, #tpu.memory_space<vmem>>, %arg14: memref<8x256xf32, #tpu.memory_space<vmem>>, %arg15: memref<1x256xf32, #tpu.memory_space<vmem>>, %arg16: memref<8x128xf32, #tpu.memory_space<vmem>>, %arg17: memref<8x256xf32, #tpu.memory_space<vmem>>, %arg18: memref<1x256xf32, #tpu.memory_space<vmem>>) attributes {dimension_semantics = [], scalar_prefetch = 0 : i64, scratch_operands = 0 : i64, tpu.core_type = #tpu.core_type<tc>} {
    %c0 = arith.constant 0 : index
    %c0_0 = arith.constant 0 : index
    %0 = vector.load %arg0[%c0, %c0_0] : memref<8x128xf32, #tpu.memory_space<vmem>>, vector<8x128xf32>
    %c0_1 = arith.constant 0 : index
    %c0_2 = arith.constant 0 : index
    %1 = vector.load %arg1[%c0_1, %c0_2] : memref<1x128xf32, #tpu.memory_space<vmem>>, vector<1x128xf32>
    %2 = vector.broadcast %1 : vector<1x128xf32> to vector<8x128xf32>
    %3 = arith.subf %0, %2 : vector<8x128xf32>
    %c0_3 = arith.constant 0 : index
    %c0_4 = arith.constant 0 : index
    %4 = vector.load %arg2[%c0_3, %c0_4] : memref<128x256xf32, #tpu.memory_space<vmem>>, vector<128x256xf32>
    %cst = arith.constant dense<0.000000e+00> : vector<8x256xf32>
    %5 = tpu.matmul %3, %4, %cst {dimension_numbers = #tpu.dot_dimension_numbers<[1], [0], [0], [1], [0, 0, 1, 1], [], []>} : vector<8x128xf32>, vector<128x256xf32>, vector<8x256xf32> -> vector<8x256xf32>
    %c0_5 = arith.constant 0 : index
    %c0_6 = arith.constant 0 : index
    %6 = vector.load %arg3[%c0_5, %c0_6] : memref<1x256xf32, #tpu.memory_space<vmem>>, vector<1x256xf32>
    %7 = vector.broadcast %6 : vector<1x256xf32> to vector<8x256xf32>
    %8 = arith.addf %5, %7 : vector<8x256xf32>
    %cst_7 = arith.constant 0.000000e+00 : f32
    %9 = vector.broadcast %cst_7 : f32 to vector<8x256xf32>
    %10 = arith.maximumf %8, %9 : vector<8x256xf32>
    %c0_8 = arith.constant 0 : index
    %c0_9 = arith.constant 0 : index
    %11 = vector.load %arg4[%c0_8, %c0_9] : memref<256x256xf32, #tpu.memory_space<vmem>>, vector<256x256xf32>
    %cst_10 = arith.constant dense<0.000000e+00> : vector<8x256xf32>
    %12 = tpu.matmul %10, %11, %cst_10 {dimension_numbers = #tpu.dot_dimension_numbers<[1], [0], [0], [1], [0, 0, 1, 1], [], []>} : vector<8x256xf32>, vector<256x256xf32>, vector<8x256xf32> -> vector<8x256xf32>
    %c0_11 = arith.constant 0 : index
    %c0_12 = arith.constant 0 : index
    %13 = vector.load %arg5[%c0_11, %c0_12] : memref<1x256xf32, #tpu.memory_space<vmem>>, vector<1x256xf32>
    %14 = vector.broadcast %13 : vector<1x256xf32> to vector<8x256xf32>
    %15 = arith.addf %12, %14 : vector<8x256xf32>
    %16 = arith.negf %15 : vector<8x256xf32>
    %17 = math.exp %16 : vector<8x256xf32>
    %cst_13 = arith.constant 1.000000e+00 : f32
    %18 = vector.broadcast %cst_13 : f32 to vector<8x256xf32>
    %19 = arith.addf %18, %17 : vector<8x256xf32>
    %20 = arith.divf %18, %19 : vector<8x256xf32>
    %21 = arith.mulf %10, %20 : vector<8x256xf32>
    %cst_14 = arith.constant dense<0.000000e+00> : vector<256xf32>
    %22 = vector.multi_reduction <add>, %21, %cst_14 [0] : vector<8x256xf32> to vector<256xf32>
    %23 = vector.shape_cast %22 : vector<256xf32> to vector<1x256xf32>
    %cst_15 = arith.constant 8.000000e+00 : f32
    %24 = vector.broadcast %cst_15 : f32 to vector<1x256xf32>
    %25 = arith.divf %23, %24 : vector<1x256xf32>
    %cst_16 = arith.constant 1.000000e-01 : f32
    %26 = vector.broadcast %cst_16 : f32 to vector<8x256xf32>
    %27 = arith.cmpf ogt, %20, %26 : vector<8x256xf32>
    %28 = arith.extui %27 : vector<8x256xi1> to vector<8x256xi32>
    %29 = arith.sitofp %28 : vector<8x256xi32> to vector<8x256xf32>
    %cst_17 = arith.constant dense<0.000000e+00> : vector<256xf32>
    %30 = vector.multi_reduction <add>, %29, %cst_17 [0] : vector<8x256xf32> to vector<256xf32>
    %31 = vector.shape_cast %30 : vector<256xf32> to vector<1x256xf32>
    %cst_18 = arith.constant 8.000000e+00 : f32
    %32 = vector.broadcast %cst_18 : f32 to vector<1x256xf32>
    %33 = arith.divf %31, %32 : vector<1x256xf32>
    %c0_19 = arith.constant 0 : index
    %c0_20 = arith.constant 0 : index
    %34 = vector.load %arg15[%c0_19, %c0_20] : memref<1x256xf32, #tpu.memory_space<vmem>>, vector<1x256xf32>
    %35 = arith.mulf %34, %33 : vector<1x256xf32>
    %36 = arith.addf %35, %33 : vector<1x256xf32>
    %c0_21 = arith.constant 0 : index
    %c0_22 = arith.constant 0 : index
    %37 = vector.load %arg18[%c0_21, %c0_22] : memref<1x256xf32, #tpu.memory_space<vmem>>, vector<1x256xf32>
    tpu.vector_store %arg18[%c0_21, %c0_22], %36 {strides = array<i32>} : memref<1x256xf32, #tpu.memory_space<vmem>>, vector<1x256xf32>,
    %c1 = arith.constant 1 : index
    %c0_23 = arith.constant 0 : index
    %38 = vector.load %arg14[%c1, %c0_23] : memref<8x256xf32, #tpu.memory_space<vmem>>, vector<7x256xf32>
    %c0_24 = arith.constant 0 : index
    %c0_25 = arith.constant 0 : index
    %39 = vector.load %arg17[%c0_24, %c0_25] : memref<8x256xf32, #tpu.memory_space<vmem>>, vector<7x256xf32>
    tpu.vector_store %arg17[%c0_24, %c0_25], %38 {strides = array<i32>} : memref<8x256xf32, #tpu.memory_space<vmem>>, vector<7x256xf32>,
    %c7 = arith.constant 7 : index
    %c0_26 = arith.constant 0 : index
    %40 = vector.load %arg17[%c7, %c0_26] : memref<8x256xf32, #tpu.memory_space<vmem>>, vector<1x256xf32>
    tpu.vector_store %arg17[%c7, %c0_26], %25 {strides = array<i32>} : memref<8x256xf32, #tpu.memory_space<vmem>>, vector<1x256xf32>,
    %c0_27 = arith.constant 0 : index
    %c0_28 = arith.constant 0 : index
    %41 = vector.load %arg17[%c0_27, %c0_28] : memref<8x256xf32, #tpu.memory_space<vmem>>, vector<8x256xf32>
    %c0_29 = arith.constant 0 : index
    %c0_30 = arith.constant 0 : index
    %42 = vector.load %arg8[%c0_29, %c0_30] : memref<256x512xf32, #tpu.memory_space<vmem>>, vector<256x512xf32>
    %cst_31 = arith.constant dense<0.000000e+00> : vector<8x512xf32>
    %43 = tpu.matmul %41, %42, %cst_31 {dimension_numbers = #tpu.dot_dimension_numbers<[1], [0], [0], [1], [0, 0, 1, 1], [], []>} : vector<8x256xf32>, vector<256x512xf32>, vector<8x512xf32> -> vector<8x512xf32>
    %c0_32 = arith.constant 0 : index
    %c0_33 = arith.constant 0 : index
    %44 = vector.load %arg10[%c0_32, %c0_33] : memref<1x512xf32, #tpu.memory_space<vmem>>, vector<1x512xf32>
    %45 = vector.broadcast %44 : vector<1x512xf32> to vector<8x512xf32>
    %46 = arith.addf %43, %45 : vector<8x512xf32>
    %cst_34 = arith.constant 0.000000e+00 : f32
    %47 = vector.broadcast %cst_34 : f32 to vector<1x128xf32>
    %cst_35 = arith.constant 0.000000e+00 : f32
    %48 = vector.broadcast %cst_35 : f32 to vector<1x128xf32>
    %49 = vector.extract_strided_slice %46 {offsets = [0, 0], sizes = [1, 512], strides = [1, 1]} : vector<8x512xf32> to vector<1x512xf32>
    %c0_36 = arith.constant 0 : index
    %c0_37 = arith.constant 0 : index
    %50 = vector.load %arg9[%c0_36, %c0_37] : memref<128x512xf32, #tpu.memory_space<vmem>>, vector<128x512xf32>
    %cst_38 = arith.constant dense<0.000000e+00> : vector<1x512xf32>
    %51 = tpu.matmul %47, %50, %cst_38 {dimension_numbers = #tpu.dot_dimension_numbers<[1], [0], [0], [1], [0, 0, 1, 1], [], []>} : vector<1x128xf32>, vector<128x512xf32>, vector<1x512xf32> -> vector<1x512xf32>
    %52 = arith.addf %49, %51 : vector<1x512xf32>
    %53 = vector.extract_strided_slice %52 {offsets = [0, 0], sizes = [1, 128], strides = [1, 1]} : vector<1x512xf32> to vector<1x128xf32>
    %54 = arith.negf %53 : vector<1x128xf32>
    %55 = math.exp %54 : vector<1x128xf32>
    %cst_39 = arith.constant 1.000000e+00 : f32
    %56 = vector.broadcast %cst_39 : f32 to vector<1x128xf32>
    %57 = arith.addf %56, %55 : vector<1x128xf32>
    %58 = arith.divf %56, %57 : vector<1x128xf32>
    %59 = vector.extract_strided_slice %52 {offsets = [0, 128], sizes = [1, 128], strides = [1, 1]} : vector<1x512xf32> to vector<1x128xf32>
    %60 = arith.negf %59 : vector<1x128xf32>
    %61 = math.exp %60 : vector<1x128xf32>
    %cst_40 = arith.constant 1.000000e+00 : f32
    %62 = vector.broadcast %cst_40 : f32 to vector<1x128xf32>
    %63 = arith.addf %62, %61 : vector<1x128xf32>
    %64 = arith.divf %62, %63 : vector<1x128xf32>
    %65 = vector.extract_strided_slice %52 {offsets = [0, 256], sizes = [1, 128], strides = [1, 1]} : vector<1x512xf32> to vector<1x128xf32>
    %66 = math.tanh %65 : vector<1x128xf32>
    %67 = vector.extract_strided_slice %52 {offsets = [0, 384], sizes = [1, 128], strides = [1, 1]} : vector<1x512xf32> to vector<1x128xf32>
    %68 = arith.negf %67 : vector<1x128xf32>
    %69 = math.exp %68 : vector<1x128xf32>
    %cst_41 = arith.constant 1.000000e+00 : f32
    %70 = vector.broadcast %cst_41 : f32 to vector<1x128xf32>
    %71 = arith.addf %70, %69 : vector<1x128xf32>
    %72 = arith.divf %70, %71 : vector<1x128xf32>
    %73 = arith.mulf %64, %48 : vector<1x128xf32>
    %74 = arith.mulf %58, %66 : vector<1x128xf32>
    %75 = arith.addf %73, %74 : vector<1x128xf32>
    %76 = math.tanh %75 : vector<1x128xf32>
    %77 = arith.mulf %72, %76 : vector<1x128xf32>
    %78 = vector.extract_strided_slice %46 {offsets = [1, 0], sizes = [1, 512], strides = [1, 1]} : vector<8x512xf32> to vector<1x512xf32>
    %c0_42 = arith.constant 0 : index
    %c0_43 = arith.constant 0 : index
    %79 = vector.load %arg9[%c0_42, %c0_43] : memref<128x512xf32, #tpu.memory_space<vmem>>, vector<128x512xf32>
    %cst_44 = arith.constant dense<0.000000e+00> : vector<1x512xf32>
    %80 = tpu.matmul %77, %79, %cst_44 {dimension_numbers = #tpu.dot_dimension_numbers<[1], [0], [0], [1], [0, 0, 1, 1], [], []>} : vector<1x128xf32>, vector<128x512xf32>, vector<1x512xf32> -> vector<1x512xf32>
    %81 = arith.addf %78, %80 : vector<1x512xf32>
    %82 = vector.extract_strided_slice %81 {offsets = [0, 0], sizes = [1, 128], strides = [1, 1]} : vector<1x512xf32> to vector<1x128xf32>
    %83 = arith.negf %82 : vector<1x128xf32>
    %84 = math.exp %83 : vector<1x128xf32>
    %cst_45 = arith.constant 1.000000e+00 : f32
    %85 = vector.broadcast %cst_45 : f32 to vector<1x128xf32>
    %86 = arith.addf %85, %84 : vector<1x128xf32>
    %87 = arith.divf %85, %86 : vector<1x128xf32>
    %88 = vector.extract_strided_slice %81 {offsets = [0, 128], sizes = [1, 128], strides = [1, 1]} : vector<1x512xf32> to vector<1x128xf32>
    %89 = arith.negf %88 : vector<1x128xf32>
    %90 = math.exp %89 : vector<1x128xf32>
    %cst_46 = arith.constant 1.000000e+00 : f32
    %91 = vector.broadcast %cst_46 : f32 to vector<1x128xf32>
    %92 = arith.addf %91, %90 : vector<1x128xf32>
    %93 = arith.divf %91, %92 : vector<1x128xf32>
    %94 = vector.extract_strided_slice %81 {offsets = [0, 256], sizes = [1, 128], strides = [1, 1]} : vector<1x512xf32> to vector<1x128xf32>
    %95 = math.tanh %94 : vector<1x128xf32>
    %96 = vector.extract_strided_slice %81 {offsets = [0, 384], sizes = [1, 128], strides = [1, 1]} : vector<1x512xf32> to vector<1x128xf32>
    %97 = arith.negf %96 : vector<1x128xf32>
    %98 = math.exp %97 : vector<1x128xf32>
    %cst_47 = arith.constant 1.000000e+00 : f32
    %99 = vector.broadcast %cst_47 : f32 to vector<1x128xf32>
    %100 = arith.addf %99, %98 : vector<1x128xf32>
    %101 = arith.divf %99, %100 : vector<1x128xf32>
    %102 = arith.mulf %93, %75 : vector<1x128xf32>
    %103 = arith.mulf %87, %95 : vector<1x128xf32>
    %104 = arith.addf %102, %103 : vector<1x128xf32>
    %105 = math.tanh %104 : vector<1x128xf32>
    %106 = arith.mulf %101, %105 : vector<1x128xf32>
    %107 = vector.extract_strided_slice %46 {offsets = [2, 0], sizes = [1, 512], strides = [1, 1]} : vector<8x512xf32> to vector<1x512xf32>
    %c0_48 = arith.constant 0 : index
    %c0_49 = arith.constant 0 : index
    %108 = vector.load %arg9[%c0_48, %c0_49] : memref<128x512xf32, #tpu.memory_space<vmem>>, vector<128x512xf32>
    %cst_50 = arith.constant dense<0.000000e+00> : vector<1x512xf32>
    %109 = tpu.matmul %106, %108, %cst_50 {dimension_numbers = #tpu.dot_dimension_numbers<[1], [0], [0], [1], [0, 0, 1, 1], [], []>} : vector<1x128xf32>, vector<128x512xf32>, vector<1x512xf32> -> vector<1x512xf32>
    %110 = arith.addf %107, %109 : vector<1x512xf32>
    %111 = vector.extract_strided_slice %110 {offsets = [0, 0], sizes = [1, 128], strides = [1, 1]} : vector<1x512xf32> to vector<1x128xf32>
    %112 = arith.negf %111 : vector<1x128xf32>
    %113 = math.exp %112 : vector<1x128xf32>
    %cst_51 = arith.constant 1.000000e+00 : f32
    %114 = vector.broadcast %cst_51 : f32 to vector<1x128xf32>
    %115 = arith.addf %114, %113 : vector<1x128xf32>
    %116 = arith.divf %114, %115 : vector<1x128xf32>
    %117 = vector.extract_strided_slice %110 {offsets = [0, 128], sizes = [1, 128], strides = [1, 1]} : vector<1x512xf32> to vector<1x128xf32>
    %118 = arith.negf %117 : vector<1x128xf32>
    %119 = math.exp %118 : vector<1x128xf32>
    %cst_52 = arith.constant 1.000000e+00 : f32
    %120 = vector.broadcast %cst_52 : f32 to vector<1x128xf32>
    %121 = arith.addf %120, %119 : vector<1x128xf32>
    %122 = arith.divf %120, %121 : vector<1x128xf32>
    %123 = vector.extract_strided_slice %110 {offsets = [0, 256], sizes = [1, 128], strides = [1, 1]} : vector<1x512xf32> to vector<1x128xf32>
    %124 = math.tanh %123 : vector<1x128xf32>
    %125 = vector.extract_strided_slice %110 {offsets = [0, 384], sizes = [1, 128], strides = [1, 1]} : vector<1x512xf32> to vector<1x128xf32>
    %126 = arith.negf %125 : vector<1x128xf32>
    %127 = math.exp %126 : vector<1x128xf32>
    %cst_53 = arith.constant 1.000000e+00 : f32
    %128 = vector.broadcast %cst_53 : f32 to vector<1x128xf32>
    %129 = arith.addf %128, %127 : vector<1x128xf32>
    %130 = arith.divf %128, %129 : vector<1x128xf32>
    %131 = arith.mulf %122, %104 : vector<1x128xf32>
    %132 = arith.mulf %116, %124 : vector<1x128xf32>
    %133 = arith.addf %131, %132 : vector<1x128xf32>
    %134 = math.tanh %133 : vector<1x128xf32>
    %135 = arith.mulf %130, %134 : vector<1x128xf32>
    %136 = vector.extract_strided_slice %46 {offsets = [3, 0], sizes = [1, 512], strides = [1, 1]} : vector<8x512xf32> to vector<1x512xf32>
    %c0_54 = arith.constant 0 : index
    %c0_55 = arith.constant 0 : index
    %137 = vector.load %arg9[%c0_54, %c0_55] : memref<128x512xf32, #tpu.memory_space<vmem>>, vector<128x512xf32>
    %cst_56 = arith.constant dense<0.000000e+00> : vector<1x512xf32>
    %138 = tpu.matmul %135, %137, %cst_56 {dimension_numbers = #tpu.dot_dimension_numbers<[1], [0], [0], [1], [0, 0, 1, 1], [], []>} : vector<1x128xf32>, vector<128x512xf32>, vector<1x512xf32> -> vector<1x512xf32>
    %139 = arith.addf %136, %138 : vector<1x512xf32>
    %140 = vector.extract_strided_slice %139 {offsets = [0, 0], sizes = [1, 128], strides = [1, 1]} : vector<1x512xf32> to vector<1x128xf32>
    %141 = arith.negf %140 : vector<1x128xf32>
    %142 = math.exp %141 : vector<1x128xf32>
    %cst_57 = arith.constant 1.000000e+00 : f32
    %143 = vector.broadcast %cst_57 : f32 to vector<1x128xf32>
    %144 = arith.addf %143, %142 : vector<1x128xf32>
    %145 = arith.divf %143, %144 : vector<1x128xf32>
    %146 = vector.extract_strided_slice %139 {offsets = [0, 128], sizes = [1, 128], strides = [1, 1]} : vector<1x512xf32> to vector<1x128xf32>
    %147 = arith.negf %146 : vector<1x128xf32>
    %148 = math.exp %147 : vector<1x128xf32>
    %cst_58 = arith.constant 1.000000e+00 : f32
    %149 = vector.broadcast %cst_58 : f32 to vector<1x128xf32>
    %150 = arith.addf %149, %148 : vector<1x128xf32>
    %151 = arith.divf %149, %150 : vector<1x128xf32>
    %152 = vector.extract_strided_slice %139 {offsets = [0, 256], sizes = [1, 128], strides = [1, 1]} : vector<1x512xf32> to vector<1x128xf32>
    %153 = math.tanh %152 : vector<1x128xf32>
    %154 = vector.extract_strided_slice %139 {offsets = [0, 384], sizes = [1, 128], strides = [1, 1]} : vector<1x512xf32> to vector<1x128xf32>
    %155 = arith.negf %154 : vector<1x128xf32>
    %156 = math.exp %155 : vector<1x128xf32>
    %cst_59 = arith.constant 1.000000e+00 : f32
    %157 = vector.broadcast %cst_59 : f32 to vector<1x128xf32>
    %158 = arith.addf %157, %156 : vector<1x128xf32>
    %159 = arith.divf %157, %158 : vector<1x128xf32>
    %160 = arith.mulf %151, %133 : vector<1x128xf32>
    %161 = arith.mulf %145, %153 : vector<1x128xf32>
    %162 = arith.addf %160, %161 : vector<1x128xf32>
    %163 = math.tanh %162 : vector<1x128xf32>
    %164 = arith.mulf %159, %163 : vector<1x128xf32>
    %165 = vector.extract_strided_slice %46 {offsets = [4, 0], sizes = [1, 512], strides = [1, 1]} : vector<8x512xf32> to vector<1x512xf32>
    %c0_60 = arith.constant 0 : index
    %c0_61 = arith.constant 0 : index
    %166 = vector.load %arg9[%c0_60, %c0_61] : memref<128x512xf32, #tpu.memory_space<vmem>>, vector<128x512xf32>
    %cst_62 = arith.constant dense<0.000000e+00> : vector<1x512xf32>
    %167 = tpu.matmul %164, %166, %cst_62 {dimension_numbers = #tpu.dot_dimension_numbers<[1], [0], [0], [1], [0, 0, 1, 1], [], []>} : vector<1x128xf32>, vector<128x512xf32>, vector<1x512xf32> -> vector<1x512xf32>
    %168 = arith.addf %165, %167 : vector<1x512xf32>
    %169 = vector.extract_strided_slice %168 {offsets = [0, 0], sizes = [1, 128], strides = [1, 1]} : vector<1x512xf32> to vector<1x128xf32>
    %170 = arith.negf %169 : vector<1x128xf32>
    %171 = math.exp %170 : vector<1x128xf32>
    %cst_63 = arith.constant 1.000000e+00 : f32
    %172 = vector.broadcast %cst_63 : f32 to vector<1x128xf32>
    %173 = arith.addf %172, %171 : vector<1x128xf32>
    %174 = arith.divf %172, %173 : vector<1x128xf32>
    %175 = vector.extract_strided_slice %168 {offsets = [0, 128], sizes = [1, 128], strides = [1, 1]} : vector<1x512xf32> to vector<1x128xf32>
    %176 = arith.negf %175 : vector<1x128xf32>
    %177 = math.exp %176 : vector<1x128xf32>
    %cst_64 = arith.constant 1.000000e+00 : f32
    %178 = vector.broadcast %cst_64 : f32 to vector<1x128xf32>
    %179 = arith.addf %178, %177 : vector<1x128xf32>
    %180 = arith.divf %178, %179 : vector<1x128xf32>
    %181 = vector.extract_strided_slice %168 {offsets = [0, 256], sizes = [1, 128], strides = [1, 1]} : vector<1x512xf32> to vector<1x128xf32>
    %182 = math.tanh %181 : vector<1x128xf32>
    %183 = vector.extract_strided_slice %168 {offsets = [0, 384], sizes = [1, 128], strides = [1, 1]} : vector<1x512xf32> to vector<1x128xf32>
    %184 = arith.negf %183 : vector<1x128xf32>
    %185 = math.exp %184 : vector<1x128xf32>
    %cst_65 = arith.constant 1.000000e+00 : f32
    %186 = vector.broadcast %cst_65 : f32 to vector<1x128xf32>
    %187 = arith.addf %186, %185 : vector<1x128xf32>
    %188 = arith.divf %186, %187 : vector<1x128xf32>
    %189 = arith.mulf %180, %162 : vector<1x128xf32>
    %190 = arith.mulf %174, %182 : vector<1x128xf32>
    %191 = arith.addf %189, %190 : vector<1x128xf32>
    %192 = math.tanh %191 : vector<1x128xf32>
    %193 = arith.mulf %188, %192 : vector<1x128xf32>
    %194 = vector.extract_strided_slice %46 {offsets = [5, 0], sizes = [1, 512], strides = [1, 1]} : vector<8x512xf32> to vector<1x512xf32>
    %c0_66 = arith.constant 0 : index
    %c0_67 = arith.constant 0 : index
    %195 = vector.load %arg9[%c0_66, %c0_67] : memref<128x512xf32, #tpu.memory_space<vmem>>, vector<128x512xf32>
    %cst_68 = arith.constant dense<0.000000e+00> : vector<1x512xf32>
    %196 = tpu.matmul %193, %195, %cst_68 {dimension_numbers = #tpu.dot_dimension_numbers<[1], [0], [0], [1], [0, 0, 1, 1], [], []>} : vector<1x128xf32>, vector<128x512xf32>, vector<1x512xf32> -> vector<1x512xf32>
    %197 = arith.addf %194, %196 : vector<1x512xf32>
    %198 = vector.extract_strided_slice %197 {offsets = [0, 0], sizes = [1, 128], strides = [1, 1]} : vector<1x512xf32> to vector<1x128xf32>
    %199 = arith.negf %198 : vector<1x128xf32>
    %200 = math.exp %199 : vector<1x128xf32>
    %cst_69 = arith.constant 1.000000e+00 : f32
    %201 = vector.broadcast %cst_69 : f32 to vector<1x128xf32>
    %202 = arith.addf %201, %200 : vector<1x128xf32>
    %203 = arith.divf %201, %202 : vector<1x128xf32>
    %204 = vector.extract_strided_slice %197 {offsets = [0, 128], sizes = [1, 128], strides = [1, 1]} : vector<1x512xf32> to vector<1x128xf32>
    %205 = arith.negf %204 : vector<1x128xf32>
    %206 = math.exp %205 : vector<1x128xf32>
    %cst_70 = arith.constant 1.000000e+00 : f32
    %207 = vector.broadcast %cst_70 : f32 to vector<1x128xf32>
    %208 = arith.addf %207, %206 : vector<1x128xf32>
    %209 = arith.divf %207, %208 : vector<1x128xf32>
    %210 = vector.extract_strided_slice %197 {offsets = [0, 256], sizes = [1, 128], strides = [1, 1]} : vector<1x512xf32> to vector<1x128xf32>
    %211 = math.tanh %210 : vector<1x128xf32>
    %212 = vector.extract_strided_slice %197 {offsets = [0, 384], sizes = [1, 128], strides = [1, 1]} : vector<1x512xf32> to vector<1x128xf32>
    %213 = arith.negf %212 : vector<1x128xf32>
    %214 = math.exp %213 : vector<1x128xf32>
    %cst_71 = arith.constant 1.000000e+00 : f32
    %215 = vector.broadcast %cst_71 : f32 to vector<1x128xf32>
    %216 = arith.addf %215, %214 : vector<1x128xf32>
    %217 = arith.divf %215, %216 : vector<1x128xf32>
    %218 = arith.mulf %209, %191 : vector<1x128xf32>
    %219 = arith.mulf %203, %211 : vector<1x128xf32>
    %220 = arith.addf %218, %219 : vector<1x128xf32>
    %221 = math.tanh %220 : vector<1x128xf32>
    %222 = arith.mulf %217, %221 : vector<1x128xf32>
    %223 = vector.extract_strided_slice %46 {offsets = [6, 0], sizes = [1, 512], strides = [1, 1]} : vector<8x512xf32> to vector<1x512xf32>
    %c0_72 = arith.constant 0 : index
    %c0_73 = arith.constant 0 : index
    %224 = vector.load %arg9[%c0_72, %c0_73] : memref<128x512xf32, #tpu.memory_space<vmem>>, vector<128x512xf32>
    %cst_74 = arith.constant dense<0.000000e+00> : vector<1x512xf32>
    %225 = tpu.matmul %222, %224, %cst_74 {dimension_numbers = #tpu.dot_dimension_numbers<[1], [0], [0], [1], [0, 0, 1, 1], [], []>} : vector<1x128xf32>, vector<128x512xf32>, vector<1x512xf32> -> vector<1x512xf32>
    %226 = arith.addf %223, %225 : vector<1x512xf32>
    %227 = vector.extract_strided_slice %226 {offsets = [0, 0], sizes = [1, 128], strides = [1, 1]} : vector<1x512xf32> to vector<1x128xf32>
    %228 = arith.negf %227 : vector<1x128xf32>
    %229 = math.exp %228 : vector<1x128xf32>
    %cst_75 = arith.constant 1.000000e+00 : f32
    %230 = vector.broadcast %cst_75 : f32 to vector<1x128xf32>
    %231 = arith.addf %230, %229 : vector<1x128xf32>
    %232 = arith.divf %230, %231 : vector<1x128xf32>
    %233 = vector.extract_strided_slice %226 {offsets = [0, 128], sizes = [1, 128], strides = [1, 1]} : vector<1x512xf32> to vector<1x128xf32>
    %234 = arith.negf %233 : vector<1x128xf32>
    %235 = math.exp %234 : vector<1x128xf32>
    %cst_76 = arith.constant 1.000000e+00 : f32
    %236 = vector.broadcast %cst_76 : f32 to vector<1x128xf32>
    %237 = arith.addf %236, %235 : vector<1x128xf32>
    %238 = arith.divf %236, %237 : vector<1x128xf32>
    %239 = vector.extract_strided_slice %226 {offsets = [0, 256], sizes = [1, 128], strides = [1, 1]} : vector<1x512xf32> to vector<1x128xf32>
    %240 = math.tanh %239 : vector<1x128xf32>
    %241 = vector.extract_strided_slice %226 {offsets = [0, 384], sizes = [1, 128], strides = [1, 1]} : vector<1x512xf32> to vector<1x128xf32>
    %242 = arith.negf %241 : vector<1x128xf32>
    %243 = math.exp %242 : vector<1x128xf32>
    %cst_77 = arith.constant 1.000000e+00 : f32
    %244 = vector.broadcast %cst_77 : f32 to vector<1x128xf32>
    %245 = arith.addf %244, %243 : vector<1x128xf32>
    %246 = arith.divf %244, %245 : vector<1x128xf32>
    %247 = arith.mulf %238, %220 : vector<1x128xf32>
    %248 = arith.mulf %232, %240 : vector<1x128xf32>
    %249 = arith.addf %247, %248 : vector<1x128xf32>
    %250 = math.tanh %249 : vector<1x128xf32>
    %251 = arith.mulf %246, %250 : vector<1x128xf32>
    %252 = vector.extract_strided_slice %46 {offsets = [7, 0], sizes = [1, 512], strides = [1, 1]} : vector<8x512xf32> to vector<1x512xf32>
    %c0_78 = arith.constant 0 : index
    %c0_79 = arith.constant 0 : index
    %253 = vector.load %arg9[%c0_78, %c0_79] : memref<128x512xf32, #tpu.memory_space<vmem>>, vector<128x512xf32>
    %cst_80 = arith.constant dense<0.000000e+00> : vector<1x512xf32>
    %254 = tpu.matmul %251, %253, %cst_80 {dimension_numbers = #tpu.dot_dimension_numbers<[1], [0], [0], [1], [0, 0, 1, 1], [], []>} : vector<1x128xf32>, vector<128x512xf32>, vector<1x512xf32> -> vector<1x512xf32>
    %255 = arith.addf %252, %254 : vector<1x512xf32>
    %256 = vector.extract_strided_slice %255 {offsets = [0, 0], sizes = [1, 128], strides = [1, 1]} : vector<1x512xf32> to vector<1x128xf32>
    %257 = arith.negf %256 : vector<1x128xf32>
    %258 = math.exp %257 : vector<1x128xf32>
    %cst_81 = arith.constant 1.000000e+00 : f32
    %259 = vector.broadcast %cst_81 : f32 to vector<1x128xf32>
    %260 = arith.addf %259, %258 : vector<1x128xf32>
    %261 = arith.divf %259, %260 : vector<1x128xf32>
    %262 = vector.extract_strided_slice %255 {offsets = [0, 128], sizes = [1, 128], strides = [1, 1]} : vector<1x512xf32> to vector<1x128xf32>
    %263 = arith.negf %262 : vector<1x128xf32>
    %264 = math.exp %263 : vector<1x128xf32>
    %cst_82 = arith.constant 1.000000e+00 : f32
    %265 = vector.broadcast %cst_82 : f32 to vector<1x128xf32>
    %266 = arith.addf %265, %264 : vector<1x128xf32>
    %267 = arith.divf %265, %266 : vector<1x128xf32>
    %268 = vector.extract_strided_slice %255 {offsets = [0, 256], sizes = [1, 128], strides = [1, 1]} : vector<1x512xf32> to vector<1x128xf32>
    %269 = math.tanh %268 : vector<1x128xf32>
    %270 = vector.extract_strided_slice %255 {offsets = [0, 384], sizes = [1, 128], strides = [1, 1]} : vector<1x512xf32> to vector<1x128xf32>
    %271 = arith.negf %270 : vector<1x128xf32>
    %272 = math.exp %271 : vector<1x128xf32>
    %cst_83 = arith.constant 1.000000e+00 : f32
    %273 = vector.broadcast %cst_83 : f32 to vector<1x128xf32>
    %274 = arith.addf %273, %272 : vector<1x128xf32>
    %275 = arith.divf %273, %274 : vector<1x128xf32>
    %276 = arith.mulf %267, %249 : vector<1x128xf32>
    %277 = arith.mulf %261, %269 : vector<1x128xf32>
    %278 = arith.addf %276, %277 : vector<1x128xf32>
    %279 = math.tanh %278 : vector<1x128xf32>
    %280 = arith.mulf %275, %279 : vector<1x128xf32>
    %c0_84 = arith.constant 0 : index
    %c0_85 = arith.constant 0 : index
    %281 = vector.load %arg11[%c0_84, %c0_85] : memref<128x1024xf32, #tpu.memory_space<vmem>>, vector<128x1024xf32>
    %cst_86 = arith.constant dense<0.000000e+00> : vector<1x1024xf32>
    %282 = tpu.matmul %280, %281, %cst_86 {dimension_numbers = #tpu.dot_dimension_numbers<[1], [0], [0], [1], [0, 0, 1, 1], [], []>} : vector<1x128xf32>, vector<128x1024xf32>, vector<1x1024xf32> -> vector<1x1024xf32>
    %c0_87 = arith.constant 0 : index
    %c0_88 = arith.constant 0 : index
    %283 = vector.load %arg12[%c0_87, %c0_88] : memref<1x1024xf32, #tpu.memory_space<vmem>>, vector<1x1024xf32>
    %284 = arith.addf %282, %283 : vector<1x1024xf32>
    %285 = vector.extract_strided_slice %284 {offsets = [0, 0], sizes = [1, 256], strides = [1, 1]} : vector<1x1024xf32> to vector<1x256xf32>
    %286 = arith.negf %285 : vector<1x256xf32>
    %287 = math.exp %286 : vector<1x256xf32>
    %cst_89 = arith.constant 1.000000e+00 : f32
    %288 = vector.broadcast %cst_89 : f32 to vector<1x256xf32>
    %289 = arith.addf %288, %287 : vector<1x256xf32>
    %290 = arith.divf %288, %289 : vector<1x256xf32>
    %291 = vector.extract_strided_slice %284 {offsets = [0, 512], sizes = [1, 256], strides = [1, 1]} : vector<1x1024xf32> to vector<1x256xf32>
    %292 = math.tanh %291 : vector<1x256xf32>
    %293 = vector.extract_strided_slice %284 {offsets = [0, 768], sizes = [1, 256], strides = [1, 1]} : vector<1x1024xf32> to vector<1x256xf32>
    %294 = arith.negf %293 : vector<1x256xf32>
    %295 = math.exp %294 : vector<1x256xf32>
    %cst_90 = arith.constant 1.000000e+00 : f32
    %296 = vector.broadcast %cst_90 : f32 to vector<1x256xf32>
    %297 = arith.addf %296, %295 : vector<1x256xf32>
    %298 = arith.divf %296, %297 : vector<1x256xf32>
    %299 = arith.mulf %290, %292 : vector<1x256xf32>
    %300 = math.tanh %299 : vector<1x256xf32>
    %301 = arith.mulf %298, %300 : vector<1x256xf32>
    %c0_91 = arith.constant 0 : index
    %c0_92 = arith.constant 0 : index
    %302 = vector.load %arg6[%c0_91, %c0_92] : memref<256x256xf32, #tpu.memory_space<vmem>>, vector<256x256xf32>
    %cst_93 = arith.constant dense<0.000000e+00> : vector<8x256xf32>
    %303 = tpu.matmul %10, %302, %cst_93 {dimension_numbers = #tpu.dot_dimension_numbers<[1], [0], [0], [1], [0, 0, 1, 1], [], []>} : vector<8x256xf32>, vector<256x256xf32>, vector<8x256xf32> -> vector<8x256xf32>
    %c0_94 = arith.constant 0 : index
    %c0_95 = arith.constant 0 : index
    %304 = vector.load %arg7[%c0_94, %c0_95] : memref<1x256xf32, #tpu.memory_space<vmem>>, vector<1x256xf32>
    %305 = vector.broadcast %304 : vector<1x256xf32> to vector<8x256xf32>
    %306 = arith.addf %303, %305 : vector<8x256xf32>
    %307 = arith.negf %306 : vector<8x256xf32>
    %308 = math.exp %307 : vector<8x256xf32>
    %cst_96 = arith.constant 1.000000e+00 : f32
    %309 = vector.broadcast %cst_96 : f32 to vector<8x256xf32>
    %310 = arith.addf %309, %308 : vector<8x256xf32>
    %311 = arith.divf %309, %310 : vector<8x256xf32>
    %312 = arith.mulf %10, %311 : vector<8x256xf32>
    %313 = vector.broadcast %301 : vector<1x256xf32> to vector<8x256xf32>
    %314 = arith.addf %312, %313 : vector<8x256xf32>
    %c0_97 = arith.constant 0 : index
    %c0_98 = arith.constant 0 : index
    %315 = vector.load %arg13[%c0_97, %c0_98] : memref<256x128xf32, #tpu.memory_space<vmem>>, vector<256x128xf32>
    %cst_99 = arith.constant dense<0.000000e+00> : vector<8x128xf32>
    %316 = tpu.matmul %314, %315, %cst_99 {dimension_numbers = #tpu.dot_dimension_numbers<[1], [0], [0], [1], [0, 0, 1, 1], [], []>} : vector<8x256xf32>, vector<256x128xf32>, vector<8x128xf32> -> vector<8x128xf32>
    %317 = vector.broadcast %1 : vector<1x128xf32> to vector<8x128xf32>
    %318 = arith.addf %316, %317 : vector<8x128xf32>
    %c0_100 = arith.constant 0 : index
    %c0_101 = arith.constant 0 : index
    %319 = vector.load %arg16[%c0_100, %c0_101] : memref<8x128xf32, #tpu.memory_space<vmem>>, vector<8x128xf32>
    tpu.vector_store %arg16[%c0_100, %c0_101], %318 {strides = array<i32>} : memref<8x128xf32, #tpu.memory_space<vmem>>, vector<8x128xf32>,
    return
  }
}

</mosaic_0001>

<llo_original>
// kernel: temporal_sae_forward.1
$region0: #{temporal_sae_forward.1}
  #allocation0 [shape = 'u32[]', space=smem, size = 0x4, offset = 0x4, fixed_abs, tag = 'smem constant byte address 0x4 - core index']
  #allocation1 [shape = 'u32[144,128]{1,0:T(1,128)}', space=vmem, size = 0x12000, scoped, tag = 'internal scratch']
  %s0 = inlined_call_operand.vmem [shape: f32[8,128], index: 0, kind: input, shape index: {}]
  %s1 = inlined_call_operand.vmem [shape: f32[1,128], index: 1, kind: input, shape index: {}]
  %s2 = inlined_call_operand.hbm [shape: f32[128,256], index: 2, kind: input, shape index: {}]
  %s3 = inlined_call_operand.hbm [shape: f32[1,256], index: 3, kind: input, shape index: {}]
  %s4 = inlined_call_operand.hbm [shape: f32[256,256], index: 4, kind: input, shape index: {}]
  %s5 = inlined_call_operand.hbm [shape: f32[1,256], index: 5, kind: input, shape index: {}]
  %s6 = inlined_call_operand.hbm [shape: f32[256,256], index: 6, kind: input, shape index: {}]
  %s7 = inlined_call_operand.hbm [shape: f32[1,256], index: 7, kind: input, shape index: {}]
  %s8 = inlined_call_operand.hbm [shape: f32[256,512], index: 8, kind: input, shape index: {}]
  %s9 = inlined_call_operand.hbm [shape: f32[128,512], index: 9, kind: input, shape index: {}]
  %s10 = inlined_call_operand.vmem [shape: f32[1,512], index: 10, kind: input, shape index: {}]
  %s11 = inlined_call_operand.hbm [shape: f32[128,1024], index: 11, kind: input, shape index: {}]
  %s12 = inlined_call_operand.vmem [shape: f32[1,1024], index: 12, kind: input, shape index: {}]
  %s13 = inlined_call_operand.hbm [shape: f32[256,128], index: 13, kind: input, shape index: {}]
  %s14 = inlined_call_operand.vmem [shape: f32[8,256], index: 14, kind: input, shape index: {}]
  %s15 = inlined_call_operand.vmem [shape: f32[1,256], index: 15, kind: input, shape index: {}]
  %s16 = inlined_call_operand.hbm [shape: f32[8,128], index: 16, kind: output, shape index: {0}]
  %s17 = inlined_call_operand.hbm [shape: f32[8,256], index: 17, kind: output, shape index: {1}]
  %s18 = inlined_call_operand.hbm [shape: f32[1,256], index: 18, kind: output, shape index: {2}]
  %19 = xla_tuple %s16, %s17, %s18
  %s20 = sld [smem:[#allocation0]]
  $region130: #{temporal_sae_forward.1} parent=0
    _
  %s22 = ssub.s32 1, %s20
  %s23 = scalar_select 0, %s22, %s20
  $region1: #{temporal_sae_forward.1} parent=0
    #allocation2 [shape = 'u8[131072]{0}', space=vmem, size = 0x20000, scoped, tag = 'input window, operand 2, single buffered']
    #allocation3 [shape = 's32[1]{0}', space=sflag, size = 0x4, scoped, tag = 'scoped memory for temporal_sae_forward.1']
    #allocation4 [shape = 's32[1]{0}', space=sflag, size = 0x4, scoped, tag = 'scoped memory for temporal_sae_forward.1']
    #allocation5 [shape = 'u8[1024]{0}', space=vmem, size = 0x400, scoped, tag = 'input window, operand 3, single buffered']
    #allocation6 [shape = 's32[1]{0}', space=sflag, size = 0x4, scoped, tag = 'scoped memory for temporal_sae_forward.1']
    #allocation7 [shape = 'u8[262144]{0}', space=vmem, size = 0x40000, scoped, tag = 'input window, operand 4, single buffered']
    #allocation8 [shape = 'u8[1024]{0}', space=vmem, size = 0x400, scoped, tag = 'input window, operand 5, single buffered']
    #allocation9 [shape = 's32[1]{0}', space=sflag, size = 0x4, scoped, tag = 'scoped memory for temporal_sae_forward.1']
    #allocation10 [shape = 'u8[262144]{0}', space=vmem, size = 0x40000, scoped, tag = 'input window, operand 6, single buffered']
    #allocation11 [shape = 'u8[1024]{0}', space=vmem, size = 0x400, scoped, tag = 'input window, operand 7, single buffered']
    #allocation12 [shape = 's32[1]{0}', space=sflag, size = 0x4, scoped, tag = 'scoped memory for temporal_sae_forward.1']
    #allocation13 [shape = 'u8[524288]{0}', space=vmem, size = 0x80000, scoped, tag = 'input window, operand 8, single buffered']
    #allocation14 [shape = 'u8[262144]{0}', space=vmem, size = 0x40000, scoped, tag = 'input window, operand 9, single buffered']
    #allocation15 [shape = 's32[1]{0}', space=sflag, size = 0x4, scoped, tag = 'scoped memory for temporal_sae_forward.1']
    #allocation16 [shape = 'u8[524288]{0}', space=vmem, size = 0x80000, scoped, tag = 'input window, operand 11, single buffered']
    #allocation17 [shape = 'u8[131072]{0}', space=vmem, size = 0x20000, scoped, tag = 'input window, operand 13, single buffered']
    #allocation18 [shape = 's32[1]{0}', space=sflag, size = 0x4, scoped, tag = 'scoped memory for temporal_sae_forward.1']
    #allocation19 [shape = 'u8[4096]{0}', space=vmem, size = 0x1000, scoped, tag = 'output window, operand 0, single buffered']
    #allocation20 [shape = 'u8[8192]{0}', space=vmem, size = 0x2000, scoped, tag = 'output window, operand 1, single buffered']
    #allocation21 [shape = 's32[1]{0}', space=sflag, size = 0x4, scoped, tag = 'scoped memory for temporal_sae_forward.1']
    #allocation22 [shape = 'u8[1024]{0}', space=vmem, size = 0x400, scoped, tag = 'output window, operand 2, single buffered']
    %24 = vsyncpa [#allocation3], 0
    %25 = vsyncpa [#allocation6], 0
    %26 = vsyncpa [#allocation9], 0
    %27 = vsyncpa [#allocation12], 0
    %28 = vsyncpa [#allocation15], 0
    %29 = vsyncpa [#allocation18], 0
    %30 = vsyncpa [#allocation4], 0
    %31 = vsyncpa [#allocation21], 0
    // Predicated region
    $region2: #{temporal_sae_forward.1} parent=1 // pred_check
      _
    $region3: #{temporal_sae_forward.1} parent=1 // pred_check_branch
      %33 = sbr.rel (0) target = $region5
    $region4: #{temporal_sae_forward.1} parent=1 // pred_region
      _
    $region5: #{temporal_sae_forward.1} parent=1 // pred_fallthru
      _
    // Predicated region
    $region6: #{temporal_sae_forward.1} parent=1 // pred_check
      _
    $region7: #{temporal_sae_forward.1} parent=1 // pred_check_branch
      %35 = sbr.rel (0) target = $region9
    $region8: #{temporal_sae_forward.1} parent=1 // pred_region
      _
    $region9: #{temporal_sae_forward.1} parent=1 // pred_fallthru
      _
    // Predicated region
    $region10: #{temporal_sae_forward.1} parent=1 // pred_check
      _
    $region11: #{temporal_sae_forward.1} parent=1 // pred_check_branch
      %37 = sbr.rel (0) target = $region13
    $region12: #{temporal_sae_forward.1} parent=1 // pred_region
      %s39 = ssub.s32 4096, 4096
      %40 = vsyncadd [#allocation3], %s39
      %s41 = sshll.u32 [#allocation2], 4
      %s42 = int_to_ptr.vmem [resolvable:$true] %s41
      %47 = dma.hbm_to_vmem [thread:$0]  %s2, 4096, %s42, [#allocation3], 256, 256, 16
    $region13: #{temporal_sae_forward.1} parent=1 // pred_fallthru
      _
    // Predicated region
    $region14: #{temporal_sae_forward.1} parent=1 // pred_check
      _
    $region15: #{temporal_sae_forward.1} parent=1 // pred_check_branch
      %49 = sbr.rel (0) target = $region17
    $region16: #{temporal_sae_forward.1} parent=1 // pred_region
      %s51 = ssub.s32 32, 32
      %52 = vsyncadd [#allocation6], %s51
      %s54 = sshll.u32 [#allocation5], 4
      %s55 = int_to_ptr.vmem [resolvable:$true] %s54
      %57 = dma.hbm_to_vmem [thread:$0]  %s3, 32, %s55, [#allocation6]
    $region17: #{temporal_sae_forward.1} parent=1 // pred_fallthru
      _
    // Predicated region
    $region18: #{temporal_sae_forward.1} parent=1 // pred_check
      _
    $region19: #{temporal_sae_forward.1} parent=1 // pred_check_branch
      %59 = sbr.rel (0) target = $region21
    $region20: #{temporal_sae_forward.1} parent=1 // pred_region
      %s61 = ssub.s32 8192, 8192
      %62 = vsyncadd [#allocation6], %s61
      %s63 = sshll.u32 [#allocation7], 4
      %s64 = int_to_ptr.vmem [resolvable:$true] %s63
      %69 = dma.hbm_to_vmem [thread:$0]  %s4, 8192, %s64, [#allocation6], 256, 256, 16
    $region21: #{temporal_sae_forward.1} parent=1 // pred_fallthru
      _
    // Predicated region
    $region22: #{temporal_sae_forward.1} parent=1 // pred_check
      _
    $region23: #{temporal_sae_forward.1} parent=1 // pred_check_branch
      %71 = sbr.rel (0) target = $region25
    $region24: #{temporal_sae_forward.1} parent=1 // pred_region
      %s73 = ssub.s32 32, 32
      %74 = vsyncadd [#allocation9], %s73
      %s76 = sshll.u32 [#allocation8], 4
      %s77 = int_to_ptr.vmem [resolvable:$true] %s76
      %79 = dma.hbm_to_vmem [thread:$0]  %s5, 32, %s77, [#allocation9]
    $region25: #{temporal_sae_forward.1} parent=1 // pred_fallthru
      _
    // Predicated region
    $region26: #{temporal_sae_forward.1} parent=1 // pred_check
      _
    $region27: #{temporal_sae_forward.1} parent=1 // pred_check_branch
      %81 = sbr.rel (0) target = $region29
    $region28: #{temporal_sae_forward.1} parent=1 // pred_region
      %s83 = ssub.s32 8192, 8192
      %84 = vsyncadd [#allocation9], %s83
      %s85 = sshll.u32 [#allocation10], 4
      %s86 = int_to_ptr.vmem [resolvable:$true] %s85
      %91 = dma.hbm_to_vmem [thread:$0]  %s6, 8192, %s86, [#allocation9], 256, 256, 16
    $region29: #{temporal_sae_forward.1} parent=1 // pred_fallthru
      _
    // Predicated region
    $region30: #{temporal_sae_forward.1} parent=1 // pred_check
      _
    $region31: #{temporal_sae_forward.1} parent=1 // pred_check_branch
      %93 = sbr.rel (0) target = $region33
    $region32: #{temporal_sae_forward.1} parent=1 // pred_region
      %s95 = ssub.s32 32, 32
      %96 = vsyncadd [#allocation12], %s95
      %s98 = sshll.u32 [#allocation11], 4
      %s99 = int_to_ptr.vmem [resolvable:$true] %s98
      %101 = dma.hbm_to_vmem [thread:$0]  %s7, 32, %s99, [#allocation12]
    $region33: #{temporal_sae_forward.1} parent=1 // pred_fallthru
      _
    // Predicated region
    $region34: #{temporal_sae_forward.1} parent=1 // pred_check
      _
    $region35: #{temporal_sae_forward.1} parent=1 // pred_check_branch
      %103 = sbr.rel (0) target = $region37
    $region36: #{temporal_sae_forward.1} parent=1 // pred_region
      %s105 = ssub.s32 16384, 16384
      %106 = vsyncadd [#allocation12], %s105
      %s107 = sshll.u32 [#allocation13], 4
      %s108 = int_to_ptr.vmem [resolvable:$true] %s107
      %113 = dma.hbm_to_vmem [thread:$0]  %s8, 16384, %s108, [#allocation12], 512, 512, 32
    $region37: #{temporal_sae_forward.1} parent=1 // pred_fallthru
      _
    // Predicated region
    $region38: #{temporal_sae_forward.1} parent=1 // pred_check
      _
    $region39: #{temporal_sae_forward.1} parent=1 // pred_check_branch
      %115 = sbr.rel (0) target = $region41
    $region40: #{temporal_sae_forward.1} parent=1 // pred_region
      %s117 = ssub.s32 8192, 8192
      %118 = vsyncadd [#allocation15], %s117
      %s119 = sshll.u32 [#allocation14], 4
      %s120 = int_to_ptr.vmem [resolvable:$true] %s119
      %125 = dma.hbm_to_vmem [thread:$0]  %s9, 8192, %s120, [#allocation15], 512, 512, 32
    $region41: #{temporal_sae_forward.1} parent=1 // pred_fallthru
      _
    // Predicated region
    $region42: #{temporal_sae_forward.1} parent=1 // pred_check
      _
    $region43: #{temporal_sae_forward.1} parent=1 // pred_check_branch
      %127 = sbr.rel (0) target = $region45
    $region44: #{temporal_sae_forward.1} parent=1 // pred_region
      _
    $region45: #{temporal_sae_forward.1} parent=1 // pred_fallthru
      _
    // Predicated region
    $region46: #{temporal_sae_forward.1} parent=1 // pred_check
      _
    $region47: #{temporal_sae_forward.1} parent=1 // pred_check_branch
      %129 = sbr.rel (0) target = $region49
    $region48: #{temporal_sae_forward.1} parent=1 // pred_region
      %s131 = ssub.s32 16384, 16384
      %132 = vsyncadd [#allocation15], %s131
      %s133 = sshll.u32 [#allocation16], 4
      %s134 = int_to_ptr.vmem [resolvable:$true] %s133
      %139 = dma.hbm_to_vmem [thread:$0]  %s11, 16384, %s134, [#allocation15], 1024, 1024, 64
    $region49: #{temporal_sae_forward.1} parent=1 // pred_fallthru
      _
    // Predicated region
    $region50: #{temporal_sae_forward.1} parent=1 // pred_check
      _
    $region51: #{temporal_sae_forward.1} parent=1 // pred_check_branch
      %141 = sbr.rel (0) target = $region53
    $region52: #{temporal_sae_forward.1} parent=1 // pred_region
      _
    $region53: #{temporal_sae_forward.1} parent=1 // pred_fallthru
      _
    // Predicated region
    $region54: #{temporal_sae_forward.1} parent=1 // pred_check
      _
    $region55: #{temporal_sae_forward.1} parent=1 // pred_check_branch
      %143 = sbr.rel (0) target = $region57
    $region56: #{temporal_sae_forward.1} parent=1 // pred_region
      %s145 = ssub.s32 4096, 4096
      %146 = vsyncadd [#allocation18], %s145
      %s147 = sshll.u32 [#allocation17], 4
      %s148 = int_to_ptr.vmem [resolvable:$true] %s147
      %153 = dma.hbm_to_vmem [thread:$0]  %s13, 4096, %s148, [#allocation18], 128, 128, 8
    $region57: #{temporal_sae_forward.1} parent=1 // pred_fallthru
      _
    // Predicated region
    $region58: #{temporal_sae_forward.1} parent=1 // pred_check
      _
    $region59: #{temporal_sae_forward.1} parent=1 // pred_check_branch
      %155 = sbr.rel (0) target = $region61
    $region60: #{temporal_sae_forward.1} parent=1 // pred_region
      _
    $region61: #{temporal_sae_forward.1} parent=1 // pred_fallthru
      _
    // Predicated region
    $region62: #{temporal_sae_forward.1} parent=1 // pred_check
      _
    $region63: #{temporal_sae_forward.1} parent=1 // pred_check_branch
      %157 = sbr.rel (0) target = $region65
    $region64: #{temporal_sae_forward.1} parent=1 // pred_region
      _
    $region65: #{temporal_sae_forward.1} parent=1 // pred_fallthru
      _
    // Predicated region
    $region66: #{temporal_sae_forward.1} parent=1 // pred_check
      _
    $region67: #{temporal_sae_forward.1} parent=1 // pred_check_branch
      %159 = sbr.rel (0) target = $region69
    $region68: #{temporal_sae_forward.1} parent=1 // pred_region
      %160 = dma.done [#allocation3], 4096
    $region69: #{temporal_sae_forward.1} parent=1 // pred_fallthru
      _
    // Predicated region
    $region70: #{temporal_sae_forward.1} parent=1 // pred_check
      _
    $region71: #{temporal_sae_forward.1} parent=1 // pred_check_branch
      %162 = sbr.rel (0) target = $region73
    $region72: #{temporal_sae_forward.1} parent=1 // pred_region
      %163 = dma.done [#allocation6], 32
    $region73: #{temporal_sae_forward.1} parent=1 // pred_fallthru
      _
    // Predicated region
    $region74: #{temporal_sae_forward.1} parent=1 // pred_check
      _
    $region75: #{temporal_sae_forward.1} parent=1 // pred_check_branch
      %165 = sbr.rel (0) target = $region77
    $region76: #{temporal_sae_forward.1} parent=1 // pred_region
      %166 = dma.done [#allocation6], 8192
    $region77: #{temporal_sae_forward.1} parent=1 // pred_fallthru
      _
    // Predicated region
    $region78: #{temporal_sae_forward.1} parent=1 // pred_check
      _
    $region79: #{temporal_sae_forward.1} parent=1 // pred_check_branch
      %168 = sbr.rel (0) target = $region81
    $region80: #{temporal_sae_forward.1} parent=1 // pred_region
      %169 = dma.done [#allocation9], 32
    $region81: #{temporal_sae_forward.1} parent=1 // pred_fallthru
      _
    // Predicated region
    $region82: #{temporal_sae_forward.1} parent=1 // pred_check
      _
    $region83: #{temporal_sae_forward.1} parent=1 // pred_check_branch
      %171 = sbr.rel (0) target = $region85
    $region84: #{temporal_sae_forward.1} parent=1 // pred_region
      %172 = dma.done [#allocation9], 8192
    $region85: #{temporal_sae_forward.1} parent=1 // pred_fallthru
      _
    // Predicated region
    $region86: #{temporal_sae_forward.1} parent=1 // pred_check
      _
    $region87: #{temporal_sae_forward.1} parent=1 // pred_check_branch
      %174 = sbr.rel (0) target = $region89
    $region88: #{temporal_sae_forward.1} parent=1 // pred_region
      %175 = dma.done [#allocation12], 32
    $region89: #{temporal_sae_forward.1} parent=1 // pred_fallthru
      _
    // Predicated region
    $region90: #{temporal_sae_forward.1} parent=1 // pred_check
      _
    $region91: #{temporal_sae_forward.1} parent=1 // pred_check_branch
      %177 = sbr.rel (0) target = $region93
    $region92: #{temporal_sae_forward.1} parent=1 // pred_region
      %178 = dma.done [#allocation12], 16384
    $region93: #{temporal_sae_forward.1} parent=1 // pred_fallthru
      _
    // Predicated region
    $region94: #{temporal_sae_forward.1} parent=1 // pred_check
      _
    $region95: #{temporal_sae_forward.1} parent=1 // pred_check_branch
      %180 = sbr.rel (0) target = $region97
    $region96: #{temporal_sae_forward.1} parent=1 // pred_region
      %181 = dma.done [#allocation15], 8192
    $region97: #{temporal_sae_forward.1} parent=1 // pred_fallthru
      _
    // Predicated region
    $region98: #{temporal_sae_forward.1} parent=1 // pred_check
      _
    $region99: #{temporal_sae_forward.1} parent=1 // pred_check_branch
      %183 = sbr.rel (0) target = $region101
    $region100: #{temporal_sae_forward.1} parent=1 // pred_region
      %184 = dma.done [#allocation15], 16384
    $region101: #{temporal_sae_forward.1} parent=1 // pred_fallthru
      _
    // Predicated region
    $region102: #{temporal_sae_forward.1} parent=1 // pred_check
      _
    $region103: #{temporal_sae_forward.1} parent=1 // pred_check_branch
      %186 = sbr.rel (0) target = $region105
    $region104: #{temporal_sae_forward.1} parent=1 // pred_region
      %187 = dma.done [#allocation18], 4096
    $region105: #{temporal_sae_forward.1} parent=1 // pred_fallthru
      _
    %v188 = vld [vmem:[%s0] sm:$0xff]
    %v189 = vld [vmem:[%s1] sm:$0x1]
    %v191 = vlaneseq
    %v192 = vshrl.u32 %v191, 7
    %v193 = vsub.s32 0, %v192
    %v194 = vrot.slane %v189, %v193
    %v196 = vsub.f32 %v188, %v194
    %v197 = vld [vmem:[#allocation2] sm:$0xff]
    %v198 = vld [vmem:[#allocation2 + $0x8] sm:$0xff]
    %v199 = vld [vmem:[#allocation2 + $0x10] sm:$0xff]
    %v200 = vld [vmem:[#allocation2 + $0x18] sm:$0xff]
    %v201 = vld [vmem:[#allocation2 + $0x20] sm:$0xff]
    %v202 = vld [vmem:[#allocation2 + $0x28] sm:$0xff]
    %v203 = vld [vmem:[#allocation2 + $0x30] sm:$0xff]
    %v204 = vld [vmem:[#allocation2 + $0x38] sm:$0xff]
    %v205 = vld [vmem:[#allocation2 + $0x40] sm:$0xff]
    %v206 = vld [vmem:[#allocation2 + $0x48] sm:$0xff]
    %v207 = vld [vmem:[#allocation2 + $0x50] sm:$0xff]
    %v208 = vld [vmem:[#allocation2 + $0x58] sm:$0xff]
    %v209 = vld [vmem:[#allocation2 + $0x60] sm:$0xff]
    %v210 = vld [vmem:[#allocation2 + $0x68] sm:$0xff]
    %v211 = vld [vmem:[#allocation2 + $0x70] sm:$0xff]
    %v212 = vld [vmem:[#allocation2 + $0x78] sm:$0xff]
    %v213 = vld [vmem:[#allocation2 + $0x80] sm:$0xff]
    %v214 = vld [vmem:[#allocation2 + $0x88] sm:$0xff]
    %v215 = vld [vmem:[#allocation2 + $0x90] sm:$0xff]
    %v216 = vld [vmem:[#allocation2 + $0x98] sm:$0xff]
    %v217 = vld [vmem:[#allocation2 + $0xa0] sm:$0xff]
    %v218 = vld [vmem:[#allocation2 + $0xa8] sm:$0xff]
    %v219 = vld [vmem:[#allocation2 + $0xb0] sm:$0xff]
    %v220 = vld [vmem:[#allocation2 + $0xb8] sm:$0xff]
    %v221 = vld [vmem:[#allocation2 + $0xc0] sm:$0xff]
    %v222 = vld [vmem:[#allocation2 + $0xc8] sm:$0xff]
    %v223 = vld [vmem:[#allocation2 + $0xd0] sm:$0xff]
    %v224 = vld [vmem:[#allocation2 + $0xd8] sm:$0xff]
    %v225 = vld [vmem:[#allocation2 + $0xe0] sm:$0xff]
    %v226 = vld [vmem:[#allocation2 + $0xe8] sm:$0xff]
    %v227 = vld [vmem:[#allocation2 + $0xf0] sm:$0xff]
    %v228 = vld [vmem:[#allocation2 + $0xf8] sm:$0xff]
    %v229 = vld [vmem:[#allocation5] sm:$0x3]
    %v231 = vlaneseq
    %v232 = vshrl.u32 %v231, 7
    %v233 = vsub.s32 0, %v232
    %v234 = vrot.slane %v229, %v233
    %v235 = vlaneseq
    %v236 = vshrl.u32 %v235, 7
    %v237 = vsub.s32 1, %v236
    %v238 = vrot.slane %v229, %v237
    %241 = vmatprep.subr.mxu0 %v198
    %242 = vmatpush1.msra.mxu0 %v197
    %243 = vmatprep.subr.mxu0 %v200
    %244 = vmatpush1.msra.mxu0 %v199
    %245 = vmatprep.subr.mxu0 %v202
    %246 = vmatpush1.msra.mxu0 %v201
    %247 = vmatprep.subr.mxu0 %v204
    %248 = vmatpush1.msra.mxu0 %v203
    %249 = vmatprep.subr.mxu0 %v206
    %250 = vmatpush1.msra.mxu0 %v205
    %251 = vmatprep.subr.mxu0 %v208
    %252 = vmatpush1.msra.mxu0 %v207
    %253 = vmatprep.subr.mxu0 %v210
    %254 = vmatpush1.msra.mxu0 %v209
    %255 = vmatprep.subr.mxu0 %v212
    %256 = vmatpush1.msra.mxu0 %v211
    %257 = vmatprep.subr.mxu0 %v214
    %258 = vmatpush1.msra.mxu0 %v213
    %259 = vmatprep.subr.mxu0 %v216
    %260 = vmatpush1.msra.mxu0 %v215
    %261 = vmatprep.subr.mxu0 %v218
    %262 = vmatpush1.msra.mxu0 %v217
    %263 = vmatprep.subr.mxu0 %v220
    %264 = vmatpush1.msra.mxu0 %v219
    %265 = vmatprep.subr.mxu0 %v222
    %266 = vmatpush1.msra.mxu0 %v221
    %267 = vmatprep.subr.mxu0 %v224
    %268 = vmatpush1.msra.mxu0 %v223
    %269 = vmatprep.subr.mxu0 %v226
    %270 = vmatpush1.msra.mxu0 %v225
    %271 = vmatprep.subr.mxu0 %v228
    %272 = vmatpush1.msra.mxu0 %v227
    %273 = vmatprep.subr.mxu0 0.0
    %274 = vmatpush1.msra.mxu0 0.0
    %275 = vmatprep.subr.mxu0 0.0
    %276 = vmatpush1.msra.mxu0 0.0
    %277 = vmatprep.subr.mxu0 0.0
    %278 = vmatpush1.msra.mxu0 0.0
    %279 = vmatprep.subr.mxu0 0.0
    %280 = vmatpush1.msra.mxu0 0.0
    %281 = vmatprep.subr.mxu0 0.0
    %282 = vmatpush1.msra.mxu0 0.0
    %283 = vmatprep.subr.mxu0 0.0
    %284 = vmatpush1.msra.mxu0 0.0
    %285 = vmatprep.subr.mxu0 0.0
    %286 = vmatpush1.msra.mxu0 0.0
    %287 = vmatprep.subr.mxu0 0.0
    %288 = vmatpush1.msra.mxu0 0.0
    %289 = vmatprep.subr.mxu0 0.0
    %290 = vmatpush1.msra.mxu0 0.0
    %291 = vmatprep.subr.mxu0 0.0
    %292 = vmatpush1.msra.mxu0 0.0
    %293 = vmatprep.subr.mxu0 0.0
    %294 = vmatpush1.msra.mxu0 0.0
    %295 = vmatprep.subr.mxu0 0.0
    %296 = vmatpush1.msra.mxu0 0.0
    %297 = vmatprep.subr.mxu0 0.0
    %298 = vmatpush1.msra.mxu0 0.0
    %299 = vmatprep.subr.mxu0 0.0
    %300 = vmatpush1.msra.mxu0 0.0
    %301 = vmatprep.subr.mxu0 0.0
    %302 = vmatpush1.msra.mxu0 0.0
    %303 = vmatprep.subr.mxu0 0.0
    %304 = vmatpush1.msra.mxu0 0.0
    %305 = vmatprep.mubr.f32.mxu0 0.0
    %306 = vmatmul.mubr.f32.gmra.mrb[0].mxu0 %v196
    %v307 = vpop.f32.mrb[0].mxu0
    %v308 = vadd.f32 %v234, %v307
    %v309 = vpop.f32.mrb[0].mxu0
    %v310 = vadd.f32 %v238, %v309
    %311 = vdwg.mxu0
    %v312 = vmax.f32 %v308, 0.0
    %v313 = vmax.f32 %v310, 0.0
    %v314 = vld [vmem:[#allocation7] sm:$0xff]
    %v315 = vld [vmem:[#allocation7 + $0x8] sm:$0xff]
    %v316 = vld [vmem:[#allocation7 + $0x10] sm:$0xff]
    %v317 = vld [vmem:[#allocation7 + $0x18] sm:$0xff]
    %v318 = vld [vmem:[#allocation7 + $0x20] sm:$0xff]
    %v319 = vld [vmem:[#allocation7 + $0x28] sm:$0xff]
    %v320 = vld [vmem:[#allocation7 + $0x30] sm:$0xff]
    %v321 = vld [vmem:[#allocation7 + $0x38] sm:$0xff]
    %v322 = vld [vmem:[#allocation7 + $0x40] sm:$0xff]
    %v323 = vld [vmem:[#allocation7 + $0x48] sm:$0xff]
    %v324 = vld [vmem:[#allocation7 + $0x50] sm:$0xff]
    %v325 = vld [vmem:[#allocation7 + $0x58] sm:$0xff]
    %v326 = vld [vmem:[#allocation7 + $0x60] sm:$0xff]
    %v327 = vld [vmem:[#allocation7 + $0x68] sm:$0xff]
    %v328 = vld [vmem:[#allocation7 + $0x70] sm:$0xff]
    %v329 = vld [vmem:[#allocation7 + $0x78] sm:$0xff]
    %v330 = vld [vmem:[#allocation7 + $0x80] sm:$0xff]
    %v331 = vld [vmem:[#allocation7 + $0x88] sm:$0xff]
    %v332 = vld [vmem:[#allocation7 + $0x90] sm:$0xff]
    %v333 = vld [vmem:[#allocation7 + $0x98] sm:$0xff]
    %v334 = vld [vmem:[#allocation7 + $0xa0] sm:$0xff]
    %v335 = vld [vmem:[#allocation7 + $0xa8] sm:$0xff]
    %v336 = vld [vmem:[#allocation7 + $0xb0] sm:$0xff]
    %v337 = vld [vmem:[#allocation7 + $0xb8] sm:$0xff]
    %v338 = vld [vmem:[#allocation7 + $0xc0] sm:$0xff]
    %v339 = vld [vmem:[#allocation7 + $0xc8] sm:$0xff]
    %v340 = vld [vmem:[#allocation7 + $0xd0] sm:$0xff]
    %v341 = vld [vmem:[#allocation7 + $0xd8] sm:$0xff]
    %v342 = vld [vmem:[#allocation7 + $0xe0] sm:$0xff]
    %v343 = vld [vmem:[#allocation7 + $0xe8] sm:$0xff]
    %v344 = vld [vmem:[#allocation7 + $0xf0] sm:$0xff]
    %v345 = vld [vmem:[#allocation7 + $0xf8] sm:$0xff]
    %v346 = vld [vmem:[#allocation7 + $0x100] sm:$0xff]
    %v347 = vld [vmem:[#allocation7 + $0x108] sm:$0xff]
    %v348 = vld [vmem:[#allocation7 + $0x110] sm:$0xff]
    %v349 = vld [vmem:[#allocation7 + $0x118] sm:$0xff]
    %v350 = vld [vmem:[#allocation7 + $0x120] sm:$0xff]
    %v351 = vld [vmem:[#allocation7 + $0x128] sm:$0xff]
    %v352 = vld [vmem:[#allocation7 + $0x130] sm:$0xff]
    %v353 = vld [vmem:[#allocation7 + $0x138] sm:$0xff]
    %v354 = vld [vmem:[#allocation7 + $0x140] sm:$0xff]
    %v355 = vld [vmem:[#allocation7 + $0x148] sm:$0xff]
    %v356 = vld [vmem:[#allocation7 + $0x150] sm:$0xff]
    %v357 = vld [vmem:[#allocation7 + $0x158] sm:$0xff]
    %v358 = vld [vmem:[#allocation7 + $0x160] sm:$0xff]
    %v359 = vld [vmem:[#allocation7 + $0x168] sm:$0xff]
    %v360 = vld [vmem:[#allocation7 + $0x170] sm:$0xff]
    %v361 = vld [vmem:[#allocation7 + $0x178] sm:$0xff]
    %v362 = vld [vmem:[#allocation7 + $0x180] sm:$0xff]
    %v363 = vld [vmem:[#allocation7 + $0x188] sm:$0xff]
    %v364 = vld [vmem:[#allocation7 + $0x190] sm:$0xff]
    %v365 = vld [vmem:[#allocation7 + $0x198] sm:$0xff]
    %v366 = vld [vmem:[#allocation7 + $0x1a0] sm:$0xff]
    %v367 = vld [vmem:[#allocation7 + $0x1a8] sm:$0xff]
    %v368 = vld [vmem:[#allocation7 + $0x1b0] sm:$0xff]
    %v369 = vld [vmem:[#allocation7 + $0x1b8] sm:$0xff]
    %v370 = vld [vmem:[#allocation7 + $0x1c0] sm:$0xff]
    %v371 = vld [vmem:[#allocation7 + $0x1c8] sm:$0xff]
    %v372 = vld [vmem:[#allocation7 + $0x1d0] sm:$0xff]
    %v373 = vld [vmem:[#allocation7 + $0x1d8] sm:$0xff]
    %v374 = vld [vmem:[#allocation7 + $0x1e0] sm:$0xff]
    %v375 = vld [vmem:[#allocation7 + $0x1e8] sm:$0xff]
    %v376 = vld [vmem:[#allocation7 + $0x1f0] sm:$0xff]
    %v377 = vld [vmem:[#allocation7 + $0x1f8] sm:$0xff]
    %v378 = vld [vmem:[#allocation8] sm:$0x3]
    %v380 = vlaneseq
    %v381 = vshrl.u32 %v380, 7
    %v382 = vsub.s32 0, %v381
    %v383 = vrot.slane %v378, %v382
    %v384 = vlaneseq
    %v385 = vshrl.u32 %v384, 7
    %v386 = vsub.s32 1, %v385
    %v387 = vrot.slane %v378, %v386
    %390 = vmatprep.subr.mxu0 %v315
    %391 = vmatpush1.msra.mxu0 %v314
    %392 = vmatprep.subr.mxu0 %v317
    %393 = vmatpush1.msra.mxu0 %v316
    %394 = vmatprep.subr.mxu0 %v319
    %395 = vmatpush1.msra.mxu0 %v318
    %396 = vmatprep.subr.mxu0 %v321
    %397 = vmatpush1.msra.mxu0 %v320
    %398 = vmatprep.subr.mxu0 %v323
    %399 = vmatpush1.msra.mxu0 %v322
    %400 = vmatprep.subr.mxu0 %v325
    %401 = vmatpush1.msra.mxu0 %v324
    %402 = vmatprep.subr.mxu0 %v327
    %403 = vmatpush1.msra.mxu0 %v326
    %404 = vmatprep.subr.mxu0 %v329
    %405 = vmatpush1.msra.mxu0 %v328
    %406 = vmatprep.subr.mxu0 %v331
    %407 = vmatpush1.msra.mxu0 %v330
    %408 = vmatprep.subr.mxu0 %v333
    %409 = vmatpush1.msra.mxu0 %v332
    %410 = vmatprep.subr.mxu0 %v335
    %411 = vmatpush1.msra.mxu0 %v334
    %412 = vmatprep.subr.mxu0 %v337
    %413 = vmatpush1.msra.mxu0 %v336
    %414 = vmatprep.subr.mxu0 %v339
    %415 = vmatpush1.msra.mxu0 %v338
    %416 = vmatprep.subr.mxu0 %v341
    %417 = vmatpush1.msra.mxu0 %v340
    %418 = vmatprep.subr.mxu0 %v343
    %419 = vmatpush1.msra.mxu0 %v342
    %420 = vmatprep.subr.mxu0 %v345
    %421 = vmatpush1.msra.mxu0 %v344
    %422 = vmatprep.subr.mxu0 %v347
    %423 = vmatpush1.msra.mxu0 %v346
    %424 = vmatprep.subr.mxu0 %v349
    %425 = vmatpush1.msra.mxu0 %v348
    %426 = vmatprep.subr.mxu0 %v351
    %427 = vmatpush1.msra.mxu0 %v350
    %428 = vmatprep.subr.mxu0 %v353
    %429 = vmatpush1.msra.mxu0 %v352
    %430 = vmatprep.subr.mxu0 %v355
    %431 = vmatpush1.msra.mxu0 %v354
    %432 = vmatprep.subr.mxu0 %v357
    %433 = vmatpush1.msra.mxu0 %v356
    %434 = vmatprep.subr.mxu0 %v359
    %435 = vmatpush1.msra.mxu0 %v358
    %436 = vmatprep.subr.mxu0 %v361
    %437 = vmatpush1.msra.mxu0 %v360
    %438 = vmatprep.subr.mxu0 %v363
    %439 = vmatpush1.msra.mxu0 %v362
    %440 = vmatprep.subr.mxu0 %v365
    %441 = vmatpush1.msra.mxu0 %v364
    %442 = vmatprep.subr.mxu0 %v367
    %443 = vmatpush1.msra.mxu0 %v366
    %444 = vmatprep.subr.mxu0 %v369
    %445 = vmatpush1.msra.mxu0 %v368
    %446 = vmatprep.subr.mxu0 %v371
    %447 = vmatpush1.msra.mxu0 %v370
    %448 = vmatprep.subr.mxu0 %v373
    %449 = vmatpush1.msra.mxu0 %v372
    %450 = vmatprep.subr.mxu0 %v375
    %451 = vmatpush1.msra.mxu0 %v374
    %452 = vmatprep.subr.mxu0 %v377
    %453 = vmatpush1.msra.mxu0 %v376
    %454 = vmatprep.mubr.f32.mxu0 %v313
    %455 = vmatmul.mubr.f32.gmra.mrb[0].mxu0 %v312
    %v456 = vpop.f32.mrb[0].mxu0
    %v457 = vadd.f32 %v383, %v456
    %v458 = vpop.f32.mrb[0].mxu0
    %v459 = vadd.f32 %v387, %v458
    %460 = vdwg.mxu0
    %v461 = vxor.u32 %v457, 2147483648
    %v462 = vxor.u32 %v459, 2147483648
    %v463 = vmul.f32 %v461, 1.442695
    %v464 = vpow.pop %v463
    %v465 = vmul.f32 %v462, 1.442695
    %v466 = vpow.pop %v465
    %v467 = vadd.f32 %v464, 1.0
    %v468 = vadd.f32 %v466, 1.0
    %v469 = vrcp.pop %v467
    %v470 = vmul.f32 1.0, %v469
    %v471 = vrcp.pop %v468
    %v472 = vmul.f32 1.0, %v471
    %v473 = vmul.f32 %v312, %v470
    %v474 = vmul.f32 %v313, %v472
    %v475 = vrot.slane %v473, 4
    %v476 = vadd.f32 %v473, %v475
    %v477 = vrot.slane %v476, 2
    %v478 = vadd.f32 %v476, %v477
    %v479 = vrot.slane %v478, 1
    %v480 = vadd.f32 %v478, %v479
    %v481 = vrot.slane %v474, 4
    %v482 = vadd.f32 %v474, %v481
    %v483 = vrot.slane %v482, 2
    %v484 = vadd.f32 %v482, %v483
    %v485 = vrot.slane %v484, 1
    %v486 = vadd.f32 %v484, %v485
    %v487 = vrcp.pop 8.0
    %v488 = vmul.f32 %v480, %v487
    %v489 = vmul.f32 %v486, %v487
    %vm490 = vcmp.gt.f32.partialorder %v470, 0.1
    %vm491 = vcmp.gt.f32.partialorder %v472, 0.1
    %v492 = vsel %vm490, 1, 0
    %v493 = vsel %vm491, 1, 0
    %v494 = vcvt.s32.f32 %v492
    %v495 = vcvt.s32.f32 %v493
    %v496 = vrot.slane %v494, 4
    %v497 = vadd.f32 %v494, %v496
    %v498 = vrot.slane %v497, 2
    %v499 = vadd.f32 %v497, %v498
    %v500 = vrot.slane %v499, 1
    %v501 = vadd.f32 %v499, %v500
    %v502 = vrot.slane %v495, 4
    %v503 = vadd.f32 %v495, %v502
    %v504 = vrot.slane %v503, 2
    %v505 = vadd.f32 %v503, %v504
    %v506 = vrot.slane %v505, 1
    %v507 = vadd.f32 %v505, %v506
    %v508 = vmul.f32 %v501, %v487
    %v509 = vmul.f32 %v507, %v487
    %v510 = vld [vmem:[%s15] sm:$0x3]
    %v513 = vcombine.low %v508, %v509
    %v515 = vunpack.c.l.s4 1966171168
    %v516 = vunpack.c.0.s8 %v515
    %v517 = vlaneseq
    %v518 = vshrl.u32 %v517, 7
    %v519 = vsub.s32 %v516, %v518
    %v520 = vrot.slane %v513, %v519
    %v522 = vunpack.c.l.s4 1966171168
    %v523 = vunpack.c.0.s8 %v522
    %v524 = vlaneseq
    %v525 = vshrl.u32 %v524, 7
    %v526 = vsub.s32 %v523, %v525
    %v527 = vrot.slane %v520, %v526
    %v529 = vmul.f32 %v510, %v527
    %v530 = vadd.f32 %v529, %v527
    %v531 = vlaneseq
    %vm532 = vcmp.ge.s32.totalorder %v531, 0
    %vm533 = vcmp.lt.s32.totalorder %v531, 256
    %vm534 = vmand %vm532, %vm533
    %535 = vst.msk [vmem:[#allocation22] sm:$0x3] %vm534, %v530
    %v536 = vld [vmem:[%s14] sm:$0xfe]
    %v537 = vld [vmem:[%s14 + $0x8] sm:$0xfe]
    %v540 = vrot.slane %v536, 1
    %v541 = vrot.slane %v537, 1
    %544 = vst [vmem:[#allocation20] sm:$0x7f] %v540
    %545 = vst [vmem:[#allocation20 + $0x8] sm:$0x7f] %v541
    %v548 = vcombine.low %v488, %v489
    %v550 = vunpack.c.l.s4 1966171168
    %v551 = vunpack.c.0.s8 %v550
    %v552 = vlaneseq
    %v553 = vshrl.u32 %v552, 7
    %v554 = vsub.s32 %v551, %v553
    %v555 = vrot.slane %v548, %v554
    %v557 = vunpack.c.l.s4 1966171168
    %v558 = vunpack.c.0.s8 %v557
    %v559 = vlaneseq
    %v560 = vshrl.u32 %v559, 7
    %v561 = vsub.s32 %v558, %v560
    %v562 = vrot.slane %v555, %v561
    %s564 = scalar_lea.vmem [#allocation20], 7
    %565 = vst.msk [vmem:[%s564] ss:$8 sm:$0x3] %vm534, %v562
    %566 = vst.msk [vmem:[%s564] ss:$8 sm:$0x0] %vm534, %v562
    %v567 = vld [vmem:[#allocation20] sm:$0xff]
    %v568 = vld [vmem:[#allocation20 + $0x8] sm:$0xff]
    %v569 = vld [vmem:[#allocation13] sm:$0xff]
    %v570 = vld [vmem:[#allocation13 + $0x8] sm:$0xff]
    %v571 = vld [vmem:[#allocation13 + $0x10] sm:$0xff]
    %v572 = vld [vmem:[#allocation13 + $0x18] sm:$0xff]
    %v573 = vld [vmem:[#allocation13 + $0x20] sm:$0xff]
    %v574 = vld [vmem:[#allocation13 + $0x28] sm:$0xff]
    %v575 = vld [vmem:[#allocation13 + $0x30] sm:$0xff]
    %v576 = vld [vmem:[#allocation13 + $0x38] sm:$0xff]
    %v577 = vld [vmem:[#allocation13 + $0x40] sm:$0xff]
    %v578 = vld [vmem:[#allocation13 + $0x48] sm:$0xff]
    %v579 = vld [vmem:[#allocation13 + $0x50] sm:$0xff]
    %v580 = vld [vmem:[#allocation13 + $0x58] sm:$0xff]
    %v581 = vld [vmem:[#allocation13 + $0x60] sm:$0xff]
    %v582 = vld [vmem:[#allocation13 + $0x68] sm:$0xff]
    %v583 = vld [vmem:[#allocation13 + $0x70] sm:$0xff]
    %v584 = vld [vmem:[#allocation13 + $0x78] sm:$0xff]
    %v585 = vld [vmem:[#allocation13 + $0x80] sm:$0xff]
    %v586 = vld [vmem:[#allocation13 + $0x88] sm:$0xff]
    %v587 = vld [vmem:[#allocation13 + $0x90] sm:$0xff]
    %v588 = vld [vmem:[#allocation13 + $0x98] sm:$0xff]
    %v589 = vld [vmem:[#allocation13 + $0xa0] sm:$0xff]
    %v590 = vld [vmem:[#allocation13 + $0xa8] sm:$0xff]
    %v591 = vld [vmem:[#allocation13 + $0xb0] sm:$0xff]
    %v592 = vld [vmem:[#allocation13 + $0xb8] sm:$0xff]
    %v593 = vld [vmem:[#allocation13 + $0xc0] sm:$0xff]
    %v594 = vld [vmem:[#allocation13 + $0xc8] sm:$0xff]
    %v595 = vld [vmem:[#allocation13 + $0xd0] sm:$0xff]
    %v596 = vld [vmem:[#allocation13 + $0xd8] sm:$0xff]
    %v597 = vld [vmem:[#allocation13 + $0xe0] sm:$0xff]
    %v598 = vld [vmem:[#allocation13 + $0xe8] sm:$0xff]
    %v599 = vld [vmem:[#allocation13 + $0xf0] sm:$0xff]
    %v600 = vld [vmem:[#allocation13 + $0xf8] sm:$0xff]
    %v601 = vld [vmem:[#allocation13 + $0x100] sm:$0xff]
    %v602 = vld [vmem:[#allocation13 + $0x108] sm:$0xff]
    %v603 = vld [vmem:[#allocation13 + $0x110] sm:$0xff]
    %v604 = vld [vmem:[#allocation13 + $0x118] sm:$0xff]
    %v605 = vld [vmem:[#allocation13 + $0x120] sm:$0xff]
    %v606 = vld [vmem:[#allocation13 + $0x128] sm:$0xff]
    %v607 = vld [vmem:[#allocation13 + $0x130] sm:$0xff]
    %v608 = vld [vmem:[#allocation13 + $0x138] sm:$0xff]
    %v609 = vld [vmem:[#allocation13 + $0x140] sm:$0xff]
    %v610 = vld [vmem:[#allocation13 + $0x148] sm:$0xff]
    %v611 = vld [vmem:[#allocation13 + $0x150] sm:$0xff]
    %v612 = vld [vmem:[#allocation13 + $0x158] sm:$0xff]
    %v613 = vld [vmem:[#allocation13 + $0x160] sm:$0xff]
    %v614 = vld [vmem:[#allocation13 + $0x168] sm:$0xff]
    %v615 = vld [vmem:[#allocation13 + $0x170] sm:$0xff]
    %v616 = vld [vmem:[#allocation13 + $0x178] sm:$0xff]
    %v617 = vld [vmem:[#allocation13 + $0x180] sm:$0xff]
    %v618 = vld [vmem:[#allocation13 + $0x188] sm:$0xff]
    %v619 = vld [vmem:[#allocation13 + $0x190] sm:$0xff]
    %v620 = vld [vmem:[#allocation13 + $0x198] sm:$0xff]
    %v621 = vld [vmem:[#allocation13 + $0x1a0] sm:$0xff]
    %v622 = vld [vmem:[#allocation13 + $0x1a8] sm:$0xff]
    %v623 = vld [vmem:[#allocation13 + $0x1b0] sm:$0xff]
    %v624 = vld [vmem:[#allocation13 + $0x1b8] sm:$0xff]
    %v625 = vld [vmem:[#allocation13 + $0x1c0] sm:$0xff]
    %v626 = vld [vmem:[#allocation13 + $0x1c8] sm:$0xff]
    %v627 = vld [vmem:[#allocation13 + $0x1d0] sm:$0xff]
    %v628 = vld [vmem:[#allocation13 + $0x1d8] sm:$0xff]
    %v629 = vld [vmem:[#allocation13 + $0x1e0] sm:$0xff]
    %v630 = vld [vmem:[#allocation13 + $0x1e8] sm:$0xff]
    %v631 = vld [vmem:[#allocation13 + $0x1f0] sm:$0xff]
    %v632 = vld [vmem:[#allocation13 + $0x1f8] sm:$0xff]
    %v633 = vld [vmem:[#allocation13 + $0x200] sm:$0xff]
    %v634 = vld [vmem:[#allocation13 + $0x208] sm:$0xff]
    %v635 = vld [vmem:[#allocation13 + $0x210] sm:$0xff]
    %v636 = vld [vmem:[#allocation13 + $0x218] sm:$0xff]
    %v637 = vld [vmem:[#allocation13 + $0x220] sm:$0xff]
    %v638 = vld [vmem:[#allocation13 + $0x228] sm:$0xff]
    %v639 = vld [vmem:[#allocation13 + $0x230] sm:$0xff]
    %v640 = vld [vmem:[#allocation13 + $0x238] sm:$0xff]
    %v641 = vld [vmem:[#allocation13 + $0x240] sm:$0xff]
    %v642 = vld [vmem:[#allocation13 + $0x248] sm:$0xff]
    %v643 = vld [vmem:[#allocation13 + $0x250] sm:$0xff]
    %v644 = vld [vmem:[#allocation13 + $0x258] sm:$0xff]
    %v645 = vld [vmem:[#allocation13 + $0x260] sm:$0xff]
    %v646 = vld [vmem:[#allocation13 + $0x268] sm:$0xff]
    %v647 = vld [vmem:[#allocation13 + $0x270] sm:$0xff]
    %v648 = vld [vmem:[#allocation13 + $0x278] sm:$0xff]
    %v649 = vld [vmem:[#allocation13 + $0x280] sm:$0xff]
    %v650 = vld [vmem:[#allocation13 + $0x288] sm:$0xff]
    %v651 = vld [vmem:[#allocation13 + $0x290] sm:$0xff]
    %v652 = vld [vmem:[#allocation13 + $0x298] sm:$0xff]
    %v653 = vld [vmem:[#allocation13 + $0x2a0] sm:$0xff]
    %v654 = vld [vmem:[#allocation13 + $0x2a8] sm:$0xff]
    %v655 = vld [vmem:[#allocation13 + $0x2b0] sm:$0xff]
    %v656 = vld [vmem:[#allocation13 + $0x2b8] sm:$0xff]
    %v657 = vld [vmem:[#allocation13 + $0x2c0] sm:$0xff]
    %v658 = vld [vmem:[#allocation13 + $0x2c8] sm:$0xff]
    %v659 = vld [vmem:[#allocation13 + $0x2d0] sm:$0xff]
    %v660 = vld [vmem:[#allocation13 + $0x2d8] sm:$0xff]
    %v661 = vld [vmem:[#allocation13 + $0x2e0] sm:$0xff]
    %v662 = vld [vmem:[#allocation13 + $0x2e8] sm:$0xff]
    %v663 = vld [vmem:[#allocation13 + $0x2f0] sm:$0xff]
    %v664 = vld [vmem:[#allocation13 + $0x2f8] sm:$0xff]
    %v665 = vld [vmem:[#allocation13 + $0x300] sm:$0xff]
    %v666 = vld [vmem:[#allocation13 + $0x308] sm:$0xff]
    %v667 = vld [vmem:[#allocation13 + $0x310] sm:$0xff]
    %v668 = vld [vmem:[#allocation13 + $0x318] sm:$0xff]
    %v669 = vld [vmem:[#allocation13 + $0x320] sm:$0xff]
    %v670 = vld [vmem:[#allocation13 + $0x328] sm:$0xff]
    %v671 = vld [vmem:[#allocation13 + $0x330] sm:$0xff]
    %v672 = vld [vmem:[#allocation13 + $0x338] sm:$0xff]
    %v673 = vld [vmem:[#allocation13 + $0x340] sm:$0xff]
    %v674 = vld [vmem:[#allocation13 + $0x348] sm:$0xff]
    %v675 = vld [vmem:[#allocation13 + $0x350] sm:$0xff]
    %v676 = vld [vmem:[#allocation13 + $0x358] sm:$0xff]
    %v677 = vld [vmem:[#allocation13 + $0x360] sm:$0xff]
    %v678 = vld [vmem:[#allocation13 + $0x368] sm:$0xff]
    %v679 = vld [vmem:[#allocation13 + $0x370] sm:$0xff]
    %v680 = vld [vmem:[#allocation13 + $0x378] sm:$0xff]
    %v681 = vld [vmem:[#allocation13 + $0x380] sm:$0xff]
    %v682 = vld [vmem:[#allocation13 + $0x388] sm:$0xff]
    %v683 = vld [vmem:[#allocation13 + $0x390] sm:$0xff]
    %v684 = vld [vmem:[#allocation13 + $0x398] sm:$0xff]
    %v685 = vld [vmem:[#allocation13 + $0x3a0] sm:$0xff]
    %v686 = vld [vmem:[#allocation13 + $0x3a8] sm:$0xff]
    %v687 = vld [vmem:[#allocation13 + $0x3b0] sm:$0xff]
    %v688 = vld [vmem:[#allocation13 + $0x3b8] sm:$0xff]
    %v689 = vld [vmem:[#allocation13 + $0x3c0] sm:$0xff]
    %v690 = vld [vmem:[#allocation13 + $0x3c8] sm:$0xff]
    %v691 = vld [vmem:[#allocation13 + $0x3d0] sm:$0xff]
    %v692 = vld [vmem:[#allocation13 + $0x3d8] sm:$0xff]
    %v693 = vld [vmem:[#allocation13 + $0x3e0] sm:$0xff]
    %v694 = vld [vmem:[#allocation13 + $0x3e8] sm:$0xff]
    %v695 = vld [vmem:[#allocation13 + $0x3f0] sm:$0xff]
    %v696 = vld [vmem:[#allocation13 + $0x3f8] sm:$0xff]
    %v697 = vld [vmem:[%s10] sm:$0xf]
    %v699 = vlaneseq
    %v700 = vshrl.u32 %v699, 7
    %v701 = vsub.s32 0, %v700
    %v702 = vrot.slane %v697, %v701
    %v703 = vlaneseq
    %v704 = vshrl.u32 %v703, 7
    %v705 = vsub.s32 1, %v704
    %v706 = vrot.slane %v697, %v705
    %v707 = vlaneseq
    %v708 = vshrl.u32 %v707, 7
    %v709 = vsub.s32 2, %v708
    %v710 = vrot.slane %v697, %v709
    %v711 = vlaneseq
    %v712 = vshrl.u32 %v711, 7
    %v713 = vsub.s32 3, %v712
    %v714 = vrot.slane %v697, %v713
    %719 = vmatprep.subr.mxu0 %v570
    %720 = vmatpush1.msra.mxu0 %v569
    %721 = vmatprep.subr.mxu0 %v574
    %722 = vmatpush1.msra.mxu0 %v573
    %723 = vmatprep.subr.mxu0 %v578
    %724 = vmatpush1.msra.mxu0 %v577
    %725 = vmatprep.subr.mxu0 %v582
    %726 = vmatpush1.msra.mxu0 %v581
    %727 = vmatprep.subr.mxu0 %v586
    %728 = vmatpush1.msra.mxu0 %v585
    %729 = vmatprep.subr.mxu0 %v590
    %730 = vmatpush1.msra.mxu0 %v589
    %731 = vmatprep.subr.mxu0 %v594
    %732 = vmatpush1.msra.mxu0 %v593
    %733 = vmatprep.subr.mxu0 %v598
    %734 = vmatpush1.msra.mxu0 %v597
    %735 = vmatprep.subr.mxu0 %v602
    %736 = vmatpush1.msra.mxu0 %v601
    %737 = vmatprep.subr.mxu0 %v606
    %738 = vmatpush1.msra.mxu0 %v605
    %739 = vmatprep.subr.mxu0 %v610
    %740 = vmatpush1.msra.mxu0 %v609
    %741 = vmatprep.subr.mxu0 %v614
    %742 = vmatpush1.msra.mxu0 %v613
    %743 = vmatprep.subr.mxu0 %v618
    %744 = vmatpush1.msra.mxu0 %v617
    %745 = vmatprep.subr.mxu0 %v622
    %746 = vmatpush1.msra.mxu0 %v621
    %747 = vmatprep.subr.mxu0 %v626
    %748 = vmatpush1.msra.mxu0 %v625
    %749 = vmatprep.subr.mxu0 %v630
    %750 = vmatpush1.msra.mxu0 %v629
    %751 = vmatprep.subr.mxu0 %v634
    %752 = vmatpush1.msra.mxu0 %v633
    %753 = vmatprep.subr.mxu0 %v638
    %754 = vmatpush1.msra.mxu0 %v637
    %755 = vmatprep.subr.mxu0 %v642
    %756 = vmatpush1.msra.mxu0 %v641
    %757 = vmatprep.subr.mxu0 %v646
    %758 = vmatpush1.msra.mxu0 %v645
    %759 = vmatprep.subr.mxu0 %v650
    %760 = vmatpush1.msra.mxu0 %v649
    %761 = vmatprep.subr.mxu0 %v654
    %762 = vmatpush1.msra.mxu0 %v653
    %763 = vmatprep.subr.mxu0 %v658
    %764 = vmatpush1.msra.mxu0 %v657
    %765 = vmatprep.subr.mxu0 %v662
    %766 = vmatpush1.msra.mxu0 %v661
    %767 = vmatprep.subr.mxu0 %v666
    %768 = vmatpush1.msra.mxu0 %v665
    %769 = vmatprep.subr.mxu0 %v670
    %770 = vmatpush1.msra.mxu0 %v669
    %771 = vmatprep.subr.mxu0 %v674
    %772 = vmatpush1.msra.mxu0 %v673
    %773 = vmatprep.subr.mxu0 %v678
    %774 = vmatpush1.msra.mxu0 %v677
    %775 = vmatprep.subr.mxu0 %v682
    %776 = vmatpush1.msra.mxu0 %v681
    %777 = vmatprep.subr.mxu0 %v686
    %778 = vmatpush1.msra.mxu0 %v685
    %779 = vmatprep.subr.mxu0 %v690
    %780 = vmatpush1.msra.mxu0 %v689
    %781 = vmatprep.subr.mxu0 %v694
    %782 = vmatpush1.msra.mxu0 %v693
    %783 = vmatprep.mubr.f32.mxu0 %v568
    %784 = vmatmul.mubr.f32.gmra.mrb[0].mxu0 %v567
    %v785 = vpop.f32.mrb[0].mxu0
    %v786 = vadd.f32 %v702, %v785
    %v787 = vpop.f32.mrb[0].mxu0
    %v788 = vadd.f32 %v706, %v787
    %789 = vdwg.mxu0
    %790 = vmatprep.subr.mxu0 %v572
    %791 = vmatpush1.msra.mxu0 %v571
    %792 = vmatprep.subr.mxu0 %v576
    %793 = vmatpush1.msra.mxu0 %v575
    %794 = vmatprep.subr.mxu0 %v580
    %795 = vmatpush1.msra.mxu0 %v579
    %796 = vmatprep.subr.mxu0 %v584
    %797 = vmatpush1.msra.mxu0 %v583
    %798 = vmatprep.subr.mxu0 %v588
    %799 = vmatpush1.msra.mxu0 %v587
    %800 = vmatprep.subr.mxu0 %v592
    %801 = vmatpush1.msra.mxu0 %v591
    %802 = vmatprep.subr.mxu0 %v596
    %803 = vmatpush1.msra.mxu0 %v595
    %804 = vmatprep.subr.mxu0 %v600
    %805 = vmatpush1.msra.mxu0 %v599
    %806 = vmatprep.subr.mxu0 %v604
    %807 = vmatpush1.msra.mxu0 %v603
    %808 = vmatprep.subr.mxu0 %v608
    %809 = vmatpush1.msra.mxu0 %v607
    %810 = vmatprep.subr.mxu0 %v612
    %811 = vmatpush1.msra.mxu0 %v611
    %812 = vmatprep.subr.mxu0 %v616
    %813 = vmatpush1.msra.mxu0 %v615
    %814 = vmatprep.subr.mxu0 %v620
    %815 = vmatpush1.msra.mxu0 %v619
    %816 = vmatprep.subr.mxu0 %v624
    %817 = vmatpush1.msra.mxu0 %v623
    %818 = vmatprep.subr.mxu0 %v628
    %819 = vmatpush1.msra.mxu0 %v627
    %820 = vmatprep.subr.mxu0 %v632
    %821 = vmatpush1.msra.mxu0 %v631
    %822 = vmatprep.subr.mxu0 %v636
    %823 = vmatpush1.msra.mxu0 %v635
    %824 = vmatprep.subr.mxu0 %v640
    %825 = vmatpush1.msra.mxu0 %v639
    %826 = vmatprep.subr.mxu0 %v644
    %827 = vmatpush1.msra.mxu0 %v643
    %828 = vmatprep.subr.mxu0 %v648
    %829 = vmatpush1.msra.mxu0 %v647
    %830 = vmatprep.subr.mxu0 %v652
    %831 = vmatpush1.msra.mxu0 %v651
    %832 = vmatprep.subr.mxu0 %v656
    %833 = vmatpush1.msra.mxu0 %v655
    %834 = vmatprep.subr.mxu0 %v660
    %835 = vmatpush1.msra.mxu0 %v659
    %836 = vmatprep.subr.mxu0 %v664
    %837 = vmatpush1.msra.mxu0 %v663
    %838 = vmatprep.subr.mxu0 %v668
    %839 = vmatpush1.msra.mxu0 %v667
    %840 = vmatprep.subr.mxu0 %v672
    %841 = vmatpush1.msra.mxu0 %v671
    %842 = vmatprep.subr.mxu0 %v676
    %843 = vmatpush1.msra.mxu0 %v675
    %844 = vmatprep.subr.mxu0 %v680
    %845 = vmatpush1.msra.mxu0 %v679
    %846 = vmatprep.subr.mxu0 %v684
    %847 = vmatpush1.msra.mxu0 %v683
    %848 = vmatprep.subr.mxu0 %v688
    %849 = vmatpush1.msra.mxu0 %v687
    %850 = vmatprep.subr.mxu0 %v692
    %851 = vmatpush1.msra.mxu0 %v691
    %852 = vmatprep.subr.mxu0 %v696
    %853 = vmatpush1.msra.mxu0 %v695
    %854 = vmatprep.mubr.f32.mxu0 %v568
    %855 = vmatmul.mubr.f32.gmra.mrb[0].mxu0 %v567
    %v856 = vpop.f32.mrb[0].mxu0
    %v857 = vadd.f32 %v710, %v856
    %v858 = vpop.f32.mrb[0].mxu0
    %v859 = vadd.f32 %v714, %v858
    %860 = vdwg.mxu0
    %v861 = vld [vmem:[#allocation14] sm:$0xff]
    %v862 = vld [vmem:[#allocation14 + $0x8] sm:$0xff]
    %v863 = vld [vmem:[#allocation14 + $0x10] sm:$0xff]
    %v864 = vld [vmem:[#allocation14 + $0x18] sm:$0xff]
    %v865 = vld [vmem:[#allocation14 + $0x20] sm:$0xff]
    %v866 = vld [vmem:[#allocation14 + $0x28] sm:$0xff]
    %v867 = vld [vmem:[#allocation14 + $0x30] sm:$0xff]
    %v868 = vld [vmem:[#allocation14 + $0x38] sm:$0xff]
    %v869 = vld [vmem:[#allocation14 + $0x40] sm:$0xff]
    %v870 = vld [vmem:[#allocation14 + $0x48] sm:$0xff]
    %v871 = vld [vmem:[#allocation14 + $0x50] sm:$0xff]
    %v872 = vld [vmem:[#allocation14 + $0x58] sm:$0xff]
    %v873 = vld [vmem:[#allocation14 + $0x60] sm:$0xff]
    %v874 = vld [vmem:[#allocation14 + $0x68] sm:$0xff]
    %v875 = vld [vmem:[#allocation14 + $0x70] sm:$0xff]
    %v876 = vld [vmem:[#allocation14 + $0x78] sm:$0xff]
    %v877 = vld [vmem:[#allocation14 + $0x80] sm:$0xff]
    %v878 = vld [vmem:[#allocation14 + $0x88] sm:$0xff]
    %v879 = vld [vmem:[#allocation14 + $0x90] sm:$0xff]
    %v880 = vld [vmem:[#allocation14 + $0x98] sm:$0xff]
    %v881 = vld [vmem:[#allocation14 + $0xa0] sm:$0xff]
    %v882 = vld [vmem:[#allocation14 + $0xa8] sm:$0xff]
    %v883 = vld [vmem:[#allocation14 + $0xb0] sm:$0xff]
    %v884 = vld [vmem:[#allocation14 + $0xb8] sm:$0xff]
    %v885 = vld [vmem:[#allocation14 + $0xc0] sm:$0xff]
    %v886 = vld [vmem:[#allocation14 + $0xc8] sm:$0xff]
    %v887 = vld [vmem:[#allocation14 + $0xd0] sm:$0xff]
    %v888 = vld [vmem:[#allocation14 + $0xd8] sm:$0xff]
    %v889 = vld [vmem:[#allocation14 + $0xe0] sm:$0xff]
    %v890 = vld [vmem:[#allocation14 + $0xe8] sm:$0xff]
    %v891 = vld [vmem:[#allocation14 + $0xf0] sm:$0xff]
    %v892 = vld [vmem:[#allocation14 + $0xf8] sm:$0xff]
    %v893 = vld [vmem:[#allocation14 + $0x100] sm:$0xff]
    %v894 = vld [vmem:[#allocation14 + $0x108] sm:$0xff]
    %v895 = vld [vmem:[#allocation14 + $0x110] sm:$0xff]
    %v896 = vld [vmem:[#allocation14 + $0x118] sm:$0xff]
    %v897 = vld [vmem:[#allocation14 + $0x120] sm:$0xff]
    %v898 = vld [vmem:[#allocation14 + $0x128] sm:$0xff]
    %v899 = vld [vmem:[#allocation14 + $0x130] sm:$0xff]
    %v900 = vld [vmem:[#allocation14 + $0x138] sm:$0xff]
    %v901 = vld [vmem:[#allocation14 + $0x140] sm:$0xff]
    %v902 = vld [vmem:[#allocation14 + $0x148] sm:$0xff]
    %v903 = vld [vmem:[#allocation14 + $0x150] sm:$0xff]
    %v904 = vld [vmem:[#allocation14 + $0x158] sm:$0xff]
    %v905 = vld [vmem:[#allocation14 + $0x160] sm:$0xff]
    %v906 = vld [vmem:[#allocation14 + $0x168] sm:$0xff]
    %v907 = vld [vmem:[#allocation14 + $0x170] sm:$0xff]
    %v908 = vld [vmem:[#allocation14 + $0x178] sm:$0xff]
    %v909 = vld [vmem:[#allocation14 + $0x180] sm:$0xff]
    %v910 = vld [vmem:[#allocation14 + $0x188] sm:$0xff]
    %v911 = vld [vmem:[#allocation14 + $0x190] sm:$0xff]
    %v912 = vld [vmem:[#allocation14 + $0x198] sm:$0xff]
    %v913 = vld [vmem:[#allocation14 + $0x1a0] sm:$0xff]
    %v914 = vld [vmem:[#allocation14 + $0x1a8] sm:$0xff]
    %v915 = vld [vmem:[#allocation14 + $0x1b0] sm:$0xff]
    %v916 = vld [vmem:[#allocation14 + $0x1b8] sm:$0xff]
    %v917 = vld [vmem:[#allocation14 + $0x1c0] sm:$0xff]
    %v918 = vld [vmem:[#allocation14 + $0x1c8] sm:$0xff]
    %v919 = vld [vmem:[#allocation14 + $0x1d0] sm:$0xff]
    %v920 = vld [vmem:[#allocation14 + $0x1d8] sm:$0xff]
    %v921 = vld [vmem:[#allocation14 + $0x1e0] sm:$0xff]
    %v922 = vld [vmem:[#allocation14 + $0x1e8] sm:$0xff]
    %v923 = vld [vmem:[#allocation14 + $0x1f0] sm:$0xff]
    %v924 = vld [vmem:[#allocation14 + $0x1f8] sm:$0xff]
    %925 = vmatprep.subr.mxu0 %v862
    %926 = vmatpush1.msra.mxu0 %v861
    %927 = vmatprep.subr.mxu0 %v866
    %928 = vmatpush1.msra.mxu0 %v865
    %929 = vmatprep.subr.mxu0 %v870
    %930 = vmatpush1.msra.mxu0 %v869
    %931 = vmatprep.subr.mxu0 %v874
    %932 = vmatpush1.msra.mxu0 %v873
    %933 = vmatprep.subr.mxu0 %v878
    %934 = vmatpush1.msra.mxu0 %v877
    %935 = vmatprep.subr.mxu0 %v882
    %936 = vmatpush1.msra.mxu0 %v881
    %937 = vmatprep.subr.mxu0 %v886
    %938 = vmatpush1.msra.mxu0 %v885
    %939 = vmatprep.subr.mxu0 %v890
    %940 = vmatpush1.msra.mxu0 %v889
    %941 = vmatprep.subr.mxu0 %v894
    %942 = vmatpush1.msra.mxu0 %v893
    %943 = vmatprep.subr.mxu0 %v898
    %944 = vmatpush1.msra.mxu0 %v897
    %945 = vmatprep.subr.mxu0 %v902
    %946 = vmatpush1.msra.mxu0 %v901
    %947 = vmatprep.subr.mxu0 %v906
    %948 = vmatpush1.msra.mxu0 %v905
    %949 = vmatprep.subr.mxu0 %v910
    %950 = vmatpush1.msra.mxu0 %v909
    %951 = vmatprep.subr.mxu0 %v914
    %952 = vmatpush1.msra.mxu0 %v913
    %953 = vmatprep.subr.mxu0 %v918
    %954 = vmatpush1.msra.mxu0 %v917
    %955 = vmatprep.subr.mxu0 %v922
    %956 = vmatpush1.msra.mxu0 %v921
    %957 = vmatprep.subr.mxu0 0.0
    %958 = vmatpush1.msra.mxu0 0.0
    %959 = vmatprep.subr.mxu0 0.0
    %960 = vmatpush1.msra.mxu0 0.0
    %961 = vmatprep.subr.mxu0 0.0
    %962 = vmatpush1.msra.mxu0 0.0
    %963 = vmatprep.subr.mxu0 0.0
    %964 = vmatpush1.msra.mxu0 0.0
    %965 = vmatprep.subr.mxu0 0.0
    %966 = vmatpush1.msra.mxu0 0.0
    %967 = vmatprep.subr.mxu0 0.0
    %968 = vmatpush1.msra.mxu0 0.0
    %969 = vmatprep.subr.mxu0 0.0
    %970 = vmatpush1.msra.mxu0 0.0
    %971 = vmatprep.subr.mxu0 0.0
    %972 = vmatpush1.msra.mxu0 0.0
    %973 = vmatprep.subr.mxu0 0.0
    %974 = vmatpush1.msra.mxu0 0.0
    %975 = vmatprep.subr.mxu0 0.0
    %976 = vmatpush1.msra.mxu0 0.0
    %977 = vmatprep.subr.mxu0 0.0
    %978 = vmatpush1.msra.mxu0 0.0
    %979 = vmatprep.subr.mxu0 0.0
    %980 = vmatpush1.msra.mxu0 0.0
    %981 = vmatprep.subr.mxu0 0.0
    %982 = vmatpush1.msra.mxu0 0.0
    %983 = vmatprep.subr.mxu0 0.0
    %984 = vmatpush1.msra.mxu0 0.0
    %985 = vmatprep.subr.mxu0 0.0
    %986 = vmatpush1.msra.mxu0 0.0
    %987 = vmatprep.subr.mxu0 0.0
    %988 = vmatpush1.msra.mxu0 0.0
    %989 = vmatprep.mubr.f32.mxu0 0.0
    %990 = vmatmul.mubr.f32.gmra.mrb[0].mxu0 0.0
    %v991 = vpop.f32.mrb[0].mxu0
    %v992 = vadd.f32 0.0, %v991
    %v993 = vpop.f32.mrb[0].mxu0
    %v994 = vadd.f32 0.0, %v993
    %995 = vdwg.mxu0
    %996 = vmatprep.subr.mxu0 %v864
    %997 = vmatpush1.msra.mxu0 %v863
    %998 = vmatprep.subr.mxu0 %v868
    %999 = vmatpush1.msra.mxu0 %v867
    %1000 = vmatprep.subr.mxu0 %v872
    %1001 = vmatpush1.msra.mxu0 %v871
    %1002 = vmatprep.subr.mxu0 %v876
    %1003 = vmatpush1.msra.mxu0 %v875
    %1004 = vmatprep.subr.mxu0 %v880
    %1005 = vmatpush1.msra.mxu0 %v879
    %1006 = vmatprep.subr.mxu0 %v884
    %1007 = vmatpush1.msra.mxu0 %v883
    %1008 = vmatprep.subr.mxu0 %v888
    %1009 = vmatpush1.msra.mxu0 %v887
    %1010 = vmatprep.subr.mxu0 %v892
    %1011 = vmatpush1.msra.mxu0 %v891
    %1012 = vmatprep.subr.mxu0 %v896
    %1013 = vmatpush1.msra.mxu0 %v895
    %1014 = vmatprep.subr.mxu0 %v900
    %1015 = vmatpush1.msra.mxu0 %v899
    %1016 = vmatprep.subr.mxu0 %v904
    %1017 = vmatpush1.msra.mxu0 %v903
    %1018 = vmatprep.subr.mxu0 %v908
    %1019 = vmatpush1.msra.mxu0 %v907
    %1020 = vmatprep.subr.mxu0 %v912
    %1021 = vmatpush1.msra.mxu0 %v911
    %1022 = vmatprep.subr.mxu0 %v916
    %1023 = vmatpush1.msra.mxu0 %v915
    %1024 = vmatprep.subr.mxu0 %v920
    %1025 = vmatpush1.msra.mxu0 %v919
    %1026 = vmatprep.subr.mxu0 %v924
    %1027 = vmatpush1.msra.mxu0 %v923
    %1028 = vmatprep.subr.mxu0 0.0
    %1029 = vmatpush1.msra.mxu0 0.0
    %1030 = vmatprep.subr.mxu0 0.0
    %1031 = vmatpush1.msra.mxu0 0.0
    %1032 = vmatprep.subr.mxu0 0.0
    %1033 = vmatpush1.msra.mxu0 0.0
    %1034 = vmatprep.subr.mxu0 0.0
    %1035 = vmatpush1.msra.mxu0 0.0
    %1036 = vmatprep.subr.mxu0 0.0
    %1037 = vmatpush1.msra.mxu0 0.0
    %1038 = vmatprep.subr.mxu0 0.0
    %1039 = vmatpush1.msra.mxu0 0.0
    %1040 = vmatprep.subr.mxu0 0.0
    %1041 = vmatpush1.msra.mxu0 0.0
    %1042 = vmatprep.subr.mxu0 0.0
    %1043 = vmatpush1.msra.mxu0 0.0
    %1044 = vmatprep.subr.mxu0 0.0
    %1045 = vmatpush1.msra.mxu0 0.0
    %1046 = vmatprep.subr.mxu0 0.0
    %1047 = vmatpush1.msra.mxu0 0.0
    %1048 = vmatprep.subr.mxu0 0.0
    %1049 = vmatpush1.msra.mxu0 0.0
    %1050 = vmatprep.subr.mxu0 0.0
    %1051 = vmatpush1.msra.mxu0 0.0
    %1052 = vmatprep.subr.mxu0 0.0
    %1053 = vmatpush1.msra.mxu0 0.0
    %1054 = vmatprep.subr.mxu0 0.0
    %1055 = vmatpush1.msra.mxu0 0.0
    %1056 = vmatprep.subr.mxu0 0.0
    %1057 = vmatpush1.msra.mxu0 0.0
    %1058 = vmatprep.subr.mxu0 0.0
    %1059 = vmatpush1.msra.mxu0 0.0
    %1060 = vmatprep.mubr.f32.mxu0 0.0
    %1061 = vmatmul.mubr.f32.gmra.mrb[0].mxu0 0.0
    %v1062 = vpop.f32.mrb[0].mxu0
    %v1063 = vadd.f32 0.0, %v1062
    %v1064 = vpop.f32.mrb[0].mxu0
    %v1065 = vadd.f32 0.0, %v1064
    %1066 = vdwg.mxu0
    %v1067 = vadd.f32 %v786, %v992
    %v1068 = vadd.f32 %v788, %v994
    %v1069 = vadd.f32 %v857, %v1063
    %v1070 = vadd.f32 %v859, %v1065
    %v1071 = vxor.u32 %v1067, 2147483648
    %v1072 = vmul.f32 %v1071, 1.442695
    %v1073 = vpow.pop %v1072
    %v1074 = vadd.f32 %v1073, 1.0
    %v1075 = vrcp.pop %v1074
    %v1076 = vmul.f32 1.0, %v1075
    %v1077 = vxor.u32 %v1068, 2147483648
    %v1078 = vmul.f32 %v1077, 1.442695
    %v1079 = vpow.pop %v1078
    %v1080 = vadd.f32 %v1079, 1.0
    %v1081 = vrcp.pop %v1080
    %v1082 = vmul.f32 1.0, %v1081
    %v1083 = vtanh.pop %v1069
    %v1084 = vxor.u32 %v1070, 2147483648
    %v1085 = vmul.f32 %v1084, 1.442695
    %v1086 = vpow.pop %v1085
    %v1087 = vadd.f32 %v1086, 1.0
    %v1088 = vrcp.pop %v1087
    %v1089 = vmul.f32 1.0, %v1088
    %v1090 = vmul.f32 %v1082, 0.0
    %v1091 = vmul.f32 %v1076, %v1083
    %v1092 = vadd.f32 %v1090, %v1091
    %v1093 = vtanh.pop %v1092
    %v1094 = vmul.f32 %v1089, %v1093
    %1095 = vmatprep.subr.mxu0 %v862
    %1096 = vmatpush1.msra.mxu0 %v861
    %1097 = vmatprep.subr.mxu0 %v866
    %1098 = vmatpush1.msra.mxu0 %v865
    %1099 = vmatprep.subr.mxu0 %v870
    %1100 = vmatpush1.msra.mxu0 %v869
    %1101 = vmatprep.subr.mxu0 %v874
    %1102 = vmatpush1.msra.mxu0 %v873
    %1103 = vmatprep.subr.mxu0 %v878
    %1104 = vmatpush1.msra.mxu0 %v877
    %1105 = vmatprep.subr.mxu0 %v882
    %1106 = vmatpush1.msra.mxu0 %v881
    %1107 = vmatprep.subr.mxu0 %v886
    %1108 = vmatpush1.msra.mxu0 %v885
    %1109 = vmatprep.subr.mxu0 %v890
    %1110 = vmatpush1.msra.mxu0 %v889
    %1111 = vmatprep.subr.mxu0 %v894
    %1112 = vmatpush1.msra.mxu0 %v893
    %1113 = vmatprep.subr.mxu0 %v898
    %1114 = vmatpush1.msra.mxu0 %v897
    %1115 = vmatprep.subr.mxu0 %v902
    %1116 = vmatpush1.msra.mxu0 %v901
    %1117 = vmatprep.subr.mxu0 %v906
    %1118 = vmatpush1.msra.mxu0 %v905
    %1119 = vmatprep.subr.mxu0 %v910
    %1120 = vmatpush1.msra.mxu0 %v909
    %1121 = vmatprep.subr.mxu0 %v914
    %1122 = vmatpush1.msra.mxu0 %v913
    %1123 = vmatprep.subr.mxu0 %v918
    %1124 = vmatpush1.msra.mxu0 %v917
    %1125 = vmatprep.subr.mxu0 %v922
    %1126 = vmatpush1.msra.mxu0 %v921
    %1127 = vmatprep.subr.mxu0 0.0
    %1128 = vmatpush1.msra.mxu0 0.0
    %1129 = vmatprep.subr.mxu0 0.0
    %1130 = vmatpush1.msra.mxu0 0.0
    %1131 = vmatprep.subr.mxu0 0.0
    %1132 = vmatpush1.msra.mxu0 0.0
    %1133 = vmatprep.subr.mxu0 0.0
    %1134 = vmatpush1.msra.mxu0 0.0
    %1135 = vmatprep.subr.mxu0 0.0
    %1136 = vmatpush1.msra.mxu0 0.0
    %1137 = vmatprep.subr.mxu0 0.0
    %1138 = vmatpush1.msra.mxu0 0.0
    %1139 = vmatprep.subr.mxu0 0.0
    %1140 = vmatpush1.msra.mxu0 0.0
    %1141 = vmatprep.subr.mxu0 0.0
    %1142 = vmatpush1.msra.mxu0 0.0
    %1143 = vmatprep.subr.mxu0 0.0
    %1144 = vmatpush1.msra.mxu0 0.0
    %1145 = vmatprep.subr.mxu0 0.0
    %1146 = vmatpush1.msra.mxu0 0.0
    %1147 = vmatprep.subr.mxu0 0.0
    %1148 = vmatpush1.msra.mxu0 0.0
    %1149 = vmatprep.subr.mxu0 0.0
    %1150 = vmatpush1.msra.mxu0 0.0
    %1151 = vmatprep.subr.mxu0 0.0
    %1152 = vmatpush1.msra.mxu0 0.0
    %1153 = vmatprep.subr.mxu0 0.0
    %1154 = vmatpush1.msra.mxu0 0.0
    %1155 = vmatprep.subr.mxu0 0.0
    %1156 = vmatpush1.msra.mxu0 0.0
    %1157 = vmatprep.subr.mxu0 0.0
    %1158 = vmatpush1.msra.mxu0 0.0
    %1159 = vmatprep.mubr.f32.mxu0 0.0
    %1160 = vmatmul.mubr.f32.gmra.mrb[0].mxu0 %v1094
    %v1161 = vpop.f32.mrb[0].mxu0
    %v1162 = vadd.f32 0.0, %v1161
    %v1163 = vpop.f32.mrb[0].mxu0
    %v1164 = vadd.f32 0.0, %v1163
    %1165 = vdwg.mxu0
    %1166 = vmatprep.subr.mxu0 %v864
    %1167 = vmatpush1.msra.mxu0 %v863
    %1168 = vmatprep.subr.mxu0 %v868
    %1169 = vmatpush1.msra.mxu0 %v867
    %1170 = vmatprep.subr.mxu0 %v872
    %1171 = vmatpush1.msra.mxu0 %v871
    %1172 = vmatprep.subr.mxu0 %v876
    %1173 = vmatpush1.msra.mxu0 %v875
    %1174 = vmatprep.subr.mxu0 %v880
    %1175 = vmatpush1.msra.mxu0 %v879
    %1176 = vmatprep.subr.mxu0 %v884
    %1177 = vmatpush1.msra.mxu0 %v883
    %1178 = vmatprep.subr.mxu0 %v888
    %1179 = vmatpush1.msra.mxu0 %v887
    %1180 = vmatprep.subr.mxu0 %v892
    %1181 = vmatpush1.msra.mxu0 %v891
    %1182 = vmatprep.subr.mxu0 %v896
    %1183 = vmatpush1.msra.mxu0 %v895
    %1184 = vmatprep.subr.mxu0 %v900
    %1185 = vmatpush1.msra.mxu0 %v899
    %1186 = vmatprep.subr.mxu0 %v904
    %1187 = vmatpush1.msra.mxu0 %v903
    %1188 = vmatprep.subr.mxu0 %v908
    %1189 = vmatpush1.msra.mxu0 %v907
    %1190 = vmatprep.subr.mxu0 %v912
    %1191 = vmatpush1.msra.mxu0 %v911
    %1192 = vmatprep.subr.mxu0 %v916
    %1193 = vmatpush1.msra.mxu0 %v915
    %1194 = vmatprep.subr.mxu0 %v920
    %1195 = vmatpush1.msra.mxu0 %v919
    %1196 = vmatprep.subr.mxu0 %v924
    %1197 = vmatpush1.msra.mxu0 %v923
    %1198 = vmatprep.subr.mxu0 0.0
    %1199 = vmatpush1.msra.mxu0 0.0
    %1200 = vmatprep.subr.mxu0 0.0
    %1201 = vmatpush1.msra.mxu0 0.0
    %1202 = vmatprep.subr.mxu0 0.0
    %1203 = vmatpush1.msra.mxu0 0.0
    %1204 = vmatprep.subr.mxu0 0.0
    %1205 = vmatpush1.msra.mxu0 0.0
    %1206 = vmatprep.subr.mxu0 0.0
    %1207 = vmatpush1.msra.mxu0 0.0
    %1208 = vmatprep.subr.mxu0 0.0
    %1209 = vmatpush1.msra.mxu0 0.0
    %1210 = vmatprep.subr.mxu0 0.0
    %1211 = vmatpush1.msra.mxu0 0.0
    %1212 = vmatprep.subr.mxu0 0.0
    %1213 = vmatpush1.msra.mxu0 0.0
    %1214 = vmatprep.subr.mxu0 0.0
    %1215 = vmatpush1.msra.mxu0 0.0
    %1216 = vmatprep.subr.mxu0 0.0
    %1217 = vmatpush1.msra.mxu0 0.0
    %1218 = vmatprep.subr.mxu0 0.0
    %1219 = vmatpush1.msra.mxu0 0.0
    %1220 = vmatprep.subr.mxu0 0.0
    %1221 = vmatpush1.msra.mxu0 0.0
    %1222 = vmatprep.subr.mxu0 0.0
    %1223 = vmatpush1.msra.mxu0 0.0
    %1224 = vmatprep.subr.mxu0 0.0
    %1225 = vmatpush1.msra.mxu0 0.0
    %1226 = vmatprep.subr.mxu0 0.0
    %1227 = vmatpush1.msra.mxu0 0.0
    %1228 = vmatprep.subr.mxu0 0.0
    %1229 = vmatpush1.msra.mxu0 0.0
    %1230 = vmatprep.mubr.f32.mxu0 0.0
    %1231 = vmatmul.mubr.f32.gmra.mrb[0].mxu0 %v1094
    %v1232 = vpop.f32.mrb[0].mxu0
    %v1233 = vadd.f32 0.0, %v1232
    %v1234 = vpop.f32.mrb[0].mxu0
    %v1235 = vadd.f32 0.0, %v1234
    %1236 = vdwg.mxu0
    %v1241 = vrot.slane %v1162, 7
    %v1242 = vrot.slane %v1164, 7
    %v1243 = vrot.slane %v1233, 7
    %v1244 = vrot.slane %v1235, 7
    %v1249 = vadd.f32 %v786, %v1241
    %v1250 = vadd.f32 %v788, %v1242
    %v1251 = vadd.f32 %v857, %v1243
    %v1252 = vadd.f32 %v859, %v1244
    %v1253 = vxor.u32 %v1249, 2147483648
    %v1254 = vmul.f32 %v1253, 1.442695
    %v1255 = vpow.pop %v1254
    %v1256 = vadd.f32 %v1255, 1.0
    %v1257 = vrcp.pop %v1256
    %v1258 = vmul.f32 1.0, %v1257
    %v1259 = vxor.u32 %v1250, 2147483648
    %v1260 = vmul.f32 %v1259, 1.442695
    %v1261 = vpow.pop %v1260
    %v1262 = vadd.f32 %v1261, 1.0
    %v1263 = vrcp.pop %v1262
    %v1264 = vmul.f32 1.0, %v1263
    %v1265 = vtanh.pop %v1251
    %v1266 = vxor.u32 %v1252, 2147483648
    %v1267 = vmul.f32 %v1266, 1.442695
    %v1268 = vpow.pop %v1267
    %v1269 = vadd.f32 %v1268, 1.0
    %v1270 = vrcp.pop %v1269
    %v1271 = vmul.f32 1.0, %v1270
    %v1273 = vrot.slane %v1092, 7
    %v1275 = vmul.f32 %v1264, %v1273
    %v1276 = vmul.f32 %v1258, %v1265
    %v1277 = vadd.f32 %v1275, %v1276
    %v1278 = vtanh.pop %v1277
    %v1279 = vmul.f32 %v1271, %v1278
    %v1281 = vrot.slane %v1279, 1
    %1283 = vmatprep.subr.mxu0 %v862
    %1284 = vmatpush1.msra.mxu0 %v861
    %1285 = vmatprep.subr.mxu0 %v866
    %1286 = vmatpush1.msra.mxu0 %v865
    %1287 = vmatprep.subr.mxu0 %v870
    %1288 = vmatpush1.msra.mxu0 %v869
    %1289 = vmatprep.subr.mxu0 %v874
    %1290 = vmatpush1.msra.mxu0 %v873
    %1291 = vmatprep.subr.mxu0 %v878
    %1292 = vmatpush1.msra.mxu0 %v877
    %1293 = vmatprep.subr.mxu0 %v882
    %1294 = vmatpush1.msra.mxu0 %v881
    %1295 = vmatprep.subr.mxu0 %v886
    %1296 = vmatpush1.msra.mxu0 %v885
    %1297 = vmatprep.subr.mxu0 %v890
    %1298 = vmatpush1.msra.mxu0 %v889
    %1299 = vmatprep.subr.mxu0 %v894
    %1300 = vmatpush1.msra.mxu0 %v893
    %1301 = vmatprep.subr.mxu0 %v898
    %1302 = vmatpush1.msra.mxu0 %v897
    %1303 = vmatprep.subr.mxu0 %v902
    %1304 = vmatpush1.msra.mxu0 %v901
    %1305 = vmatprep.subr.mxu0 %v906
    %1306 = vmatpush1.msra.mxu0 %v905
    %1307 = vmatprep.subr.mxu0 %v910
    %1308 = vmatpush1.msra.mxu0 %v909
    %1309 = vmatprep.subr.mxu0 %v914
    %1310 = vmatpush1.msra.mxu0 %v913
    %1311 = vmatprep.subr.mxu0 %v918
    %1312 = vmatpush1.msra.mxu0 %v917
    %1313 = vmatprep.subr.mxu0 %v922
    %1314 = vmatpush1.msra.mxu0 %v921
    %1315 = vmatprep.subr.mxu0 0.0
    %1316 = vmatpush1.msra.mxu0 0.0
    %1317 = vmatprep.subr.mxu0 0.0
    %1318 = vmatpush1.msra.mxu0 0.0
    %1319 = vmatprep.subr.mxu0 0.0
    %1320 = vmatpush1.msra.mxu0 0.0
    %1321 = vmatprep.subr.mxu0 0.0
    %1322 = vmatpush1.msra.mxu0 0.0
    %1323 = vmatprep.subr.mxu0 0.0
    %1324 = vmatpush1.msra.mxu0 0.0
    %1325 = vmatprep.subr.mxu0 0.0
    %1326 = vmatpush1.msra.mxu0 0.0
    %1327 = vmatprep.subr.mxu0 0.0
    %1328 = vmatpush1.msra.mxu0 0.0
    %1329 = vmatprep.subr.mxu0 0.0
    %1330 = vmatpush1.msra.mxu0 0.0
    %1331 = vmatprep.subr.mxu0 0.0
    %1332 = vmatpush1.msra.mxu0 0.0
    %1333 = vmatprep.subr.mxu0 0.0
    %1334 = vmatpush1.msra.mxu0 0.0
    %1335 = vmatprep.subr.mxu0 0.0
    %1336 = vmatpush1.msra.mxu0 0.0
    %1337 = vmatprep.subr.mxu0 0.0
    %1338 = vmatpush1.msra.mxu0 0.0
    %1339 = vmatprep.subr.mxu0 0.0
    %1340 = vmatpush1.msra.mxu0 0.0
    %1341 = vmatprep.subr.mxu0 0.0
    %1342 = vmatpush1.msra.mxu0 0.0
    %1343 = vmatprep.subr.mxu0 0.0
    %1344 = vmatpush1.msra.mxu0 0.0
    %1345 = vmatprep.subr.mxu0 0.0
    %1346 = vmatpush1.msra.mxu0 0.0
    %1347 = vmatprep.mubr.f32.mxu0 0.0
    %1348 = vmatmul.mubr.f32.gmra.mrb[0].mxu0 %v1281
    %v1349 = vpop.f32.mrb[0].mxu0
    %v1350 = vadd.f32 0.0, %v1349
    %v1351 = vpop.f32.mrb[0].mxu0
    %v1352 = vadd.f32 0.0, %v1351
    %1353 = vdwg.mxu0
    %1354 = vmatprep.subr.mxu0 %v864
    %1355 = vmatpush1.msra.mxu0 %v863
    %1356 = vmatprep.subr.mxu0 %v868
    %1357 = vmatpush1.msra.mxu0 %v867
    %1358 = vmatprep.subr.mxu0 %v872
    %1359 = vmatpush1.msra.mxu0 %v871
    %1360 = vmatprep.subr.mxu0 %v876
    %1361 = vmatpush1.msra.mxu0 %v875
    %1362 = vmatprep.subr.mxu0 %v880
    %1363 = vmatpush1.msra.mxu0 %v879
    %1364 = vmatprep.subr.mxu0 %v884
    %1365 = vmatpush1.msra.mxu0 %v883
    %1366 = vmatprep.subr.mxu0 %v888
    %1367 = vmatpush1.msra.mxu0 %v887
    %1368 = vmatprep.subr.mxu0 %v892
    %1369 = vmatpush1.msra.mxu0 %v891
    %1370 = vmatprep.subr.mxu0 %v896
    %1371 = vmatpush1.msra.mxu0 %v895
    %1372 = vmatprep.subr.mxu0 %v900
    %1373 = vmatpush1.msra.mxu0 %v899
    %1374 = vmatprep.subr.mxu0 %v904
    %1375 = vmatpush1.msra.mxu0 %v903
    %1376 = vmatprep.subr.mxu0 %v908
    %1377 = vmatpush1.msra.mxu0 %v907
    %1378 = vmatprep.subr.mxu0 %v912
    %1379 = vmatpush1.msra.mxu0 %v911
    %1380 = vmatprep.subr.mxu0 %v916
    %1381 = vmatpush1.msra.mxu0 %v915
    %1382 = vmatprep.subr.mxu0 %v920
    %1383 = vmatpush1.msra.mxu0 %v919
    %1384 = vmatprep.subr.mxu0 %v924
    %1385 = vmatpush1.msra.mxu0 %v923
    %1386 = vmatprep.subr.mxu0 0.0
    %1387 = vmatpush1.msra.mxu0 0.0
    %1388 = vmatprep.subr.mxu0 0.0
    %1389 = vmatpush1.msra.mxu0 0.0
    %1390 = vmatprep.subr.mxu0 0.0
    %1391 = vmatpush1.msra.mxu0 0.0
    %1392 = vmatprep.subr.mxu0 0.0
    %1393 = vmatpush1.msra.mxu0 0.0
    %1394 = vmatprep.subr.mxu0 0.0
    %1395 = vmatpush1.msra.mxu0 0.0
    %1396 = vmatprep.subr.mxu0 0.0
    %1397 = vmatpush1.msra.mxu0 0.0
    %1398 = vmatprep.subr.mxu0 0.0
    %1399 = vmatpush1.msra.mxu0 0.0
    %1400 = vmatprep.subr.mxu0 0.0
    %1401 = vmatpush1.msra.mxu0 0.0
    %1402 = vmatprep.subr.mxu0 0.0
    %1403 = vmatpush1.msra.mxu0 0.0
    %1404 = vmatprep.subr.mxu0 0.0
    %1405 = vmatpush1.msra.mxu0 0.0
    %1406 = vmatprep.subr.mxu0 0.0
    %1407 = vmatpush1.msra.mxu0 0.0
    %1408 = vmatprep.subr.mxu0 0.0
    %1409 = vmatpush1.msra.mxu0 0.0
    %1410 = vmatprep.subr.mxu0 0.0
    %1411 = vmatpush1.msra.mxu0 0.0
    %1412 = vmatprep.subr.mxu0 0.0
    %1413 = vmatpush1.msra.mxu0 0.0
    %1414 = vmatprep.subr.mxu0 0.0
    %1415 = vmatpush1.msra.mxu0 0.0
    %1416 = vmatprep.subr.mxu0 0.0
    %1417 = vmatpush1.msra.mxu0 0.0
    %1418 = vmatprep.mubr.f32.mxu0 0.0
    %1419 = vmatmul.mubr.f32.gmra.mrb[0].mxu0 %v1281
    %v1420 = vpop.f32.mrb[0].mxu0
    %v1421 = vadd.f32 0.0, %v1420
    %v1422 = vpop.f32.mrb[0].mxu0
    %v1423 = vadd.f32 0.0, %v1422
    %1424 = vdwg.mxu0
    %v1429 = vrot.slane %v1350, 6
    %v1430 = vrot.slane %v1352, 6
    %v1431 = vrot.slane %v1421, 6
    %v1432 = vrot.slane %v1423, 6
    %v1437 = vadd.f32 %v786, %v1429
    %v1438 = vadd.f32 %v788, %v1430
    %v1439 = vadd.f32 %v857, %v1431
    %v1440 = vadd.f32 %v859, %v1432
    %v1441 = vxor.u32 %v1437, 2147483648
    %v1442 = vmul.f32 %v1441, 1.442695
    %v1443 = vpow.pop %v1442
    %v1444 = vadd.f32 %v1443, 1.0
    %v1445 = vrcp.pop %v1444
    %v1446 = vmul.f32 1.0, %v1445
    %v1447 = vxor.u32 %v1438, 2147483648
    %v1448 = vmul.f32 %v1447, 1.442695
    %v1449 = vpow.pop %v1448
    %v1450 = vadd.f32 %v1449, 1.0
    %v1451 = vrcp.pop %v1450
    %v1452 = vmul.f32 1.0, %v1451
    %v1453 = vtanh.pop %v1439
    %v1454 = vxor.u32 %v1440, 2147483648
    %v1455 = vmul.f32 %v1454, 1.442695
    %v1456 = vpow.pop %v1455
    %v1457 = vadd.f32 %v1456, 1.0
    %v1458 = vrcp.pop %v1457
    %v1459 = vmul.f32 1.0, %v1458
    %v1461 = vrot.slane %v1277, 7
    %v1463 = vmul.f32 %v1452, %v1461
    %v1464 = vmul.f32 %v1446, %v1453
    %v1465 = vadd.f32 %v1463, %v1464
    %v1466 = vtanh.pop %v1465
    %v1467 = vmul.f32 %v1459, %v1466
    %v1469 = vrot.slane %v1467, 2
    %1471 = vmatprep.subr.mxu0 %v862
    %1472 = vmatpush1.msra.mxu0 %v861
    %1473 = vmatprep.subr.mxu0 %v866
    %1474 = vmatpush1.msra.mxu0 %v865
    %1475 = vmatprep.subr.mxu0 %v870
    %1476 = vmatpush1.msra.mxu0 %v869
    %1477 = vmatprep.subr.mxu0 %v874
    %1478 = vmatpush1.msra.mxu0 %v873
    %1479 = vmatprep.subr.mxu0 %v878
    %1480 = vmatpush1.msra.mxu0 %v877
    %1481 = vmatprep.subr.mxu0 %v882
    %1482 = vmatpush1.msra.mxu0 %v881
    %1483 = vmatprep.subr.mxu0 %v886
    %1484 = vmatpush1.msra.mxu0 %v885
    %1485 = vmatprep.subr.mxu0 %v890
    %1486 = vmatpush1.msra.mxu0 %v889
    %1487 = vmatprep.subr.mxu0 %v894
    %1488 = vmatpush1.msra.mxu0 %v893
    %1489 = vmatprep.subr.mxu0 %v898
    %1490 = vmatpush1.msra.mxu0 %v897
    %1491 = vmatprep.subr.mxu0 %v902
    %1492 = vmatpush1.msra.mxu0 %v901
    %1493 = vmatprep.subr.mxu0 %v906
    %1494 = vmatpush1.msra.mxu0 %v905
    %1495 = vmatprep.subr.mxu0 %v910
    %1496 = vmatpush1.msra.mxu0 %v909
    %1497 = vmatprep.subr.mxu0 %v914
    %1498 = vmatpush1.msra.mxu0 %v913
    %1499 = vmatprep.subr.mxu0 %v918
    %1500 = vmatpush1.msra.mxu0 %v917
    %1501 = vmatprep.subr.mxu0 %v922
    %1502 = vmatpush1.msra.mxu0 %v921
    %1503 = vmatprep.subr.mxu0 0.0
    %1504 = vmatpush1.msra.mxu0 0.0
    %1505 = vmatprep.subr.mxu0 0.0
    %1506 = vmatpush1.msra.mxu0 0.0
    %1507 = vmatprep.subr.mxu0 0.0
    %1508 = vmatpush1.msra.mxu0 0.0
    %1509 = vmatprep.subr.mxu0 0.0
    %1510 = vmatpush1.msra.mxu0 0.0
    %1511 = vmatprep.subr.mxu0 0.0
    %1512 = vmatpush1.msra.mxu0 0.0
    %1513 = vmatprep.subr.mxu0 0.0
    %1514 = vmatpush1.msra.mxu0 0.0
    %1515 = vmatprep.subr.mxu0 0.0
    %1516 = vmatpush1.msra.mxu0 0.0
    %1517 = vmatprep.subr.mxu0 0.0
    %1518 = vmatpush1.msra.mxu0 0.0
    %1519 = vmatprep.subr.mxu0 0.0
    %1520 = vmatpush1.msra.mxu0 0.0
    %1521 = vmatprep.subr.mxu0 0.0
    %1522 = vmatpush1.msra.mxu0 0.0
    %1523 = vmatprep.subr.mxu0 0.0
    %1524 = vmatpush1.msra.mxu0 0.0
    %1525 = vmatprep.subr.mxu0 0.0
    %1526 = vmatpush1.msra.mxu0 0.0
    %1527 = vmatprep.subr.mxu0 0.0
    %1528 = vmatpush1.msra.mxu0 0.0
    %1529 = vmatprep.subr.mxu0 0.0
    %1530 = vmatpush1.msra.mxu0 0.0
    %1531 = vmatprep.subr.mxu0 0.0
    %1532 = vmatpush1.msra.mxu0 0.0
    %1533 = vmatprep.subr.mxu0 0.0
    %1534 = vmatpush1.msra.mxu0 0.0
    %1535 = vmatprep.mubr.f32.mxu0 0.0
    %1536 = vmatmul.mubr.f32.gmra.mrb[0].mxu0 %v1469
    %v1537 = vpop.f32.mrb[0].mxu0
    %v1538 = vadd.f32 0.0, %v1537
    %v1539 = vpop.f32.mrb[0].mxu0
    %v1540 = vadd.f32 0.0, %v1539
    %1541 = vdwg.mxu0
    %1542 = vmatprep.subr.mxu0 %v864
    %1543 = vmatpush1.msra.mxu0 %v863
    %1544 = vmatprep.subr.mxu0 %v868
    %1545 = vmatpush1.msra.mxu0 %v867
    %1546 = vmatprep.subr.mxu0 %v872
    %1547 = vmatpush1.msra.mxu0 %v871
    %1548 = vmatprep.subr.mxu0 %v876
    %1549 = vmatpush1.msra.mxu0 %v875
    %1550 = vmatprep.subr.mxu0 %v880
    %1551 = vmatpush1.msra.mxu0 %v879
    %1552 = vmatprep.subr.mxu0 %v884
    %1553 = vmatpush1.msra.mxu0 %v883
    %1554 = vmatprep.subr.mxu0 %v888
    %1555 = vmatpush1.msra.mxu0 %v887
    %1556 = vmatprep.subr.mxu0 %v892
    %1557 = vmatpush1.msra.mxu0 %v891
    %1558 = vmatprep.subr.mxu0 %v896
    %1559 = vmatpush1.msra.mxu0 %v895
    %1560 = vmatprep.subr.mxu0 %v900
    %1561 = vmatpush1.msra.mxu0 %v899
    %1562 = vmatprep.subr.mxu0 %v904
    %1563 = vmatpush1.msra.mxu0 %v903
    %1564 = vmatprep.subr.mxu0 %v908
    %1565 = vmatpush1.msra.mxu0 %v907
    %1566 = vmatprep.subr.mxu0 %v912
    %1567 = vmatpush1.msra.mxu0 %v911
    %1568 = vmatprep.subr.mxu0 %v916
    %1569 = vmatpush1.msra.mxu0 %v915
    %1570 = vmatprep.subr.mxu0 %v920
    %1571 = vmatpush1.msra.mxu0 %v919
    %1572 = vmatprep.subr.mxu0 %v924
    %1573 = vmatpush1.msra.mxu0 %v923
    %1574 = vmatprep.subr.mxu0 0.0
    %1575 = vmatpush1.msra.mxu0 0.0
    %1576 = vmatprep.subr.mxu0 0.0
    %1577 = vmatpush1.msra.mxu0 0.0
    %1578 = vmatprep.subr.mxu0 0.0
    %1579 = vmatpush1.msra.mxu0 0.0
    %1580 = vmatprep.subr.mxu0 0.0
    %1581 = vmatpush1.msra.mxu0 0.0
    %1582 = vmatprep.subr.mxu0 0.0
    %1583 = vmatpush1.msra.mxu0 0.0
    %1584 = vmatprep.subr.mxu0 0.0
    %1585 = vmatpush1.msra.mxu0 0.0
    %1586 = vmatprep.subr.mxu0 0.0
    %1587 = vmatpush1.msra.mxu0 0.0
    %1588 = vmatprep.subr.mxu0 0.0
    %1589 = vmatpush1.msra.mxu0 0.0
    %1590 = vmatprep.subr.mxu0 0.0
    %1591 = vmatpush1.msra.mxu0 0.0
    %1592 = vmatprep.subr.mxu0 0.0
    %1593 = vmatpush1.msra.mxu0 0.0
    %1594 = vmatprep.subr.mxu0 0.0
    %1595 = vmatpush1.msra.mxu0 0.0
    %1596 = vmatprep.subr.mxu0 0.0
    %1597 = vmatpush1.msra.mxu0 0.0
    %1598 = vmatprep.subr.mxu0 0.0
    %1599 = vmatpush1.msra.mxu0 0.0
    %1600 = vmatprep.subr.mxu0 0.0
    %1601 = vmatpush1.msra.mxu0 0.0
    %1602 = vmatprep.subr.mxu0 0.0
    %1603 = vmatpush1.msra.mxu0 0.0
    %1604 = vmatprep.subr.mxu0 0.0
    %1605 = vmatpush1.msra.mxu0 0.0
    %1606 = vmatprep.mubr.f32.mxu0 0.0
    %1607 = vmatmul.mubr.f32.gmra.mrb[0].mxu0 %v1469
    %v1608 = vpop.f32.mrb[0].mxu0
    %v1609 = vadd.f32 0.0, %v1608
    %v1610 = vpop.f32.mrb[0].mxu0
    %v1611 = vadd.f32 0.0, %v1610
    %1612 = vdwg.mxu0
    %v1617 = vrot.slane %v1538, 5
    %v1618 = vrot.slane %v1540, 5
    %v1619 = vrot.slane %v1609, 5
    %v1620 = vrot.slane %v1611, 5
    %v1625 = vadd.f32 %v786, %v1617
    %v1626 = vadd.f32 %v788, %v1618
    %v1627 = vadd.f32 %v857, %v1619
    %v1628 = vadd.f32 %v859, %v1620
    %v1629 = vxor.u32 %v1625, 2147483648
    %v1630 = vmul.f32 %v1629, 1.442695
    %v1631 = vpow.pop %v1630
    %v1632 = vadd.f32 %v1631, 1.0
    %v1633 = vrcp.pop %v1632
    %v1634 = vmul.f32 1.0, %v1633
    %v1635 = vxor.u32 %v1626, 2147483648
    %v1636 = vmul.f32 %v1635, 1.442695
    %v1637 = vpow.pop %v1636
    %v1638 = vadd.f32 %v1637, 1.0
    %v1639 = vrcp.pop %v1638
    %v1640 = vmul.f32 1.0, %v1639
    %v1641 = vtanh.pop %v1627
    %v1642 = vxor.u32 %v1628, 2147483648
    %v1643 = vmul.f32 %v1642, 1.442695
    %v1644 = vpow.pop %v1643
    %v1645 = vadd.f32 %v1644, 1.0
    %v1646 = vrcp.pop %v1645
    %v1647 = vmul.f32 1.0, %v1646
    %v1649 = vrot.slane %v1465, 7
    %v1651 = vmul.f32 %v1640, %v1649
    %v1652 = vmul.f32 %v1634, %v1641
    %v1653 = vadd.f32 %v1651, %v1652
    %v1654 = vtanh.pop %v1653
    %v1655 = vmul.f32 %v1647, %v1654
    %v1657 = vrot.slane %v1655, 3
    %1659 = vmatprep.subr.mxu0 %v862
    %1660 = vmatpush1.msra.mxu0 %v861
    %1661 = vmatprep.subr.mxu0 %v866
    %1662 = vmatpush1.msra.mxu0 %v865
    %1663 = vmatprep.subr.mxu0 %v870
    %1664 = vmatpush1.msra.mxu0 %v869
    %1665 = vmatprep.subr.mxu0 %v874
    %1666 = vmatpush1.msra.mxu0 %v873
    %1667 = vmatprep.subr.mxu0 %v878
    %1668 = vmatpush1.msra.mxu0 %v877
    %1669 = vmatprep.subr.mxu0 %v882
    %1670 = vmatpush1.msra.mxu0 %v881
    %1671 = vmatprep.subr.mxu0 %v886
    %1672 = vmatpush1.msra.mxu0 %v885
    %1673 = vmatprep.subr.mxu0 %v890
    %1674 = vmatpush1.msra.mxu0 %v889
    %1675 = vmatprep.subr.mxu0 %v894
    %1676 = vmatpush1.msra.mxu0 %v893
    %1677 = vmatprep.subr.mxu0 %v898
    %1678 = vmatpush1.msra.mxu0 %v897
    %1679 = vmatprep.subr.mxu0 %v902
    %1680 = vmatpush1.msra.mxu0 %v901
    %1681 = vmatprep.subr.mxu0 %v906
    %1682 = vmatpush1.msra.mxu0 %v905
    %1683 = vmatprep.subr.mxu0 %v910
    %1684 = vmatpush1.msra.mxu0 %v909
    %1685 = vmatprep.subr.mxu0 %v914
    %1686 = vmatpush1.msra.mxu0 %v913
    %1687 = vmatprep.subr.mxu0 %v918
    %1688 = vmatpush1.msra.mxu0 %v917
    %1689 = vmatprep.subr.mxu0 %v922
    %1690 = vmatpush1.msra.mxu0 %v921
    %1691 = vmatprep.subr.mxu0 0.0
    %1692 = vmatpush1.msra.mxu0 0.0
    %1693 = vmatprep.subr.mxu0 0.0
    %1694 = vmatpush1.msra.mxu0 0.0
    %1695 = vmatprep.subr.mxu0 0.0
    %1696 = vmatpush1.msra.mxu0 0.0
    %1697 = vmatprep.subr.mxu0 0.0
    %1698 = vmatpush1.msra.mxu0 0.0
    %1699 = vmatprep.subr.mxu0 0.0
    %1700 = vmatpush1.msra.mxu0 0.0
    %1701 = vmatprep.subr.mxu0 0.0
    %1702 = vmatpush1.msra.mxu0 0.0
    %1703 = vmatprep.subr.mxu0 0.0
    %1704 = vmatpush1.msra.mxu0 0.0
    %1705 = vmatprep.subr.mxu0 0.0
    %1706 = vmatpush1.msra.mxu0 0.0
    %1707 = vmatprep.subr.mxu0 0.0
    %1708 = vmatpush1.msra.mxu0 0.0
    %1709 = vmatprep.subr.mxu0 0.0
    %1710 = vmatpush1.msra.mxu0 0.0
    %1711 = vmatprep.subr.mxu0 0.0
    %1712 = vmatpush1.msra.mxu0 0.0
    %1713 = vmatprep.subr.mxu0 0.0
    %1714 = vmatpush1.msra.mxu0 0.0
    %1715 = vmatprep.subr.mxu0 0.0
    %1716 = vmatpush1.msra.mxu0 0.0
    %1717 = vmatprep.subr.mxu0 0.0
    %1718 = vmatpush1.msra.mxu0 0.0
    %1719 = vmatprep.subr.mxu0 0.0
    %1720 = vmatpush1.msra.mxu0 0.0
    %1721 = vmatprep.subr.mxu0 0.0
    %1722 = vmatpush1.msra.mxu0 0.0
    %1723 = vmatprep.mubr.f32.mxu0 0.0
    %1724 = vmatmul.mubr.f32.gmra.mrb[0].mxu0 %v1657
    %v1725 = vpop.f32.mrb[0].mxu0
    %v1726 = vadd.f32 0.0, %v1725
    %v1727 = vpop.f32.mrb[0].mxu0
    %v1728 = vadd.f32 0.0, %v1727
    %1729 = vdwg.mxu0
    %1730 = vmatprep.subr.mxu0 %v864
    %1731 = vmatpush1.msra.mxu0 %v863
    %1732 = vmatprep.subr.mxu0 %v868
    %1733 = vmatpush1.msra.mxu0 %v867
    %1734 = vmatprep.subr.mxu0 %v872
    %1735 = vmatpush1.msra.mxu0 %v871
    %1736 = vmatprep.subr.mxu0 %v876
    %1737 = vmatpush1.msra.mxu0 %v875
    %1738 = vmatprep.subr.mxu0 %v880
    %1739 = vmatpush1.msra.mxu0 %v879
    %1740 = vmatprep.subr.mxu0 %v884
    %1741 = vmatpush1.msra.mxu0 %v883
    %1742 = vmatprep.subr.mxu0 %v888
    %1743 = vmatpush1.msra.mxu0 %v887
    %1744 = vmatprep.subr.mxu0 %v892
    %1745 = vmatpush1.msra.mxu0 %v891
    %1746 = vmatprep.subr.mxu0 %v896
    %1747 = vmatpush1.msra.mxu0 %v895
    %1748 = vmatprep.subr.mxu0 %v900
    %1749 = vmatpush1.msra.mxu0 %v899
    %1750 = vmatprep.subr.mxu0 %v904
    %1751 = vmatpush1.msra.mxu0 %v903
    %1752 = vmatprep.subr.mxu0 %v908
    %1753 = vmatpush1.msra.mxu0 %v907
    %1754 = vmatprep.subr.mxu0 %v912
    %1755 = vmatpush1.msra.mxu0 %v911
    %1756 = vmatprep.subr.mxu0 %v916
    %1757 = vmatpush1.msra.mxu0 %v915
    %1758 = vmatprep.subr.mxu0 %v920
    %1759 = vmatpush1.msra.mxu0 %v919
    %1760 = vmatprep.subr.mxu0 %v924
    %1761 = vmatpush1.msra.mxu0 %v923
    %1762 = vmatprep.subr.mxu0 0.0
    %1763 = vmatpush1.msra.mxu0 0.0
    %1764 = vmatprep.subr.mxu0 0.0
    %1765 = vmatpush1.msra.mxu0 0.0
    %1766 = vmatprep.subr.mxu0 0.0
    %1767 = vmatpush1.msra.mxu0 0.0
    %1768 = vmatprep.subr.mxu0 0.0
    %1769 = vmatpush1.msra.mxu0 0.0
    %1770 = vmatprep.subr.mxu0 0.0
    %1771 = vmatpush1.msra.mxu0 0.0
    %1772 = vmatprep.subr.mxu0 0.0
    %1773 = vmatpush1.msra.mxu0 0.0
    %1774 = vmatprep.subr.mxu0 0.0
    %1775 = vmatpush1.msra.mxu0 0.0
    %1776 = vmatprep.subr.mxu0 0.0
    %1777 = vmatpush1.msra.mxu0 0.0
    %1778 = vmatprep.subr.mxu0 0.0
    %1779 = vmatpush1.msra.mxu0 0.0
    %1780 = vmatprep.subr.mxu0 0.0
    %1781 = vmatpush1.msra.mxu0 0.0
    %1782 = vmatprep.subr.mxu0 0.0
    %1783 = vmatpush1.msra.mxu0 0.0
    %1784 = vmatprep.subr.mxu0 0.0
    %1785 = vmatpush1.msra.mxu0 0.0
    %1786 = vmatprep.subr.mxu0 0.0
    %1787 = vmatpush1.msra.mxu0 0.0
    %1788 = vmatprep.subr.mxu0 0.0
    %1789 = vmatpush1.msra.mxu0 0.0
    %1790 = vmatprep.subr.mxu0 0.0
    %1791 = vmatpush1.msra.mxu0 0.0
    %1792 = vmatprep.subr.mxu0 0.0
    %1793 = vmatpush1.msra.mxu0 0.0
    %1794 = vmatprep.mubr.f32.mxu0 0.0
    %1795 = vmatmul.mubr.f32.gmra.mrb[0].mxu0 %v1657
    %v1796 = vpop.f32.mrb[0].mxu0
    %v1797 = vadd.f32 0.0, %v1796
    %v1798 = vpop.f32.mrb[0].mxu0
    %v1799 = vadd.f32 0.0, %v1798
    %1800 = vdwg.mxu0
    %v1805 = vrot.slane %v1726, 4
    %v1806 = vrot.slane %v1728, 4
    %v1807 = vrot.slane %v1797, 4
    %v1808 = vrot.slane %v1799, 4
    %v1813 = vadd.f32 %v786, %v1805
    %v1814 = vadd.f32 %v788, %v1806
    %v1815 = vadd.f32 %v857, %v1807
    %v1816 = vadd.f32 %v859, %v1808
    %v1817 = vxor.u32 %v1813, 2147483648
    %v1818 = vmul.f32 %v1817, 1.442695
    %v1819 = vpow.pop %v1818
    %v1820 = vadd.f32 %v1819, 1.0
    %v1821 = vrcp.pop %v1820
    %v1822 = vmul.f32 1.0, %v1821
    %v1823 = vxor.u32 %v1814, 2147483648
    %v1824 = vmul.f32 %v1823, 1.442695
    %v1825 = vpow.pop %v1824
    %v1826 = vadd.f32 %v1825, 1.0
    %v1827 = vrcp.pop %v1826
    %v1828 = vmul.f32 1.0, %v1827
    %v1829 = vtanh.pop %v1815
    %v1830 = vxor.u32 %v1816, 2147483648
    %v1831 = vmul.f32 %v1830, 1.442695
    %v1832 = vpow.pop %v1831
    %v1833 = vadd.f32 %v1832, 1.0
    %v1834 = vrcp.pop %v1833
    %v1835 = vmul.f32 1.0, %v1834
    %v1837 = vrot.slane %v1653, 7
    %v1839 = vmul.f32 %v1828, %v1837
    %v1840 = vmul.f32 %v1822, %v1829
    %v1841 = vadd.f32 %v1839, %v1840
    %v1842 = vtanh.pop %v1841
    %v1843 = vmul.f32 %v1835, %v1842
    %v1845 = vrot.slane %v1843, 4
    %1847 = vmatprep.subr.mxu0 %v862
    %1848 = vmatpush1.msra.mxu0 %v861
    %1849 = vmatprep.subr.mxu0 %v866
    %1850 = vmatpush1.msra.mxu0 %v865
    %1851 = vmatprep.subr.mxu0 %v870
    %1852 = vmatpush1.msra.mxu0 %v869
    %1853 = vmatprep.subr.mxu0 %v874
    %1854 = vmatpush1.msra.mxu0 %v873
    %1855 = vmatprep.subr.mxu0 %v878
    %1856 = vmatpush1.msra.mxu0 %v877
    %1857 = vmatprep.subr.mxu0 %v882
    %1858 = vmatpush1.msra.mxu0 %v881
    %1859 = vmatprep.subr.mxu0 %v886
    %1860 = vmatpush1.msra.mxu0 %v885
    %1861 = vmatprep.subr.mxu0 %v890
    %1862 = vmatpush1.msra.mxu0 %v889
    %1863 = vmatprep.subr.mxu0 %v894
    %1864 = vmatpush1.msra.mxu0 %v893
    %1865 = vmatprep.subr.mxu0 %v898
    %1866 = vmatpush1.msra.mxu0 %v897
    %1867 = vmatprep.subr.mxu0 %v902
    %1868 = vmatpush1.msra.mxu0 %v901
    %1869 = vmatprep.subr.mxu0 %v906
    %1870 = vmatpush1.msra.mxu0 %v905
    %1871 = vmatprep.subr.mxu0 %v910
    %1872 = vmatpush1.msra.mxu0 %v909
    %1873 = vmatprep.subr.mxu0 %v914
    %1874 = vmatpush1.msra.mxu0 %v913
    %1875 = vmatprep.subr.mxu0 %v918
    %1876 = vmatpush1.msra.mxu0 %v917
    %1877 = vmatprep.subr.mxu0 %v922
    %1878 = vmatpush1.msra.mxu0 %v921
    %1879 = vmatprep.subr.mxu0 0.0
    %1880 = vmatpush1.msra.mxu0 0.0
    %1881 = vmatprep.subr.mxu0 0.0
    %1882 = vmatpush1.msra.mxu0 0.0
    %1883 = vmatprep.subr.mxu0 0.0
    %1884 = vmatpush1.msra.mxu0 0.0
    %1885 = vmatprep.subr.mxu0 0.0
    %1886 = vmatpush1.msra.mxu0 0.0
    %1887 = vmatprep.subr.mxu0 0.0
    %1888 = vmatpush1.msra.mxu0 0.0
    %1889 = vmatprep.subr.mxu0 0.0
    %1890 = vmatpush1.msra.mxu0 0.0
    %1891 = vmatprep.subr.mxu0 0.0
    %1892 = vmatpush1.msra.mxu0 0.0
    %1893 = vmatprep.subr.mxu0 0.0
    %1894 = vmatpush1.msra.mxu0 0.0
    %1895 = vmatprep.subr.mxu0 0.0
    %1896 = vmatpush1.msra.mxu0 0.0
    %1897 = vmatprep.subr.mxu0 0.0
    %1898 = vmatpush1.msra.mxu0 0.0
    %1899 = vmatprep.subr.mxu0 0.0
    %1900 = vmatpush1.msra.mxu0 0.0
    %1901 = vmatprep.subr.mxu0 0.0
    %1902 = vmatpush1.msra.mxu0 0.0
    %1903 = vmatprep.subr.mxu0 0.0
    %1904 = vmatpush1.msra.mxu0 0.0
    %1905 = vmatprep.subr.mxu0 0.0
    %1906 = vmatpush1.msra.mxu0 0.0
    %1907 = vmatprep.subr.mxu0 0.0
    %1908 = vmatpush1.msra.mxu0 0.0
    %1909 = vmatprep.subr.mxu0 0.0
    %1910 = vmatpush1.msra.mxu0 0.0
    %1911 = vmatprep.mubr.f32.mxu0 0.0
    %1912 = vmatmul.mubr.f32.gmra.mrb[0].mxu0 %v1845
    %v1913 = vpop.f32.mrb[0].mxu0
    %v1914 = vadd.f32 0.0, %v1913
    %v1915 = vpop.f32.mrb[0].mxu0
    %v1916 = vadd.f32 0.0, %v1915
    %1917 = vdwg.mxu0
    %1918 = vmatprep.subr.mxu0 %v864
    %1919 = vmatpush1.msra.mxu0 %v863
    %1920 = vmatprep.subr.mxu0 %v868
    %1921 = vmatpush1.msra.mxu0 %v867
    %1922 = vmatprep.subr.mxu0 %v872
    %1923 = vmatpush1.msra.mxu0 %v871
    %1924 = vmatprep.subr.mxu0 %v876
    %1925 = vmatpush1.msra.mxu0 %v875
    %1926 = vmatprep.subr.mxu0 %v880
    %1927 = vmatpush1.msra.mxu0 %v879
    %1928 = vmatprep.subr.mxu0 %v884
    %1929 = vmatpush1.msra.mxu0 %v883
    %1930 = vmatprep.subr.mxu0 %v888
    %1931 = vmatpush1.msra.mxu0 %v887
    %1932 = vmatprep.subr.mxu0 %v892
    %1933 = vmatpush1.msra.mxu0 %v891
    %1934 = vmatprep.subr.mxu0 %v896
    %1935 = vmatpush1.msra.mxu0 %v895
    %1936 = vmatprep.subr.mxu0 %v900
    %1937 = vmatpush1.msra.mxu0 %v899
    %1938 = vmatprep.subr.mxu0 %v904
    %1939 = vmatpush1.msra.mxu0 %v903
    %1940 = vmatprep.subr.mxu0 %v908
    %1941 = vmatpush1.msra.mxu0 %v907
    %1942 = vmatprep.subr.mxu0 %v912
    %1943 = vmatpush1.msra.mxu0 %v911
    %1944 = vmatprep.subr.mxu0 %v916
    %1945 = vmatpush1.msra.mxu0 %v915
    %1946 = vmatprep.subr.mxu0 %v920
    %1947 = vmatpush1.msra.mxu0 %v919
    %1948 = vmatprep.subr.mxu0 %v924
    %1949 = vmatpush1.msra.mxu0 %v923
    %1950 = vmatprep.subr.mxu0 0.0
    %1951 = vmatpush1.msra.mxu0 0.0
    %1952 = vmatprep.subr.mxu0 0.0
    %1953 = vmatpush1.msra.mxu0 0.0
    %1954 = vmatprep.subr.mxu0 0.0
    %1955 = vmatpush1.msra.mxu0 0.0
    %1956 = vmatprep.subr.mxu0 0.0
    %1957 = vmatpush1.msra.mxu0 0.0
    %1958 = vmatprep.subr.mxu0 0.0
    %1959 = vmatpush1.msra.mxu0 0.0
    %1960 = vmatprep.subr.mxu0 0.0
    %1961 = vmatpush1.msra.mxu0 0.0
    %1962 = vmatprep.subr.mxu0 0.0
    %1963 = vmatpush1.msra.mxu0 0.0
    %1964 = vmatprep.subr.mxu0 0.0
    %1965 = vmatpush1.msra.mxu0 0.0
    %1966 = vmatprep.subr.mxu0 0.0
    %1967 = vmatpush1.msra.mxu0 0.0
    %1968 = vmatprep.subr.mxu0 0.0
    %1969 = vmatpush1.msra.mxu0 0.0
    %1970 = vmatprep.subr.mxu0 0.0
    %1971 = vmatpush1.msra.mxu0 0.0
    %1972 = vmatprep.subr.mxu0 0.0
    %1973 = vmatpush1.msra.mxu0 0.0
    %1974 = vmatprep.subr.mxu0 0.0
    %1975 = vmatpush1.msra.mxu0 0.0
    %1976 = vmatprep.subr.mxu0 0.0
    %1977 = vmatpush1.msra.mxu0 0.0
    %1978 = vmatprep.subr.mxu0 0.0
    %1979 = vmatpush1.msra.mxu0 0.0
    %1980 = vmatprep.subr.mxu0 0.0
    %1981 = vmatpush1.msra.mxu0 0.0
    %1982 = vmatprep.mubr.f32.mxu0 0.0
    %1983 = vmatmul.mubr.f32.gmra.mrb[0].mxu0 %v1845
    %v1984 = vpop.f32.mrb[0].mxu0
    %v1985 = vadd.f32 0.0, %v1984
    %v1986 = vpop.f32.mrb[0].mxu0
    %v1987 = vadd.f32 0.0, %v1986
    %1988 = vdwg.mxu0
    %v1993 = vrot.slane %v1914, 3
    %v1994 = vrot.slane %v1916, 3
    %v1995 = vrot.slane %v1985, 3
    %v1996 = vrot.slane %v1987, 3
    %v2001 = vadd.f32 %v786, %v1993
    %v2002 = vadd.f32 %v788, %v1994
    %v2003 = vadd.f32 %v857, %v1995
    %v2004 = vadd.f32 %v859, %v1996
    %v2005 = vxor.u32 %v2001, 2147483648
    %v2006 = vmul.f32 %v2005, 1.442695
    %v2007 = vpow.pop %v2006
    %v2008 = vadd.f32 %v2007, 1.0
    %v2009 = vrcp.pop %v2008
    %v2010 = vmul.f32 1.0, %v2009
    %v2011 = vxor.u32 %v2002, 2147483648
    %v2012 = vmul.f32 %v2011, 1.442695
    %v2013 = vpow.pop %v2012
    %v2014 = vadd.f32 %v2013, 1.0
    %v2015 = vrcp.pop %v2014
    %v2016 = vmul.f32 1.0, %v2015
    %v2017 = vtanh.pop %v2003
    %v2018 = vxor.u32 %v2004, 2147483648
    %v2019 = vmul.f32 %v2018, 1.442695
    %v2020 = vpow.pop %v2019
    %v2021 = vadd.f32 %v2020, 1.0
    %v2022 = vrcp.pop %v2021
    %v2023 = vmul.f32 1.0, %v2022
    %v2025 = vrot.slane %v1841, 7
    %v2027 = vmul.f32 %v2016, %v2025
    %v2028 = vmul.f32 %v2010, %v2017
    %v2029 = vadd.f32 %v2027, %v2028
    %v2030 = vtanh.pop %v2029
    %v2031 = vmul.f32 %v2023, %v2030
    %v2033 = vrot.slane %v2031, 5
    %2035 = vmatprep.subr.mxu0 %v862
    %2036 = vmatpush1.msra.mxu0 %v861
    %2037 = vmatprep.subr.mxu0 %v866
    %2038 = vmatpush1.msra.mxu0 %v865
    %2039 = vmatprep.subr.mxu0 %v870
    %2040 = vmatpush1.msra.mxu0 %v869
    %2041 = vmatprep.subr.mxu0 %v874
    %2042 = vmatpush1.msra.mxu0 %v873
    %2043 = vmatprep.subr.mxu0 %v878
    %2044 = vmatpush1.msra.mxu0 %v877
    %2045 = vmatprep.subr.mxu0 %v882
    %2046 = vmatpush1.msra.mxu0 %v881
    %2047 = vmatprep.subr.mxu0 %v886
    %2048 = vmatpush1.msra.mxu0 %v885
    %2049 = vmatprep.subr.mxu0 %v890
    %2050 = vmatpush1.msra.mxu0 %v889
    %2051 = vmatprep.subr.mxu0 %v894
    %2052 = vmatpush1.msra.mxu0 %v893
    %2053 = vmatprep.subr.mxu0 %v898
    %2054 = vmatpush1.msra.mxu0 %v897
    %2055 = vmatprep.subr.mxu0 %v902
    %2056 = vmatpush1.msra.mxu0 %v901
    %2057 = vmatprep.subr.mxu0 %v906
    %2058 = vmatpush1.msra.mxu0 %v905
    %2059 = vmatprep.subr.mxu0 %v910
    %2060 = vmatpush1.msra.mxu0 %v909
    %2061 = vmatprep.subr.mxu0 %v914
    %2062 = vmatpush1.msra.mxu0 %v913
    %2063 = vmatprep.subr.mxu0 %v918
    %2064 = vmatpush1.msra.mxu0 %v917
    %2065 = vmatprep.subr.mxu0 %v922
    %2066 = vmatpush1.msra.mxu0 %v921
    %2067 = vmatprep.subr.mxu0 0.0
    %2068 = vmatpush1.msra.mxu0 0.0
    %2069 = vmatprep.subr.mxu0 0.0
    %2070 = vmatpush1.msra.mxu0 0.0
    %2071 = vmatprep.subr.mxu0 0.0
    %2072 = vmatpush1.msra.mxu0 0.0
    %2073 = vmatprep.subr.mxu0 0.0
    %2074 = vmatpush1.msra.mxu0 0.0
    %2075 = vmatprep.subr.mxu0 0.0
    %2076 = vmatpush1.msra.mxu0 0.0
    %2077 = vmatprep.subr.mxu0 0.0
    %2078 = vmatpush1.msra.mxu0 0.0
    %2079 = vmatprep.subr.mxu0 0.0
    %2080 = vmatpush1.msra.mxu0 0.0
    %2081 = vmatprep.subr.mxu0 0.0
    %2082 = vmatpush1.msra.mxu0 0.0
    %2083 = vmatprep.subr.mxu0 0.0
    %2084 = vmatpush1.msra.mxu0 0.0
    %2085 = vmatprep.subr.mxu0 0.0
    %2086 = vmatpush1.msra.mxu0 0.0
    %2087 = vmatprep.subr.mxu0 0.0
    %2088 = vmatpush1.msra.mxu0 0.0
    %2089 = vmatprep.subr.mxu0 0.0
    %2090 = vmatpush1.msra.mxu0 0.0
    %2091 = vmatprep.subr.mxu0 0.0
    %2092 = vmatpush1.msra.mxu0 0.0
    %2093 = vmatprep.subr.mxu0 0.0
    %2094 = vmatpush1.msra.mxu0 0.0
    %2095 = vmatprep.subr.mxu0 0.0
    %2096 = vmatpush1.msra.mxu0 0.0
    %2097 = vmatprep.subr.mxu0 0.0
    %2098 = vmatpush1.msra.mxu0 0.0
    %2099 = vmatprep.mubr.f32.mxu0 0.0
    %2100 = vmatmul.mubr.f32.gmra.mrb[0].mxu0 %v2033
    %v2101 = vpop.f32.mrb[0].mxu0
    %v2102 = vadd.f32 0.0, %v2101
    %v2103 = vpop.f32.mrb[0].mxu0
    %v2104 = vadd.f32 0.0, %v2103
    %2105 = vdwg.mxu0
    %2106 = vmatprep.subr.mxu0 %v864
    %2107 = vmatpush1.msra.mxu0 %v863
    %2108 = vmatprep.subr.mxu0 %v868
    %2109 = vmatpush1.msra.mxu0 %v867
    %2110 = vmatprep.subr.mxu0 %v872
    %2111 = vmatpush1.msra.mxu0 %v871
    %2112 = vmatprep.subr.mxu0 %v876
    %2113 = vmatpush1.msra.mxu0 %v875
    %2114 = vmatprep.subr.mxu0 %v880
    %2115 = vmatpush1.msra.mxu0 %v879
    %2116 = vmatprep.subr.mxu0 %v884
    %2117 = vmatpush1.msra.mxu0 %v883
    %2118 = vmatprep.subr.mxu0 %v888
    %2119 = vmatpush1.msra.mxu0 %v887
    %2120 = vmatprep.subr.mxu0 %v892
    %2121 = vmatpush1.msra.mxu0 %v891
    %2122 = vmatprep.subr.mxu0 %v896
    %2123 = vmatpush1.msra.mxu0 %v895
    %2124 = vmatprep.subr.mxu0 %v900
    %2125 = vmatpush1.msra.mxu0 %v899
    %2126 = vmatprep.subr.mxu0 %v904
    %2127 = vmatpush1.msra.mxu0 %v903
    %2128 = vmatprep.subr.mxu0 %v908
    %2129 = vmatpush1.msra.mxu0 %v907
    %2130 = vmatprep.subr.mxu0 %v912
    %2131 = vmatpush1.msra.mxu0 %v911
    %2132 = vmatprep.subr.mxu0 %v916
    %2133 = vmatpush1.msra.mxu0 %v915
    %2134 = vmatprep.subr.mxu0 %v920
    %2135 = vmatpush1.msra.mxu0 %v919
    %2136 = vmatprep.subr.mxu0 %v924
    %2137 = vmatpush1.msra.mxu0 %v923
    %2138 = vmatprep.subr.mxu0 0.0
    %2139 = vmatpush1.msra.mxu0 0.0
    %2140 = vmatprep.subr.mxu0 0.0
    %2141 = vmatpush1.msra.mxu0 0.0
    %2142 = vmatprep.subr.mxu0 0.0
    %2143 = vmatpush1.msra.mxu0 0.0
    %2144 = vmatprep.subr.mxu0 0.0
    %2145 = vmatpush1.msra.mxu0 0.0
    %2146 = vmatprep.subr.mxu0 0.0
    %2147 = vmatpush1.msra.mxu0 0.0
    %2148 = vmatprep.subr.mxu0 0.0
    %2149 = vmatpush1.msra.mxu0 0.0
    %2150 = vmatprep.subr.mxu0 0.0
    %2151 = vmatpush1.msra.mxu0 0.0
    %2152 = vmatprep.subr.mxu0 0.0
    %2153 = vmatpush1.msra.mxu0 0.0
    %2154 = vmatprep.subr.mxu0 0.0
    %2155 = vmatpush1.msra.mxu0 0.0
    %2156 = vmatprep.subr.mxu0 0.0
    %2157 = vmatpush1.msra.mxu0 0.0
    %2158 = vmatprep.subr.mxu0 0.0
    %2159 = vmatpush1.msra.mxu0 0.0
    %2160 = vmatprep.subr.mxu0 0.0
    %2161 = vmatpush1.msra.mxu0 0.0
    %2162 = vmatprep.subr.mxu0 0.0
    %2163 = vmatpush1.msra.mxu0 0.0
    %2164 = vmatprep.subr.mxu0 0.0
    %2165 = vmatpush1.msra.mxu0 0.0
    %2166 = vmatprep.subr.mxu0 0.0
    %2167 = vmatpush1.msra.mxu0 0.0
    %2168 = vmatprep.subr.mxu0 0.0
    %2169 = vmatpush1.msra.mxu0 0.0
    %2170 = vmatprep.mubr.f32.mxu0 0.0
    %2171 = vmatmul.mubr.f32.gmra.mrb[0].mxu0 %v2033
    %v2172 = vpop.f32.mrb[0].mxu0
    %v2173 = vadd.f32 0.0, %v2172
    %v2174 = vpop.f32.mrb[0].mxu0
    %v2175 = vadd.f32 0.0, %v2174
    %2176 = vdwg.mxu0
    %v2181 = vrot.slane %v2102, 2
    %v2182 = vrot.slane %v2104, 2
    %v2183 = vrot.slane %v2173, 2
    %v2184 = vrot.slane %v2175, 2
    %v2189 = vadd.f32 %v786, %v2181
    %v2190 = vadd.f32 %v788, %v2182
    %v2191 = vadd.f32 %v857, %v2183
    %v2192 = vadd.f32 %v859, %v2184
    %v2193 = vxor.u32 %v2189, 2147483648
    %v2194 = vmul.f32 %v2193, 1.442695
    %v2195 = vpow.pop %v2194
    %v2196 = vadd.f32 %v2195, 1.0
    %v2197 = vrcp.pop %v2196
    %v2198 = vmul.f32 1.0, %v2197
    %v2199 = vxor.u32 %v2190, 2147483648
    %v2200 = vmul.f32 %v2199, 1.442695
    %v2201 = vpow.pop %v2200
    %v2202 = vadd.f32 %v2201, 1.0
    %v2203 = vrcp.pop %v2202
    %v2204 = vmul.f32 1.0, %v2203
    %v2205 = vtanh.pop %v2191
    %v2206 = vxor.u32 %v2192, 2147483648
    %v2207 = vmul.f32 %v2206, 1.442695
    %v2208 = vpow.pop %v2207
    %v2209 = vadd.f32 %v2208, 1.0
    %v2210 = vrcp.pop %v2209
    %v2211 = vmul.f32 1.0, %v2210
    %v2213 = vrot.slane %v2029, 7
    %v2215 = vmul.f32 %v2204, %v2213
    %v2216 = vmul.f32 %v2198, %v2205
    %v2217 = vadd.f32 %v2215, %v2216
    %v2218 = vtanh.pop %v2217
    %v2219 = vmul.f32 %v2211, %v2218
    %v2221 = vrot.slane %v2219, 6
    %2223 = vmatprep.subr.mxu0 %v862
    %2224 = vmatpush1.msra.mxu0 %v861
    %2225 = vmatprep.subr.mxu0 %v866
    %2226 = vmatpush1.msra.mxu0 %v865
    %2227 = vmatprep.subr.mxu0 %v870
    %2228 = vmatpush1.msra.mxu0 %v869
    %2229 = vmatprep.subr.mxu0 %v874
    %2230 = vmatpush1.msra.mxu0 %v873
    %2231 = vmatprep.subr.mxu0 %v878
    %2232 = vmatpush1.msra.mxu0 %v877
    %2233 = vmatprep.subr.mxu0 %v882
    %2234 = vmatpush1.msra.mxu0 %v881
    %2235 = vmatprep.subr.mxu0 %v886
    %2236 = vmatpush1.msra.mxu0 %v885
    %2237 = vmatprep.subr.mxu0 %v890
    %2238 = vmatpush1.msra.mxu0 %v889
    %2239 = vmatprep.subr.mxu0 %v894
    %2240 = vmatpush1.msra.mxu0 %v893
    %2241 = vmatprep.subr.mxu0 %v898
    %2242 = vmatpush1.msra.mxu0 %v897
    %2243 = vmatprep.subr.mxu0 %v902
    %2244 = vmatpush1.msra.mxu0 %v901
    %2245 = vmatprep.subr.mxu0 %v906
    %2246 = vmatpush1.msra.mxu0 %v905
    %2247 = vmatprep.subr.mxu0 %v910
    %2248 = vmatpush1.msra.mxu0 %v909
    %2249 = vmatprep.subr.mxu0 %v914
    %2250 = vmatpush1.msra.mxu0 %v913
    %2251 = vmatprep.subr.mxu0 %v918
    %2252 = vmatpush1.msra.mxu0 %v917
    %2253 = vmatprep.subr.mxu0 %v922
    %2254 = vmatpush1.msra.mxu0 %v921
    %2255 = vmatprep.subr.mxu0 0.0
    %2256 = vmatpush1.msra.mxu0 0.0
    %2257 = vmatprep.subr.mxu0 0.0
    %2258 = vmatpush1.msra.mxu0 0.0
    %2259 = vmatprep.subr.mxu0 0.0
    %2260 = vmatpush1.msra.mxu0 0.0
    %2261 = vmatprep.subr.mxu0 0.0
    %2262 = vmatpush1.msra.mxu0 0.0
    %2263 = vmatprep.subr.mxu0 0.0
    %2264 = vmatpush1.msra.mxu0 0.0
    %2265 = vmatprep.subr.mxu0 0.0
    %2266 = vmatpush1.msra.mxu0 0.0
    %2267 = vmatprep.subr.mxu0 0.0
    %2268 = vmatpush1.msra.mxu0 0.0
    %2269 = vmatprep.subr.mxu0 0.0
    %2270 = vmatpush1.msra.mxu0 0.0
    %2271 = vmatprep.subr.mxu0 0.0
    %2272 = vmatpush1.msra.mxu0 0.0
    %2273 = vmatprep.subr.mxu0 0.0
    %2274 = vmatpush1.msra.mxu0 0.0
    %2275 = vmatprep.subr.mxu0 0.0
    %2276 = vmatpush1.msra.mxu0 0.0
    %2277 = vmatprep.subr.mxu0 0.0
    %2278 = vmatpush1.msra.mxu0 0.0
    %2279 = vmatprep.subr.mxu0 0.0
    %2280 = vmatpush1.msra.mxu0 0.0
    %2281 = vmatprep.subr.mxu0 0.0
    %2282 = vmatpush1.msra.mxu0 0.0
    %2283 = vmatprep.subr.mxu0 0.0
    %2284 = vmatpush1.msra.mxu0 0.0
    %2285 = vmatprep.subr.mxu0 0.0
    %2286 = vmatpush1.msra.mxu0 0.0
    %2287 = vmatprep.mubr.f32.mxu0 0.0
    %2288 = vmatmul.mubr.f32.gmra.mrb[0].mxu0 %v2221
    %v2289 = vpop.f32.mrb[0].mxu0
    %v2290 = vadd.f32 0.0, %v2289
    %v2291 = vpop.f32.mrb[0].mxu0
    %v2292 = vadd.f32 0.0, %v2291
    %2293 = vdwg.mxu0
    %2294 = vmatprep.subr.mxu0 %v864
    %2295 = vmatpush1.msra.mxu0 %v863
    %2296 = vmatprep.subr.mxu0 %v868
    %2297 = vmatpush1.msra.mxu0 %v867
    %2298 = vmatprep.subr.mxu0 %v872
    %2299 = vmatpush1.msra.mxu0 %v871
    %2300 = vmatprep.subr.mxu0 %v876
    %2301 = vmatpush1.msra.mxu0 %v875
    %2302 = vmatprep.subr.mxu0 %v880
    %2303 = vmatpush1.msra.mxu0 %v879
    %2304 = vmatprep.subr.mxu0 %v884
    %2305 = vmatpush1.msra.mxu0 %v883
    %2306 = vmatprep.subr.mxu0 %v888
    %2307 = vmatpush1.msra.mxu0 %v887
    %2308 = vmatprep.subr.mxu0 %v892
    %2309 = vmatpush1.msra.mxu0 %v891
    %2310 = vmatprep.subr.mxu0 %v896
    %2311 = vmatpush1.msra.mxu0 %v895
    %2312 = vmatprep.subr.mxu0 %v900
    %2313 = vmatpush1.msra.mxu0 %v899
    %2314 = vmatprep.subr.mxu0 %v904
    %2315 = vmatpush1.msra.mxu0 %v903
    %2316 = vmatprep.subr.mxu0 %v908
    %2317 = vmatpush1.msra.mxu0 %v907
    %2318 = vmatprep.subr.mxu0 %v912
    %2319 = vmatpush1.msra.mxu0 %v911
    %2320 = vmatprep.subr.mxu0 %v916
    %2321 = vmatpush1.msra.mxu0 %v915
    %2322 = vmatprep.subr.mxu0 %v920
    %2323 = vmatpush1.msra.mxu0 %v919
    %2324 = vmatprep.subr.mxu0 %v924
    %2325 = vmatpush1.msra.mxu0 %v923
    %2326 = vmatprep.subr.mxu0 0.0
    %2327 = vmatpush1.msra.mxu0 0.0
    %2328 = vmatprep.subr.mxu0 0.0
    %2329 = vmatpush1.msra.mxu0 0.0
    %2330 = vmatprep.subr.mxu0 0.0
    %2331 = vmatpush1.msra.mxu0 0.0
    %2332 = vmatprep.subr.mxu0 0.0
    %2333 = vmatpush1.msra.mxu0 0.0
    %2334 = vmatprep.subr.mxu0 0.0
    %2335 = vmatpush1.msra.mxu0 0.0
    %2336 = vmatprep.subr.mxu0 0.0
    %2337 = vmatpush1.msra.mxu0 0.0
    %2338 = vmatprep.subr.mxu0 0.0
    %2339 = vmatpush1.msra.mxu0 0.0
    %2340 = vmatprep.subr.mxu0 0.0
    %2341 = vmatpush1.msra.mxu0 0.0
    %2342 = vmatprep.subr.mxu0 0.0
    %2343 = vmatpush1.msra.mxu0 0.0
    %2344 = vmatprep.subr.mxu0 0.0
    %2345 = vmatpush1.msra.mxu0 0.0
    %2346 = vmatprep.subr.mxu0 0.0
    %2347 = vmatpush1.msra.mxu0 0.0
    %2348 = vmatprep.subr.mxu0 0.0
    %2349 = vmatpush1.msra.mxu0 0.0
    %2350 = vmatprep.subr.mxu0 0.0
    %2351 = vmatpush1.msra.mxu0 0.0
    %2352 = vmatprep.subr.mxu0 0.0
    %2353 = vmatpush1.msra.mxu0 0.0
    %2354 = vmatprep.subr.mxu0 0.0
    %2355 = vmatpush1.msra.mxu0 0.0
    %2356 = vmatprep.subr.mxu0 0.0
    %2357 = vmatpush1.msra.mxu0 0.0
    %2358 = vmatprep.mubr.f32.mxu0 0.0
    %2359 = vmatmul.mubr.f32.gmra.mrb[0].mxu0 %v2221
    %v2360 = vpop.f32.mrb[0].mxu0
    %v2361 = vadd.f32 0.0, %v2360
    %v2362 = vpop.f32.mrb[0].mxu0
    %v2363 = vadd.f32 0.0, %v2362
    %2364 = vdwg.mxu0
    %v2369 = vrot.slane %v2290, 1
    %v2370 = vrot.slane %v2292, 1
    %v2371 = vrot.slane %v2361, 1
    %v2372 = vrot.slane %v2363, 1
    %v2377 = vadd.f32 %v786, %v2369
    %v2378 = vadd.f32 %v788, %v2370
    %v2379 = vadd.f32 %v857, %v2371
    %v2380 = vadd.f32 %v859, %v2372
    %v2381 = vxor.u32 %v2377, 2147483648
    %v2382 = vmul.f32 %v2381, 1.442695
    %v2383 = vpow.pop %v2382
    %v2384 = vadd.f32 %v2383, 1.0
    %v2385 = vrcp.pop %v2384
    %v2386 = vmul.f32 1.0, %v2385
    %v2387 = vxor.u32 %v2378, 2147483648
    %v2388 = vmul.f32 %v2387, 1.442695
    %v2389 = vpow.pop %v2388
    %v2390 = vadd.f32 %v2389, 1.0
    %v2391 = vrcp.pop %v2390
    %v2392 = vmul.f32 1.0, %v2391
    %v2393 = vtanh.pop %v2379
    %v2394 = vxor.u32 %v2380, 2147483648
    %v2395 = vmul.f32 %v2394, 1.442695
    %v2396 = vpow.pop %v2395
    %v2397 = vadd.f32 %v2396, 1.0
    %v2398 = vrcp.pop %v2397
    %v2399 = vmul.f32 1.0, %v2398
    %v2401 = vrot.slane %v2217, 7
    %v2403 = vmul.f32 %v2392, %v2401
    %v2404 = vmul.f32 %v2386, %v2393
    %v2405 = vadd.f32 %v2403, %v2404
    %v2406 = vtanh.pop %v2405
    %v2407 = vmul.f32 %v2399, %v2406
    %v2408 = vld [vmem:[#allocation16] sm:$0xff]
    %v2409 = vld [vmem:[#allocation16 + $0x8] sm:$0xff]
    %v2410 = vld [vmem:[#allocation16 + $0x20] sm:$0xff]
    %v2411 = vld [vmem:[#allocation16 + $0x28] sm:$0xff]
    %v2412 = vld [vmem:[#allocation16 + $0x30] sm:$0xff]
    %v2413 = vld [vmem:[#allocation16 + $0x38] sm:$0xff]
    %v2414 = vld [vmem:[#allocation16 + $0x40] sm:$0xff]
    %v2415 = vld [vmem:[#allocation16 + $0x48] sm:$0xff]
    %v2416 = vld [vmem:[#allocation16 + $0x60] sm:$0xff]
    %v2417 = vld [vmem:[#allocation16 + $0x68] sm:$0xff]
    %v2418 = vld [vmem:[#allocation16 + $0x70] sm:$0xff]
    %v2419 = vld [vmem:[#allocation16 + $0x78] sm:$0xff]
    %v2420 = vld [vmem:[#allocation16 + $0x80] sm:$0xff]
    %v2421 = vld [vmem:[#allocation16 + $0x88] sm:$0xff]
    %v2422 = vld [vmem:[#allocation16 + $0xa0] sm:$0xff]
    %v2423 = vld [vmem:[#allocation16 + $0xa8] sm:$0xff]
    %v2424 = vld [vmem:[#allocation16 + $0xb0] sm:$0xff]
    %v2425 = vld [vmem:[#allocation16 + $0xb8] sm:$0xff]
    %v2426 = vld [vmem:[#allocation16 + $0xc0] sm:$0xff]
    %v2427 = vld [vmem:[#allocation16 + $0xc8] sm:$0xff]
    %v2428 = vld [vmem:[#allocation16 + $0xe0] sm:$0xff]
    %v2429 = vld [vmem:[#allocation16 + $0xe8] sm:$0xff]
    %v2430 = vld [vmem:[#allocation16 + $0xf0] sm:$0xff]
    %v2431 = vld [vmem:[#allocation16 + $0xf8] sm:$0xff]
    %v2432 = vld [vmem:[#allocation16 + $0x100] sm:$0xff]
    %v2433 = vld [vmem:[#allocation16 + $0x108] sm:$0xff]
    %v2434 = vld [vmem:[#allocation16 + $0x120] sm:$0xff]
    %v2435 = vld [vmem:[#allocation16 + $0x128] sm:$0xff]
    %v2436 = vld [vmem:[#allocation16 + $0x130] sm:$0xff]
    %v2437 = vld [vmem:[#allocation16 + $0x138] sm:$0xff]
    %v2438 = vld [vmem:[#allocation16 + $0x140] sm:$0xff]
    %v2439 = vld [vmem:[#allocation16 + $0x148] sm:$0xff]
    %v2440 = vld [vmem:[#allocation16 + $0x160] sm:$0xff]
    %v2441 = vld [vmem:[#allocation16 + $0x168] sm:$0xff]
    %v2442 = vld [vmem:[#allocation16 + $0x170] sm:$0xff]
    %v2443 = vld [vmem:[#allocation16 + $0x178] sm:$0xff]
    %v2444 = vld [vmem:[#allocation16 + $0x180] sm:$0xff]
    %v2445 = vld [vmem:[#allocation16 + $0x188] sm:$0xff]
    %v2446 = vld [vmem:[#allocation16 + $0x1a0] sm:$0xff]
    %v2447 = vld [vmem:[#allocation16 + $0x1a8] sm:$0xff]
    %v2448 = vld [vmem:[#allocation16 + $0x1b0] sm:$0xff]
    %v2449 = vld [vmem:[#allocation16 + $0x1b8] sm:$0xff]
    %v2450 = vld [vmem:[#allocation16 + $0x1c0] sm:$0xff]
    %v2451 = vld [vmem:[#allocation16 + $0x1c8] sm:$0xff]
    %v2452 = vld [vmem:[#allocation16 + $0x1e0] sm:$0xff]
    %v2453 = vld [vmem:[#allocation16 + $0x1e8] sm:$0xff]
    %v2454 = vld [vmem:[#allocation16 + $0x1f0] sm:$0xff]
    %v2455 = vld [vmem:[#allocation16 + $0x1f8] sm:$0xff]
    %v2456 = vld [vmem:[#allocation16 + $0x200] sm:$0xff]
    %v2457 = vld [vmem:[#allocation16 + $0x208] sm:$0xff]
    %v2458 = vld [vmem:[#allocation16 + $0x220] sm:$0xff]
    %v2459 = vld [vmem:[#allocation16 + $0x228] sm:$0xff]
    %v2460 = vld [vmem:[#allocation16 + $0x230] sm:$0xff]
    %v2461 = vld [vmem:[#allocation16 + $0x238] sm:$0xff]
    %v2462 = vld [vmem:[#allocation16 + $0x240] sm:$0xff]
    %v2463 = vld [vmem:[#allocation16 + $0x248] sm:$0xff]
    %v2464 = vld [vmem:[#allocation16 + $0x260] sm:$0xff]
    %v2465 = vld [vmem:[#allocation16 + $0x268] sm:$0xff]
    %v2466 = vld [vmem:[#allocation16 + $0x270] sm:$0xff]
    %v2467 = vld [vmem:[#allocation16 + $0x278] sm:$0xff]
    %v2468 = vld [vmem:[#allocation16 + $0x280] sm:$0xff]
    %v2469 = vld [vmem:[#allocation16 + $0x288] sm:$0xff]
    %v2470 = vld [vmem:[#allocation16 + $0x2a0] sm:$0xff]
    %v2471 = vld [vmem:[#allocation16 + $0x2a8] sm:$0xff]
    %v2472 = vld [vmem:[#allocation16 + $0x2b0] sm:$0xff]
    %v2473 = vld [vmem:[#allocation16 + $0x2b8] sm:$0xff]
    %v2474 = vld [vmem:[#allocation16 + $0x2c0] sm:$0xff]
    %v2475 = vld [vmem:[#allocation16 + $0x2c8] sm:$0xff]
    %v2476 = vld [vmem:[#allocation16 + $0x2e0] sm:$0xff]
    %v2477 = vld [vmem:[#allocation16 + $0x2e8] sm:$0xff]
    %v2478 = vld [vmem:[#allocation16 + $0x2f0] sm:$0xff]
    %v2479 = vld [vmem:[#allocation16 + $0x2f8] sm:$0xff]
    %v2480 = vld [vmem:[#allocation16 + $0x300] sm:$0xff]
    %v2481 = vld [vmem:[#allocation16 + $0x308] sm:$0xff]
    %v2482 = vld [vmem:[#allocation16 + $0x320] sm:$0xff]
    %v2483 = vld [vmem:[#allocation16 + $0x328] sm:$0xff]
    %v2484 = vld [vmem:[#allocation16 + $0x330] sm:$0xff]
    %v2485 = vld [vmem:[#allocation16 + $0x338] sm:$0xff]
    %v2486 = vld [vmem:[#allocation16 + $0x340] sm:$0xff]
    %v2487 = vld [vmem:[#allocation16 + $0x348] sm:$0xff]
    %v2488 = vld [vmem:[#allocation16 + $0x360] sm:$0xff]
    %v2489 = vld [vmem:[#allocation16 + $0x368] sm:$0xff]
    %v2490 = vld [vmem:[#allocation16 + $0x370] sm:$0xff]
    %v2491 = vld [vmem:[#allocation16 + $0x378] sm:$0xff]
    %v2492 = vld [vmem:[#allocation16 + $0x380] sm:$0xff]
    %v2493 = vld [vmem:[#allocation16 + $0x388] sm:$0xff]
    %v2494 = vld [vmem:[#allocation16 + $0x3a0] sm:$0xff]
    %v2495 = vld [vmem:[#allocation16 + $0x3a8] sm:$0xff]
    %v2496 = vld [vmem:[#allocation16 + $0x3b0] sm:$0xff]
    %v2497 = vld [vmem:[#allocation16 + $0x3b8] sm:$0xff]
    %v2498 = vld [vmem:[#allocation16 + $0x3c0] sm:$0xff]
    %v2499 = vld [vmem:[#allocation16 + $0x3c8] sm:$0xff]
    %v2500 = vld [vmem:[#allocation16 + $0x3e0] sm:$0xff]
    %v2501 = vld [vmem:[#allocation16 + $0x3e8] sm:$0xff]
    %v2502 = vld [vmem:[#allocation16 + $0x3f0] sm:$0xff]
    %v2503 = vld [vmem:[#allocation16 + $0x3f8] sm:$0xff]
    %v2504 = vld [vmem:[%s12] sm:$0xff]
    %v2506 = vrot.slane %v2407, 7
    %v2509 = vlaneseq
    %v2510 = vshrl.u32 %v2509, 7
    %v2511 = vsub.s32 0, %v2510
    %v2512 = vrot.slane %v2504, %v2511
    %v2513 = vlaneseq
    %v2514 = vshrl.u32 %v2513, 7
    %v2515 = vsub.s32 1, %v2514
    %v2516 = vrot.slane %v2504, %v2515
    %v2517 = vlaneseq
    %v2518 = vshrl.u32 %v2517, 7
    %v2519 = vsub.s32 4, %v2518
    %v2520 = vrot.slane %v2504, %v2519
    %v2521 = vlaneseq
    %v2522 = vshrl.u32 %v2521, 7
    %v2523 = vsub.s32 5, %v2522
    %v2524 = vrot.slane %v2504, %v2523
    %v2525 = vlaneseq
    %v2526 = vshrl.u32 %v2525, 7
    %v2527 = vsub.s32 6, %v2526
    %v2528 = vrot.slane %v2504, %v2527
    %v2529 = vlaneseq
    %v2530 = vshrl.u32 %v2529, 7
    %v2531 = vsub.s32 7, %v2530
    %v2532 = vrot.slane %v2504, %v2531
    %2539 = vmatprep.subr.mxu0 %v2409
    %2540 = vmatpush1.msra.mxu0 %v2408
    %2541 = vmatprep.subr.mxu0 %v2415
    %2542 = vmatpush1.msra.mxu0 %v2414
    %2543 = vmatprep.subr.mxu0 %v2421
    %2544 = vmatpush1.msra.mxu0 %v2420
    %2545 = vmatprep.subr.mxu0 %v2427
    %2546 = vmatpush1.msra.mxu0 %v2426
    %2547 = vmatprep.subr.mxu0 %v2433
    %2548 = vmatpush1.msra.mxu0 %v2432
    %2549 = vmatprep.subr.mxu0 %v2439
    %2550 = vmatpush1.msra.mxu0 %v2438
    %2551 = vmatprep.subr.mxu0 %v2445
    %2552 = vmatpush1.msra.mxu0 %v2444
    %2553 = vmatprep.subr.mxu0 %v2451
    %2554 = vmatpush1.msra.mxu0 %v2450
    %2555 = vmatprep.subr.mxu0 %v2457
    %2556 = vmatpush1.msra.mxu0 %v2456
    %2557 = vmatprep.subr.mxu0 %v2463
    %2558 = vmatpush1.msra.mxu0 %v2462
    %2559 = vmatprep.subr.mxu0 %v2469
    %2560 = vmatpush1.msra.mxu0 %v2468
    %2561 = vmatprep.subr.mxu0 %v2475
    %2562 = vmatpush1.msra.mxu0 %v2474
    %2563 = vmatprep.subr.mxu0 %v2481
    %2564 = vmatpush1.msra.mxu0 %v2480
    %2565 = vmatprep.subr.mxu0 %v2487
    %2566 = vmatpush1.msra.mxu0 %v2486
    %2567 = vmatprep.subr.mxu0 %v2493
    %2568 = vmatpush1.msra.mxu0 %v2492
    %2569 = vmatprep.subr.mxu0 %v2499
    %2570 = vmatpush1.msra.mxu0 %v2498
    %2571 = vmatprep.subr.mxu0 0.0
    %2572 = vmatpush1.msra.mxu0 0.0
    %2573 = vmatprep.subr.mxu0 0.0
    %2574 = vmatpush1.msra.mxu0 0.0
    %2575 = vmatprep.subr.mxu0 0.0
    %2576 = vmatpush1.msra.mxu0 0.0
    %2577 = vmatprep.subr.mxu0 0.0
    %2578 = vmatpush1.msra.mxu0 0.0
    %2579 = vmatprep.subr.mxu0 0.0
    %2580 = vmatpush1.msra.mxu0 0.0
    %2581 = vmatprep.subr.mxu0 0.0
    %2582 = vmatpush1.msra.mxu0 0.0
    %2583 = vmatprep.subr.mxu0 0.0
    %2584 = vmatpush1.msra.mxu0 0.0
    %2585 = vmatprep.subr.mxu0 0.0
    %2586 = vmatpush1.msra.mxu0 0.0
    %2587 = vmatprep.subr.mxu0 0.0
    %2588 = vmatpush1.msra.mxu0 0.0
    %2589 = vmatprep.subr.mxu0 0.0
    %2590 = vmatpush1.msra.mxu0 0.0
    %2591 = vmatprep.subr.mxu0 0.0
    %2592 = vmatpush1.msra.mxu0 0.0
    %2593 = vmatprep.subr.mxu0 0.0
    %2594 = vmatpush1.msra.mxu0 0.0
    %2595 = vmatprep.subr.mxu0 0.0
    %2596 = vmatpush1.msra.mxu0 0.0
    %2597 = vmatprep.subr.mxu0 0.0
    %2598 = vmatpush1.msra.mxu0 0.0
    %2599 = vmatprep.subr.mxu0 0.0
    %2600 = vmatpush1.msra.mxu0 0.0
    %2601 = vmatprep.subr.mxu0 0.0
    %2602 = vmatpush1.msra.mxu0 0.0
    %2603 = vmatprep.mubr.f32.mxu0 0.0
    %2604 = vmatmul.mubr.f32.gmra.mrb[0].mxu0 %v2506
    %v2605 = vpop.f32.mrb[0].mxu0
    %v2606 = vadd.f32 %v2512, %v2605
    %v2607 = vpop.f32.mrb[0].mxu0
    %v2608 = vadd.f32 %v2516, %v2607
    %2609 = vdwg.mxu0
    %2610 = vmatprep.subr.mxu0 %v2411
    %2611 = vmatpush1.msra.mxu0 %v2410
    %2612 = vmatprep.subr.mxu0 %v2417
    %2613 = vmatpush1.msra.mxu0 %v2416
    %2614 = vmatprep.subr.mxu0 %v2423
    %2615 = vmatpush1.msra.mxu0 %v2422
    %2616 = vmatprep.subr.mxu0 %v2429
    %2617 = vmatpush1.msra.mxu0 %v2428
    %2618 = vmatprep.subr.mxu0 %v2435
    %2619 = vmatpush1.msra.mxu0 %v2434
    %2620 = vmatprep.subr.mxu0 %v2441
    %2621 = vmatpush1.msra.mxu0 %v2440
    %2622 = vmatprep.subr.mxu0 %v2447
    %2623 = vmatpush1.msra.mxu0 %v2446
    %2624 = vmatprep.subr.mxu0 %v2453
    %2625 = vmatpush1.msra.mxu0 %v2452
    %2626 = vmatprep.subr.mxu0 %v2459
    %2627 = vmatpush1.msra.mxu0 %v2458
    %2628 = vmatprep.subr.mxu0 %v2465
    %2629 = vmatpush1.msra.mxu0 %v2464
    %2630 = vmatprep.subr.mxu0 %v2471
    %2631 = vmatpush1.msra.mxu0 %v2470
    %2632 = vmatprep.subr.mxu0 %v2477
    %2633 = vmatpush1.msra.mxu0 %v2476
    %2634 = vmatprep.subr.mxu0 %v2483
    %2635 = vmatpush1.msra.mxu0 %v2482
    %2636 = vmatprep.subr.mxu0 %v2489
    %2637 = vmatpush1.msra.mxu0 %v2488
    %2638 = vmatprep.subr.mxu0 %v2495
    %2639 = vmatpush1.msra.mxu0 %v2494
    %2640 = vmatprep.subr.mxu0 %v2501
    %2641 = vmatpush1.msra.mxu0 %v2500
    %2642 = vmatprep.subr.mxu0 0.0
    %2643 = vmatpush1.msra.mxu0 0.0
    %2644 = vmatprep.subr.mxu0 0.0
    %2645 = vmatpush1.msra.mxu0 0.0
    %2646 = vmatprep.subr.mxu0 0.0
    %2647 = vmatpush1.msra.mxu0 0.0
    %2648 = vmatprep.subr.mxu0 0.0
    %2649 = vmatpush1.msra.mxu0 0.0
    %2650 = vmatprep.subr.mxu0 0.0
    %2651 = vmatpush1.msra.mxu0 0.0
    %2652 = vmatprep.subr.mxu0 0.0
    %2653 = vmatpush1.msra.mxu0 0.0
    %2654 = vmatprep.subr.mxu0 0.0
    %2655 = vmatpush1.msra.mxu0 0.0
    %2656 = vmatprep.subr.mxu0 0.0
    %2657 = vmatpush1.msra.mxu0 0.0
    %2658 = vmatprep.subr.mxu0 0.0
    %2659 = vmatpush1.msra.mxu0 0.0
    %2660 = vmatprep.subr.mxu0 0.0
    %2661 = vmatpush1.msra.mxu0 0.0
    %2662 = vmatprep.subr.mxu0 0.0
    %2663 = vmatpush1.msra.mxu0 0.0
    %2664 = vmatprep.subr.mxu0 0.0
    %2665 = vmatpush1.msra.mxu0 0.0
    %2666 = vmatprep.subr.mxu0 0.0
    %2667 = vmatpush1.msra.mxu0 0.0
    %2668 = vmatprep.subr.mxu0 0.0
    %2669 = vmatpush1.msra.mxu0 0.0
    %2670 = vmatprep.subr.mxu0 0.0
    %2671 = vmatpush1.msra.mxu0 0.0
    %2672 = vmatprep.subr.mxu0 0.0
    %2673 = vmatpush1.msra.mxu0 0.0
    %2674 = vmatprep.mubr.f32.mxu0 0.0
    %2675 = vmatmul.mubr.f32.gmra.mrb[0].mxu0 %v2506
    %v2676 = vpop.f32.mrb[0].mxu0
    %v2677 = vadd.f32 %v2520, %v2676
    %v2678 = vpop.f32.mrb[0].mxu0
    %v2679 = vadd.f32 %v2524, %v2678
    %2680 = vdwg.mxu0
    %2681 = vmatprep.subr.mxu0 %v2413
    %2682 = vmatpush1.msra.mxu0 %v2412
    %2683 = vmatprep.subr.mxu0 %v2419
    %2684 = vmatpush1.msra.mxu0 %v2418
    %2685 = vmatprep.subr.mxu0 %v2425
    %2686 = vmatpush1.msra.mxu0 %v2424
    %2687 = vmatprep.subr.mxu0 %v2431
    %2688 = vmatpush1.msra.mxu0 %v2430
    %2689 = vmatprep.subr.mxu0 %v2437
    %2690 = vmatpush1.msra.mxu0 %v2436
    %2691 = vmatprep.subr.mxu0 %v2443
    %2692 = vmatpush1.msra.mxu0 %v2442
    %2693 = vmatprep.subr.mxu0 %v2449
    %2694 = vmatpush1.msra.mxu0 %v2448
    %2695 = vmatprep.subr.mxu0 %v2455
    %2696 = vmatpush1.msra.mxu0 %v2454
    %2697 = vmatprep.subr.mxu0 %v2461
    %2698 = vmatpush1.msra.mxu0 %v2460
    %2699 = vmatprep.subr.mxu0 %v2467
    %2700 = vmatpush1.msra.mxu0 %v2466
    %2701 = vmatprep.subr.mxu0 %v2473
    %2702 = vmatpush1.msra.mxu0 %v2472
    %2703 = vmatprep.subr.mxu0 %v2479
    %2704 = vmatpush1.msra.mxu0 %v2478
    %2705 = vmatprep.subr.mxu0 %v2485
    %2706 = vmatpush1.msra.mxu0 %v2484
    %2707 = vmatprep.subr.mxu0 %v2491
    %2708 = vmatpush1.msra.mxu0 %v2490
    %2709 = vmatprep.subr.mxu0 %v2497
    %2710 = vmatpush1.msra.mxu0 %v2496
    %2711 = vmatprep.subr.mxu0 %v2503
    %2712 = vmatpush1.msra.mxu0 %v2502
    %2713 = vmatprep.subr.mxu0 0.0
    %2714 = vmatpush1.msra.mxu0 0.0
    %2715 = vmatprep.subr.mxu0 0.0
    %2716 = vmatpush1.msra.mxu0 0.0
    %2717 = vmatprep.subr.mxu0 0.0
    %2718 = vmatpush1.msra.mxu0 0.0
    %2719 = vmatprep.subr.mxu0 0.0
    %2720 = vmatpush1.msra.mxu0 0.0
    %2721 = vmatprep.subr.mxu0 0.0
    %2722 = vmatpush1.msra.mxu0 0.0
    %2723 = vmatprep.subr.mxu0 0.0
    %2724 = vmatpush1.msra.mxu0 0.0
    %2725 = vmatprep.subr.mxu0 0.0
    %2726 = vmatpush1.msra.mxu0 0.0
    %2727 = vmatprep.subr.mxu0 0.0
    %2728 = vmatpush1.msra.mxu0 0.0
    %2729 = vmatprep.subr.mxu0 0.0
    %2730 = vmatpush1.msra.mxu0 0.0
    %2731 = vmatprep.subr.mxu0 0.0
    %2732 = vmatpush1.msra.mxu0 0.0
    %2733 = vmatprep.subr.mxu0 0.0
    %2734 = vmatpush1.msra.mxu0 0.0
    %2735 = vmatprep.subr.mxu0 0.0
    %2736 = vmatpush1.msra.mxu0 0.0
    %2737 = vmatprep.subr.mxu0 0.0
    %2738 = vmatpush1.msra.mxu0 0.0
    %2739 = vmatprep.subr.mxu0 0.0
    %2740 = vmatpush1.msra.mxu0 0.0
    %2741 = vmatprep.subr.mxu0 0.0
    %2742 = vmatpush1.msra.mxu0 0.0
    %2743 = vmatprep.subr.mxu0 0.0
    %2744 = vmatpush1.msra.mxu0 0.0
    %2745 = vmatprep.mubr.f32.mxu0 0.0
    %2746 = vmatmul.mubr.f32.gmra.mrb[0].mxu0 %v2506
    %v2747 = vpop.f32.mrb[0].mxu0
    %v2748 = vadd.f32 %v2528, %v2747
    %v2749 = vpop.f32.mrb[0].mxu0
    %v2750 = vadd.f32 %v2532, %v2749
    %2751 = vdwg.mxu0
    %v2752 = vxor.u32 %v2606, 2147483648
    %v2753 = vxor.u32 %v2608, 2147483648
    %v2754 = vmul.f32 %v2752, 1.442695
    %v2755 = vpow.pop %v2754
    %v2756 = vmul.f32 %v2753, 1.442695
    %v2757 = vpow.pop %v2756
    %v2758 = vadd.f32 %v2755, 1.0
    %v2759 = vadd.f32 %v2757, 1.0
    %v2760 = vrcp.pop %v2758
    %v2761 = vmul.f32 1.0, %v2760
    %v2762 = vrcp.pop %v2759
    %v2763 = vmul.f32 1.0, %v2762
    %v2764 = vtanh.pop %v2677
    %v2765 = vtanh.pop %v2679
    %v2766 = vxor.u32 %v2748, 2147483648
    %v2767 = vxor.u32 %v2750, 2147483648
    %v2768 = vmul.f32 %v2766, 1.442695
    %v2769 = vpow.pop %v2768
    %v2770 = vmul.f32 %v2767, 1.442695
    %v2771 = vpow.pop %v2770
    %v2772 = vadd.f32 %v2769, 1.0
    %v2773 = vadd.f32 %v2771, 1.0
    %v2774 = vrcp.pop %v2772
    %v2775 = vmul.f32 1.0, %v2774
    %v2776 = vrcp.pop %v2773
    %v2777 = vmul.f32 1.0, %v2776
    %v2778 = vmul.f32 %v2761, %v2764
    %v2779 = vmul.f32 %v2763, %v2765
    %v2780 = vtanh.pop %v2778
    %v2781 = vtanh.pop %v2779
    %v2782 = vmul.f32 %v2775, %v2780
    %v2783 = vmul.f32 %v2777, %v2781
    %v2784 = vld [vmem:[#allocation10] sm:$0xff]
    %v2785 = vld [vmem:[#allocation10 + $0x8] sm:$0xff]
    %v2786 = vld [vmem:[#allocation10 + $0x10] sm:$0xff]
    %v2787 = vld [vmem:[#allocation10 + $0x18] sm:$0xff]
    %v2788 = vld [vmem:[#allocation10 + $0x20] sm:$0xff]
    %v2789 = vld [vmem:[#allocation10 + $0x28] sm:$0xff]
    %v2790 = vld [vmem:[#allocation10 + $0x30] sm:$0xff]
    %v2791 = vld [vmem:[#allocation10 + $0x38] sm:$0xff]
    %v2792 = vld [vmem:[#allocation10 + $0x40] sm:$0xff]
    %v2793 = vld [vmem:[#allocation10 + $0x48] sm:$0xff]
    %v2794 = vld [vmem:[#allocation10 + $0x50] sm:$0xff]
    %v2795 = vld [vmem:[#allocation10 + $0x58] sm:$0xff]
    %v2796 = vld [vmem:[#allocation10 + $0x60] sm:$0xff]
    %v2797 = vld [vmem:[#allocation10 + $0x68] sm:$0xff]
    %v2798 = vld [vmem:[#allocation10 + $0x70] sm:$0xff]
    %v2799 = vld [vmem:[#allocation10 + $0x78] sm:$0xff]
    %v2800 = vld [vmem:[#allocation10 + $0x80] sm:$0xff]
    %v2801 = vld [vmem:[#allocation10 + $0x88] sm:$0xff]
    %v2802 = vld [vmem:[#allocation10 + $0x90] sm:$0xff]
    %v2803 = vld [vmem:[#allocation10 + $0x98] sm:$0xff]
    %v2804 = vld [vmem:[#allocation10 + $0xa0] sm:$0xff]
    %v2805 = vld [vmem:[#allocation10 + $0xa8] sm:$0xff]
    %v2806 = vld [vmem:[#allocation10 + $0xb0] sm:$0xff]
    %v2807 = vld [vmem:[#allocation10 + $0xb8] sm:$0xff]
    %v2808 = vld [vmem:[#allocation10 + $0xc0] sm:$0xff]
    %v2809 = vld [vmem:[#allocation10 + $0xc8] sm:$0xff]
    %v2810 = vld [vmem:[#allocation10 + $0xd0] sm:$0xff]
    %v2811 = vld [vmem:[#allocation10 + $0xd8] sm:$0xff]
    %v2812 = vld [vmem:[#allocation10 + $0xe0] sm:$0xff]
    %v2813 = vld [vmem:[#allocation10 + $0xe8] sm:$0xff]
    %v2814 = vld [vmem:[#allocation10 + $0xf0] sm:$0xff]
    %v2815 = vld [vmem:[#allocation10 + $0xf8] sm:$0xff]
    %v2816 = vld [vmem:[#allocation10 + $0x100] sm:$0xff]
    %v2817 = vld [vmem:[#allocation10 + $0x108] sm:$0xff]
    %v2818 = vld [vmem:[#allocation10 + $0x110] sm:$0xff]
    %v2819 = vld [vmem:[#allocation10 + $0x118] sm:$0xff]
    %v2820 = vld [vmem:[#allocation10 + $0x120] sm:$0xff]
    %v2821 = vld [vmem:[#allocation10 + $0x128] sm:$0xff]
    %v2822 = vld [vmem:[#allocation10 + $0x130] sm:$0xff]
    %v2823 = vld [vmem:[#allocation10 + $0x138] sm:$0xff]
    %v2824 = vld [vmem:[#allocation10 + $0x140] sm:$0xff]
    %v2825 = vld [vmem:[#allocation10 + $0x148] sm:$0xff]
    %v2826 = vld [vmem:[#allocation10 + $0x150] sm:$0xff]
    %v2827 = vld [vmem:[#allocation10 + $0x158] sm:$0xff]
    %v2828 = vld [vmem:[#allocation10 + $0x160] sm:$0xff]
    %v2829 = vld [vmem:[#allocation10 + $0x168] sm:$0xff]
    %v2830 = vld [vmem:[#allocation10 + $0x170] sm:$0xff]
    %v2831 = vld [vmem:[#allocation10 + $0x178] sm:$0xff]
    %v2832 = vld [vmem:[#allocation10 + $0x180] sm:$0xff]
    %v2833 = vld [vmem:[#allocation10 + $0x188] sm:$0xff]
    %v2834 = vld [vmem:[#allocation10 + $0x190] sm:$0xff]
    %v2835 = vld [vmem:[#allocation10 + $0x198] sm:$0xff]
    %v2836 = vld [vmem:[#allocation10 + $0x1a0] sm:$0xff]
    %v2837 = vld [vmem:[#allocation10 + $0x1a8] sm:$0xff]
    %v2838 = vld [vmem:[#allocation10 + $0x1b0] sm:$0xff]
    %v2839 = vld [vmem:[#allocation10 + $0x1b8] sm:$0xff]
    %v2840 = vld [vmem:[#allocation10 + $0x1c0] sm:$0xff]
    %v2841 = vld [vmem:[#allocation10 + $0x1c8] sm:$0xff]
    %v2842 = vld [vmem:[#allocation10 + $0x1d0] sm:$0xff]
    %v2843 = vld [vmem:[#allocation10 + $0x1d8] sm:$0xff]
    %v2844 = vld [vmem:[#allocation10 + $0x1e0] sm:$0xff]
    %v2845 = vld [vmem:[#allocation10 + $0x1e8] sm:$0xff]
    %v2846 = vld [vmem:[#allocation10 + $0x1f0] sm:$0xff]
    %v2847 = vld [vmem:[#allocation10 + $0x1f8] sm:$0xff]
    %v2848 = vld [vmem:[#allocation11] sm:$0x3]
    %v2850 = vlaneseq
    %v2851 = vshrl.u32 %v2850, 7
    %v2852 = vsub.s32 0, %v2851
    %v2853 = vrot.slane %v2848, %v2852
    %v2854 = vlaneseq
    %v2855 = vshrl.u32 %v2854, 7
    %v2856 = vsub.s32 1, %v2855
    %v2857 = vrot.slane %v2848, %v2856
    %2860 = vmatprep.subr.mxu0 %v2785
    %2861 = vmatpush1.msra.mxu0 %v2784
    %2862 = vmatprep.subr.mxu0 %v2787
    %2863 = vmatpush1.msra.mxu0 %v2786
    %2864 = vmatprep.subr.mxu0 %v2789
    %2865 = vmatpush1.msra.mxu0 %v2788
    %2866 = vmatprep.subr.mxu0 %v2791
    %2867 = vmatpush1.msra.mxu0 %v2790
    %2868 = vmatprep.subr.mxu0 %v2793
    %2869 = vmatpush1.msra.mxu0 %v2792
    %2870 = vmatprep.subr.mxu0 %v2795
    %2871 = vmatpush1.msra.mxu0 %v2794
    %2872 = vmatprep.subr.mxu0 %v2797
    %2873 = vmatpush1.msra.mxu0 %v2796
    %2874 = vmatprep.subr.mxu0 %v2799
    %2875 = vmatpush1.msra.mxu0 %v2798
    %2876 = vmatprep.subr.mxu0 %v2801
    %2877 = vmatpush1.msra.mxu0 %v2800
    %2878 = vmatprep.subr.mxu0 %v2803
    %2879 = vmatpush1.msra.mxu0 %v2802
    %2880 = vmatprep.subr.mxu0 %v2805
    %2881 = vmatpush1.msra.mxu0 %v2804
    %2882 = vmatprep.subr.mxu0 %v2807
    %2883 = vmatpush1.msra.mxu0 %v2806
    %2884 = vmatprep.subr.mxu0 %v2809
    %2885 = vmatpush1.msra.mxu0 %v2808
    %2886 = vmatprep.subr.mxu0 %v2811
    %2887 = vmatpush1.msra.mxu0 %v2810
    %2888 = vmatprep.subr.mxu0 %v2813
    %2889 = vmatpush1.msra.mxu0 %v2812
    %2890 = vmatprep.subr.mxu0 %v2815
    %2891 = vmatpush1.msra.mxu0 %v2814
    %2892 = vmatprep.subr.mxu0 %v2817
    %2893 = vmatpush1.msra.mxu0 %v2816
    %2894 = vmatprep.subr.mxu0 %v2819
    %2895 = vmatpush1.msra.mxu0 %v2818
    %2896 = vmatprep.subr.mxu0 %v2821
    %2897 = vmatpush1.msra.mxu0 %v2820
    %2898 = vmatprep.subr.mxu0 %v2823
    %2899 = vmatpush1.msra.mxu0 %v2822
    %2900 = vmatprep.subr.mxu0 %v2825
    %2901 = vmatpush1.msra.mxu0 %v2824
    %2902 = vmatprep.subr.mxu0 %v2827
    %2903 = vmatpush1.msra.mxu0 %v2826
    %2904 = vmatprep.subr.mxu0 %v2829
    %2905 = vmatpush1.msra.mxu0 %v2828
    %2906 = vmatprep.subr.mxu0 %v2831
    %2907 = vmatpush1.msra.mxu0 %v2830
    %2908 = vmatprep.subr.mxu0 %v2833
    %2909 = vmatpush1.msra.mxu0 %v2832
    %2910 = vmatprep.subr.mxu0 %v2835
    %2911 = vmatpush1.msra.mxu0 %v2834
    %2912 = vmatprep.subr.mxu0 %v2837
    %2913 = vmatpush1.msra.mxu0 %v2836
    %2914 = vmatprep.subr.mxu0 %v2839
    %2915 = vmatpush1.msra.mxu0 %v2838
    %2916 = vmatprep.subr.mxu0 %v2841
    %2917 = vmatpush1.msra.mxu0 %v2840
    %2918 = vmatprep.subr.mxu0 %v2843
    %2919 = vmatpush1.msra.mxu0 %v2842
    %2920 = vmatprep.subr.mxu0 %v2845
    %2921 = vmatpush1.msra.mxu0 %v2844
    %2922 = vmatprep.subr.mxu0 %v2847
    %2923 = vmatpush1.msra.mxu0 %v2846
    %2924 = vmatprep.mubr.f32.mxu0 %v313
    %2925 = vmatmul.mubr.f32.gmra.mrb[0].mxu0 %v312
    %v2926 = vpop.f32.mrb[0].mxu0
    %v2927 = vadd.f32 %v2853, %v2926
    %v2928 = vpop.f32.mrb[0].mxu0
    %v2929 = vadd.f32 %v2857, %v2928
    %2930 = vdwg.mxu0
    %v2931 = vxor.u32 %v2927, 2147483648
    %v2932 = vxor.u32 %v2929, 2147483648
    %v2933 = vmul.f32 %v2931, 1.442695
    %v2934 = vpow.pop %v2933
    %v2935 = vmul.f32 %v2932, 1.442695
    %v2936 = vpow.pop %v2935
    %v2937 = vadd.f32 %v2934, 1.0
    %v2938 = vadd.f32 %v2936, 1.0
    %v2939 = vrcp.pop %v2937
    %v2940 = vmul.f32 1.0, %v2939
    %v2941 = vrcp.pop %v2938
    %v2942 = vmul.f32 1.0, %v2941
    %v2943 = vmul.f32 %v312, %v2940
    %v2944 = vmul.f32 %v313, %v2942
    %v2945 = vlaneseq
    %v2946 = vshrl.u32 %v2945, 7
    %v2947 = vsub.s32 0, %v2946
    %v2948 = vrot.slane %v2782, %v2947
    %v2949 = vlaneseq
    %v2950 = vshrl.u32 %v2949, 7
    %v2951 = vsub.s32 0, %v2950
    %v2952 = vrot.slane %v2783, %v2951
    %v2953 = vadd.f32 %v2943, %v2948
    %v2954 = vadd.f32 %v2944, %v2952
    %v2955 = vld [vmem:[#allocation17] sm:$0xff]
    %v2956 = vld [vmem:[#allocation17 + $0x8] sm:$0xff]
    %v2957 = vld [vmem:[#allocation17 + $0x10] sm:$0xff]
    %v2958 = vld [vmem:[#allocation17 + $0x18] sm:$0xff]
    %v2959 = vld [vmem:[#allocation17 + $0x20] sm:$0xff]
    %v2960 = vld [vmem:[#allocation17 + $0x28] sm:$0xff]
    %v2961 = vld [vmem:[#allocation17 + $0x30] sm:$0xff]
    %v2962 = vld [vmem:[#allocation17 + $0x38] sm:$0xff]
    %v2963 = vld [vmem:[#allocation17 + $0x40] sm:$0xff]
    %v2964 = vld [vmem:[#allocation17 + $0x48] sm:$0xff]
    %v2965 = vld [vmem:[#allocation17 + $0x50] sm:$0xff]
    %v2966 = vld [vmem:[#allocation17 + $0x58] sm:$0xff]
    %v2967 = vld [vmem:[#allocation17 + $0x60] sm:$0xff]
    %v2968 = vld [vmem:[#allocation17 + $0x68] sm:$0xff]
    %v2969 = vld [vmem:[#allocation17 + $0x70] sm:$0xff]
    %v2970 = vld [vmem:[#allocation17 + $0x78] sm:$0xff]
    %v2971 = vld [vmem:[#allocation17 + $0x80] sm:$0xff]
    %v2972 = vld [vmem:[#allocation17 + $0x88] sm:$0xff]
    %v2973 = vld [vmem:[#allocation17 + $0x90] sm:$0xff]
    %v2974 = vld [vmem:[#allocation17 + $0x98] sm:$0xff]
    %v2975 = vld [vmem:[#allocation17 + $0xa0] sm:$0xff]
    %v2976 = vld [vmem:[#allocation17 + $0xa8] sm:$0xff]
    %v2977 = vld [vmem:[#allocation17 + $0xb0] sm:$0xff]
    %v2978 = vld [vmem:[#allocation17 + $0xb8] sm:$0xff]
    %v2979 = vld [vmem:[#allocation17 + $0xc0] sm:$0xff]
    %v2980 = vld [vmem:[#allocation17 + $0xc8] sm:$0xff]
    %v2981 = vld [vmem:[#allocation17 + $0xd0] sm:$0xff]
    %v2982 = vld [vmem:[#allocation17 + $0xd8] sm:$0xff]
    %v2983 = vld [vmem:[#allocation17 + $0xe0] sm:$0xff]
    %v2984 = vld [vmem:[#allocation17 + $0xe8] sm:$0xff]
    %v2985 = vld [vmem:[#allocation17 + $0xf0] sm:$0xff]
    %v2986 = vld [vmem:[#allocation17 + $0xf8] sm:$0xff]
    %2987 = vmatprep.subr.mxu0 0.0
    %2988 = vmatpush1.msra.mxu0 %v2955
    %2989 = vmatprep.subr.mxu0 0.0
    %2990 = vmatpush1.msra.mxu0 %v2956
    %2991 = vmatprep.subr.mxu0 0.0
    %2992 = vmatpush1.msra.mxu0 %v2957
    %2993 = vmatprep.subr.mxu0 0.0
    %2994 = vmatpush1.msra.mxu0 %v2958
    %2995 = vmatprep.subr.mxu0 0.0
    %2996 = vmatpush1.msra.mxu0 %v2959
    %2997 = vmatprep.subr.mxu0 0.0
    %2998 = vmatpush1.msra.mxu0 %v2960
    %2999 = vmatprep.subr.mxu0 0.0
    %3000 = vmatpush1.msra.mxu0 %v2961
    %3001 = vmatprep.subr.mxu0 0.0
    %3002 = vmatpush1.msra.mxu0 %v2962
    %3003 = vmatprep.subr.mxu0 0.0
    %3004 = vmatpush1.msra.mxu0 %v2963
    %3005 = vmatprep.subr.mxu0 0.0
    %3006 = vmatpush1.msra.mxu0 %v2964
    %3007 = vmatprep.subr.mxu0 0.0
    %3008 = vmatpush1.msra.mxu0 %v2965
    %3009 = vmatprep.subr.mxu0 0.0
    %3010 = vmatpush1.msra.mxu0 %v2966
    %3011 = vmatprep.subr.mxu0 0.0
    %3012 = vmatpush1.msra.mxu0 %v2967
    %3013 = vmatprep.subr.mxu0 0.0
    %3014 = vmatpush1.msra.mxu0 %v2968
    %3015 = vmatprep.subr.mxu0 0.0
    %3016 = vmatpush1.msra.mxu0 %v2969
    %3017 = vmatprep.subr.mxu0 0.0
    %3018 = vmatpush1.msra.mxu0 %v2970
    %3019 = vmatprep.subr.mxu0 0.0
    %3020 = vmatpush1.msra.mxu0 %v2971
    %3021 = vmatprep.subr.mxu0 0.0
    %3022 = vmatpush1.msra.mxu0 %v2972
    %3023 = vmatprep.subr.mxu0 0.0
    %3024 = vmatpush1.msra.mxu0 %v2973
    %3025 = vmatprep.subr.mxu0 0.0
    %3026 = vmatpush1.msra.mxu0 %v2974
    %3027 = vmatprep.subr.mxu0 0.0
    %3028 = vmatpush1.msra.mxu0 %v2975
    %3029 = vmatprep.subr.mxu0 0.0
    %3030 = vmatpush1.msra.mxu0 %v2976
    %3031 = vmatprep.subr.mxu0 0.0
    %3032 = vmatpush1.msra.mxu0 %v2977
    %3033 = vmatprep.subr.mxu0 0.0
    %3034 = vmatpush1.msra.mxu0 %v2978
    %3035 = vmatprep.subr.mxu0 0.0
    %3036 = vmatpush1.msra.mxu0 %v2979
    %3037 = vmatprep.subr.mxu0 0.0
    %3038 = vmatpush1.msra.mxu0 %v2980
    %3039 = vmatprep.subr.mxu0 0.0
    %3040 = vmatpush1.msra.mxu0 %v2981
    %3041 = vmatprep.subr.mxu0 0.0
    %3042 = vmatpush1.msra.mxu0 %v2982
    %3043 = vmatprep.subr.mxu0 0.0
    %3044 = vmatpush1.msra.mxu0 %v2983
    %3045 = vmatprep.subr.mxu0 0.0
    %3046 = vmatpush1.msra.mxu0 %v2984
    %3047 = vmatprep.subr.mxu0 0.0
    %3048 = vmatpush1.msra.mxu0 %v2985
    %3049 = vmatprep.subr.mxu0 0.0
    %3050 = vmatpush1.msra.mxu0 %v2986
    %3051 = vmatprep.mubr.f32.mxu0 %v2954
    %3052 = vmatmul.mubr.f32.gmra.mrb[0].mxu0 %v2953
    %v3053 = vpop.f32.mrb[0].mxu0
    %v3054 = vadd.f32 %v194, %v3053
    %v3055 = vpop.f32.mrb[0].mxu0
    %3056 = vdwg.mxu0
    %3057 = vst [vmem:[#allocation19] sm:$0xff] %v3054
    // Predicated region
    $region106: #{temporal_sae_forward.1} parent=1 // pred_check
      _
    $region107: #{temporal_sae_forward.1} parent=1 // pred_check_branch
      %3059 = sbr.rel (0) target = $region109
    $region108: #{temporal_sae_forward.1} parent=1 // pred_region
      %s3061 = ssub.s32 128, 128
      %3062 = vsyncadd [#allocation4], %s3061
      %s3064 = sshll.u32 [#allocation19], 4
      %s3065 = int_to_ptr.vmem [resolvable:$true] %s3064
      %3067 = dma.vmem_to_hbm [thread:$0]  %s3065, 128, %s16, [#allocation4]
    $region109: #{temporal_sae_forward.1} parent=1 // pred_fallthru
      _
    // Predicated region
    $region110: #{temporal_sae_forward.1} parent=1 // pred_check
      _
    $region111: #{temporal_sae_forward.1} parent=1 // pred_check_branch
      %3069 = sbr.rel (0) target = $region113
    $region112: #{temporal_sae_forward.1} parent=1 // pred_region
      %s3071 = ssub.s32 256, 256
      %3072 = vsyncadd [#allocation21], %s3071
      %s3074 = sshll.u32 [#allocation20], 4
      %s3075 = int_to_ptr.vmem [resolvable:$true] %s3074
      %3077 = dma.vmem_to_hbm [thread:$0]  %s3075, 256, %s17, [#allocation21]
    $region113: #{temporal_sae_forward.1} parent=1 // pred_fallthru
      _
    // Predicated region
    $region114: #{temporal_sae_forward.1} parent=1 // pred_check
      _
    $region115: #{temporal_sae_forward.1} parent=1 // pred_check_branch
      %3079 = sbr.rel (0) target = $region117
    $region116: #{temporal_sae_forward.1} parent=1 // pred_region
      %s3081 = ssub.s32 32, 32
      %3082 = vsyncadd [#allocation21], %s3081
      %s3084 = sshll.u32 [#allocation22], 4
      %s3085 = int_to_ptr.vmem [resolvable:$true] %s3084
      %3087 = dma.vmem_to_hbm [thread:$0]  %s3085, 32, %s18, [#allocation21]
    $region117: #{temporal_sae_forward.1} parent=1 // pred_fallthru
      _
    // Predicated region
    $region118: #{temporal_sae_forward.1} parent=1 // pred_check
      _
    $region119: #{temporal_sae_forward.1} parent=1 // pred_check_branch
      %3089 = sbr.rel (0) target = $region121
    $region120: #{temporal_sae_forward.1} parent=1 // pred_region
      %3090 = dma.done [#allocation4], 128
    $region121: #{temporal_sae_forward.1} parent=1 // pred_fallthru
      _
    // Predicated region
    $region122: #{temporal_sae_forward.1} parent=1 // pred_check
      _
    $region123: #{temporal_sae_forward.1} parent=1 // pred_check_branch
      %3092 = sbr.rel (0) target = $region125
    $region124: #{temporal_sae_forward.1} parent=1 // pred_region
      %3093 = dma.done [#allocation21], 256
    $region125: #{temporal_sae_forward.1} parent=1 // pred_fallthru
      _
    // Predicated region
    $region126: #{temporal_sae_forward.1} parent=1 // pred_check
      _
    $region127: #{temporal_sae_forward.1} parent=1 // pred_check_branch
      %3095 = sbr.rel (0) target = $region129
    $region128: #{temporal_sae_forward.1} parent=1 // pred_region
      %3096 = dma.done [#allocation21], 32
    $region129: #{temporal_sae_forward.1} parent=1 // pred_fallthru
      _
    %3097 = vsyncpa [#allocation3], 1
    %3098 = vsyncpa [#allocation6], 1
    %3099 = vsyncpa [#allocation9], 1
    %3100 = vsyncpa [#allocation12], 1
    %3101 = vsyncpa [#allocation15], 1
    %3102 = vsyncpa [#allocation18], 1
    %3103 = vsyncpa [#allocation4], 1
    %3104 = vsyncpa [#allocation21], 1

</llo_original>
